<compile_context>
chip_gen: v7x
topology: tpu7x:2x2x1
jax: 0.10.0
libtpu: 0.0.40
codegen_flags: <defaults>
</compile_context>

<pallas_src>
import math

import jax
import jax.numpy as jnp
from jax import lax
from jax.experimental import pallas as pl
from jax.experimental.pallas import tpu as pltpu

# MXU operands in bf16 (native MXU dtype on v5e/v6e/v7x, halves operand bytes);
# accumulation, epilogues and all gate math stay in f32.
_MXU_DTYPE = jnp.bfloat16
# Explicit scoped-VMEM request with headroom: below v7x's 64 MiB physical VMEM
# (and far below v5e/v6e's 128 MiB).
_VMEM_LIMIT_BYTES = 48 * 1024 * 1024


def _round_up(x, m):
    return (x + m - 1) // m * m


# ----------------------------------------------------------------------------
# Conv2d + BatchNorm2d + Hardtanh(0, 20)  (tiled matmul kernel)
# ----------------------------------------------------------------------------
def _conv_mm_htanh_kernel(x_ref, w_ref, b_ref, o_ref, acc_ref):
    """One (Cout, TM) output tile of W(Cout,K) @ patchesᵀ(K,M); K tiled & accumulated."""
    k = pl.program_id(1)

    @pl.when(k == 0)
    def _init():
        acc_ref[...] = jnp.zeros_like(acc_ref)

    acc_ref[...] += jnp.dot(w_ref[...], x_ref[...],
                            preferred_element_type=jnp.float32)

    @pl.when(k == pl.num_programs(1) - 1)
    def _finalize():
        y = acc_ref[...] + b_ref[...]                      # conv bias + BN fold
        o_ref[...] = jnp.clip(y, 0.0, 20.0).astype(o_ref.dtype)   # Hardtanh(0, 20)


def _im2col_T(x, ksize, stride, pad):
    """NCHW x -> (K, M) = (Cin*KH*KW, B*OH*OW) patch matrix (lane axis = M)."""
    B, C, H, W = x.shape
    kh, kw = ksize
    sh, sw = stride
    ph, pw = pad
    xp = jnp.pad(x, ((0, 0), (0, 0), (ph, ph), (pw, pw)))
    OH = (H + 2 * ph - kh) // sh + 1
    OW = (W + 2 * pw - kw) // sw + 1
    ih = (jnp.arange(OH) * sh)[:, None] + jnp.arange(kh)[None, :]      # (OH, KH)
    iw = (jnp.arange(OW) * sw)[:, None] + jnp.arange(kw)[None, :]      # (OW, KW)
    patches = xp[:, :, ih[:, :, None, None], iw[None, None, :, :]]     # (B,C,OH,KH,OW,KW)
    xT = patches.transpose(1, 3, 5, 0, 2, 4).reshape(C * kh * kw, B * OH * OW)
    # TODO(synk): at production sizes keep the im2col implicit (sum of KH*KW shifted
    # matmuls or in-kernel DMA gather) instead of materializing the KH*KW-expanded matrix.
    return xT, OH, OW


def conv_bn_htanh_layer(x, p, stride, pad):
    """Conv2d(bias) + BatchNorm2d(inference fold) + Hardtanh(0,20) as one tiled matmul."""
    w = p["w"]                                             # (Cout, Cin, KH, KW)
    Cout, Cin, kh, kw = w.shape
    B = x.shape[0]

    # Fold BN (running_mean=0, running_var=1, affine) into the conv weight / bias.
    eps = 1e-5
    scale = p["gamma"] / jnp.sqrt(1.0 + eps)
    w_folded = (w * scale[:, None, None, None]).reshape(Cout, Cin * kh * kw)
    b_folded = (p["b"] * scale + p["beta"]).reshape(Cout, 1).astype(jnp.float32)

    xT, OH, OW = _im2col_T(x, (kh, kw), stride, pad)       # (K, M)
    K, M = xT.shape

    TM = min(512, _round_up(M, 128))                       # lane-dense output tile
    TK = min(512, _round_up(K, 128))
    Mp = _round_up(M, TM)
    Kp = _round_up(K, TK)
    xT = jnp.pad(xT, ((0, Kp - K), (0, Mp - M))).astype(_MXU_DTYPE)
    wmat = jnp.pad(w_folded, ((0, 0), (0, Kp - K))).astype(_MXU_DTYPE)

    out = pl.pallas_call(
        _conv_mm_htanh_kernel,
        grid=(Mp // TM, Kp // TK),                         # K (reduction) axis last
        out_shape=jax.ShapeDtypeStruct((Cout, Mp), jnp.float32),
        in_specs=[
            pl.BlockSpec((TK, TM), lambda i, k: (k, i)),     # patchesᵀ tile
            pl.BlockSpec((Cout, TK), lambda i, k: (0, k)),   # folded weight tile
            pl.BlockSpec((Cout, 1), lambda i, k: (0, 0)),    # folded bias
        ],
        out_specs=pl.BlockSpec((Cout, TM), lambda i, k: (0, i)),
        scratch_shapes=[pltpu.VMEM((Cout, TM), jnp.float32)],
        compiler_params=pltpu.CompilerParams(
            dimension_semantics=("parallel", "arbitrary"),
            vmem_limit_bytes=_VMEM_LIMIT_BYTES),
    )(xT, wmat, b_folded)

    # (Cout, M) lane-dense -> NCHW (B, Cout, OH, OW)
    return out[:, :M].reshape(Cout, B, OH, OW).transpose(1, 0, 2, 3)


# ----------------------------------------------------------------------------
# Fused bidirectional GRU layer (time-chunked, both directions in one kernel)
# ----------------------------------------------------------------------------
def bigru_layer(x_tbd, lp, *, max_chunk=32):
    """One bidirectional GRU layer.

    x_tbd: (T, B, D) time-major.
    Returns: out_f (T,B,H), out_b (T,B,H) already un-reversed, hn (2,B,H) [fwd; bwd].
    """
    T, B, D = x_tbd.shape
    H = lp["whh_f"].shape[1]
    G = 3 * H

    TC = min(max_chunk, T)                   # time chunk (VMEM ~ TC*B*(D+8H)*4 bytes)
    nT = -(-T // TC)
    Tp = nT * TC
    x_p = jnp.pad(x_tbd, ((0, Tp - T), (0, 0), (0, 0))) if Tp != T else x_tbd

    # Padded timesteps: +1e9 on the z-gate pre-activation forces z==1 exactly, so the
    # GRU update leaves the hidden state unchanged (no per-step masking in the loop).
    zmask = ((jnp.arange(Tp) >= T).astype(jnp.float32) * 1e9)[:, None, None]
    zpad = zmask * jnp.ones((1, 1, H), jnp.float32)        # (Tp, 1, H)

    # Weights (PyTorch layout: wih (3H, D), whh (3H, H); gate order [r | z | n]).
    wif = lp["wih_f"].T.astype(_MXU_DTYPE)                 # (D, 3H)
    wib = lp["wih_b"].T.astype(_MXU_DTYPE)                 # (D, 3H)
    wfT = lp["whh_f"].T                                    # (H, 3H)
    wbT = lp["whh_b"].T
    z_blk = jnp.zeros((H, G), jnp.float32)
    whh_bd = jnp.concatenate(                              # block-diag: ONE MXU dot per
        [jnp.concatenate([wfT, z_blk], axis=1),            # timestep drives BOTH
         jnp.concatenate([z_blk, wbT], axis=1)],           # directions
        axis=0).astype(_MXU_DTYPE)                         # (2H, 6H)
    bif = lp["bih_f"].reshape(1, G).astype(jnp.float32)
    bib = lp["bih_b"].reshape(1, G).astype(jnp.float32)
    bhh = jnp.concatenate([lp["bhh_f"], lp["bhh_b"]]).reshape(1, 2 * G).astype(jnp.float32)

    def kernel(xf_ref, xb_ref, zpf_ref, zpb_ref, wif_ref, wib_ref, whh_ref,
               bif_ref, bib_ref, bhh_ref, of_ref, ob_ref, hn_ref,
               h_ref, gxf_ref, gxb_ref):
        @pl.when(pl.program_id(0) == 0)
        def _init():
            h_ref[...] = jnp.zeros_like(h_ref)

        # Input projections for the whole chunk (2 MXU matmuls); x-chunk DMA is
        # pipelined by BlockSpec while the previous chunk's recurrence runs.
        xf2 = xf_ref[...].reshape(TC * B, D).astype(_MXU_DTYPE)
        xb2 = xb_ref[...].reshape(TC * B, D).astype(_MXU_DTYPE)
        gxf = (jnp.dot(xf2, wif_ref[...], preferred_element_type=jnp.float32)
               + bif_ref[...]).reshape(TC, B, G)
        gxb = (jnp.dot(xb2, wib_ref[...], preferred_element_type=jnp.float32)
               + bib_ref[...]).reshape(TC, B, G)
        gxf_ref[...] = jnp.concatenate(
            [gxf[:, :, 0:H], gxf[:, :, H:2 * H] + zpf_ref[...], gxf[:, :, 2 * H:]],
            axis=-1)
        gxb_ref[...] = jnp.concatenate(
            [gxb[:, :, 0:H], gxb[:, :, H:2 * H] + zpb_ref[...], gxb[:, :, 2 * H:]],
            axis=-1)

        # Sequential recurrence over the chunk, forward + backward fused.
        def step(tt, carry):
            h = h_ref[...]                                 # (B, 2H) = [h_f | h_b], f32
            gh = jnp.dot(h.astype(_MXU_DTYPE), whh_ref[...],
                         preferred_element_type=jnp.float32) + bhh_ref[...]   # (B, 6H)
            gxf_t = gxf_ref[tt]                            # forward step  c*TC + tt
            gxb_t = gxb_ref[TC - 1 - tt]                   # backward step (reversed)
            rz_f = jax.nn.sigmoid(gxf_t[:, 0:2 * H] + gh[:, 0:2 * H])
            rz_b = jax.nn.sigmoid(gxb_t[:, 0:2 * H] + gh[:, G:G + 2 * H])
            n_f = jnp.tanh(gxf_t[:, 2 * H:] + rz_f[:, 0:H] * gh[:, 2 * H:G])
            n_b = jnp.tanh(gxb_t[:, 2 * H:] + rz_b[:, 0:H] * gh[:, G + 2 * H:])
            z_f = rz_f[:, H:]
            z_b = rz_b[:, H:]
            hf_new = (1.0 - z_f) * n_f + z_f * h[:, 0:H]
            hb_new = (1.0 - z_b) * n_b + z_b * h[:, H:]
            h_ref[...] = jnp.concatenate([hf_new, hb_new], axis=-1)
            of_ref[tt] = hf_new.astype(of_ref.dtype)
            ob_ref[TC - 1 - tt] = hb_new.astype(ob_ref.dtype)   # written un-reversed
            return carry

        lax.fori_loop(0, TC, step, 0, unroll=(TC <= 8))

        hn_ref[0] = h_ref[:, 0:H]          # only the last chunk's value survives
        hn_ref[1] = h_ref[:, H:]

    out_f, out_b, hn = pl.pallas_call(
        kernel,
        grid=(nT,),
        out_shape=(jax.ShapeDtypeStruct((Tp, B, H), jnp.float32),
                   jax.ShapeDtypeStruct((Tp, B, H), jnp.float32),
                   jax.ShapeDtypeStruct((2, B, H), jnp.float32)),
        in_specs=[
            pl.BlockSpec((TC, B, D), lambda c: (c, 0, 0)),            # x, fwd chunks
            pl.BlockSpec((TC, B, D), lambda c: (nT - 1 - c, 0, 0)),   # x, bwd chunks
            pl.BlockSpec((TC, 1, H), lambda c: (c, 0, 0)),            # pad z-bias, fwd
            pl.BlockSpec((TC, 1, H), lambda c: (nT - 1 - c, 0, 0)),   # pad z-bias, bwd
            pl.BlockSpec((D, G), lambda c: (0, 0)),                   # wih_fᵀ
            pl.BlockSpec((D, G), lambda c: (0, 0)),                   # wih_bᵀ
            pl.BlockSpec((2 * H, 2 * G), lambda c: (0, 0)),           # block-diag whhᵀ
            pl.BlockSpec((1, G), lambda c: (0, 0)),                   # bih_f
            pl.BlockSpec((1, G), lambda c: (0, 0)),                   # bih_b
            pl.BlockSpec((1, 2 * G), lambda c: (0, 0)),               # bhh [f | b]
        ],
        out_specs=(
            pl.BlockSpec((TC, B, H), lambda c: (c, 0, 0)),            # forward outputs
            pl.BlockSpec((TC, B, H), lambda c: (nT - 1 - c, 0, 0)),   # backward outputs
            pl.BlockSpec((2, B, H), lambda c: (0, 0, 0)),             # final hidden
        ),
        scratch_shapes=[pltpu.VMEM((B, 2 * H), jnp.float32),          # h carry [f | b]
                        pltpu.VMEM((TC, B, G), jnp.float32),          # gx fwd chunk
                        pltpu.VMEM((TC, B, G), jnp.float32)],         # gx bwd chunk
        compiler_params=pltpu.CompilerParams(
            dimension_semantics=("arbitrary",),                       # sequential time
            vmem_limit_bytes=_VMEM_LIMIT_BYTES),
    )(x_p, x_p, zpad, zpad, wif, wib, whh_bd, bif, bib, bhh)

    return out_f[:T], out_b[:T], hn


# ----------------------------------------------------------------------------
# Full ListenRNN forward
# ----------------------------------------------------------------------------
def listen_rnn_forward(x, params):
    """x: (B, mel_filter, seq_len) -> (output (B, seq', 2H), hidden (2*L, B, H))."""
    B = x.shape[0]
    x4 = x[:, None, :, :]                                    # unsqueeze(1) -> NCHW
    y = conv_bn_htanh_layer(x4, params["conv1"], stride=(2, 2), pad=(20, 5))
    y = conv_bn_htanh_layer(y, params["conv2"], stride=(2, 1), pad=(10, 5))
    _, C, H2, W2 = y.shape
    # x.transpose(1, 2).view(B, H2, C*W2), then to time-major once for all GRU layers.
    rnn_in = y.transpose(0, 2, 1, 3).reshape(B, H2, C * W2)  # (B, seq', feat)
    layer_in = rnn_in.transpose(1, 0, 2)                     # (T', B, feat) time-major

    h_states = []
    for lp in params["gru"]:
        out_f, out_b, hn = bigru_layer(layer_in, lp)
        layer_in = jnp.concatenate([out_f, out_b], axis=-1)  # (T', B, 2H) time-major
        h_states.append(hn)

    output = layer_in.transpose(1, 0, 2)                     # batch-first (B, T', 2H)
    hidden = jnp.concatenate(h_states, axis=0)               # (2*n_layers, B, H)
    return output, hidden


# ----------------------------------------------------------------------------
# Deterministic parameter init (synthetic; shapes follow the module __init__)
# ----------------------------------------------------------------------------
def init_params(key, feature_size, hidden_size, n_layers):
    keys = jax.random.split(key, 40)
    it = iter(range(40))

    def nrm(shape, scale):
        return (jax.random.normal(keys[next(it)], shape) * scale).astype(jnp.float32)

    def uni(shape, bound):
        return jax.random.uniform(keys[next(it)], shape, minval=-bound,
                                  maxval=bound).astype(jnp.float32)

    params = {
        "conv1": dict(w=nrm((32, 1, 41, 11), 0.05), b=nrm((32,), 0.05),
                      gamma=1.0 + nrm((32,), 0.1), beta=nrm((32,), 0.1)),
        "conv2": dict(w=nrm((32, 32, 21, 11), 0.02), b=nrm((32,), 0.02),
                      gamma=1.0 + nrm((32,), 0.1), beta=nrm((32,), 0.1)),
    }

    # Same feature_size arithmetic as the PyTorch __init__.
    fs = math.ceil((feature_size - 11 + 1 + 5 * 2) / 2)
    fs = math.ceil(fs - 11 + 1 + 5 * 2)
    fs *= 32

    bound = 1.0 / math.sqrt(hidden_size)
    layers = []
    for l in range(n_layers):
        din = fs if l == 0 else 2 * hidden_size
        layers.append(dict(
            wih_f=uni((3 * hidden_size, din), bound),
            whh_f=uni((3 * hidden_size, hidden_size), bound),
            bih_f=uni((3 * hidden_size,), bound),
            bhh_f=uni((3 * hidden_size,), bound),
            wih_b=uni((3 * hidden_size, din), bound),
            whh_b=uni((3 * hidden_size, hidden_size), bound),
            bih_b=uni((3 * hidden_size,), bound),
            bhh_b=uni((3 * hidden_size,), bound),
        ))
    params["gru"] = layers
    return params, fs


# ----------------------------------------------------------------------------
if __name__ == "__main__":
    key = jax.random.PRNGKey(0)
    k_param, k_x = jax.random.split(key)

    B, F, T = 2, 16, 16          # batch, mel_filter, seq_len (F == T so the conv
    hidden_size = 32             # feature dim matches the module __init__'s GRU
    n_layers = 3                 # input_size arithmetic)

    params, rnn_in_size = init_params(k_param, F, hidden_size, n_layers)
    # sanity: conv feature dim 32*ceil(T/2) must equal the module's GRU input size
    assert 32 * ((T + 1) // 2) == rnn_in_size

    x = jax.random.normal(k_x, (B, F, T), dtype=jnp.float32)

    fwd = jax.jit(listen_rnn_forward)
    output, hidden = fwd(x, params)
    jax.block_until_ready((output, hidden))

    assert output.shape == (B, 4, 2 * hidden_size)           # (batch, seq', 2*hidden)
    assert hidden.shape == (2 * n_layers, B, hidden_size)    # (num_layers*2, batch, hidden)
    print("KERNEL_OK")
</pallas_src>

<mosaic_0001>
module attributes {stable_mosaic.version = 11 : i64} {
  func.func @_conv_mm_htanh_kernel(%arg0: i32, %arg1: i32, %arg2: memref<512x128xbf16, #tpu.memory_space<vmem>>, %arg3: memref<32x512xbf16, #tpu.memory_space<vmem>>, %arg4: memref<32x1xf32, #tpu.memory_space<vmem>>, %arg5: memref<32x128xf32, #tpu.memory_space<vmem>>, %arg6: memref<32x128xf32, #tpu.memory_space<vmem>>) attributes {dimension_semantics = [#tpu.dimension_semantics<parallel>, #tpu.dimension_semantics<arbitrary>], iteration_bounds = array<i64: 1, 1>, scalar_prefetch = 0 : i64, scratch_operands = 1 : i64, tpu.core_type = #tpu.core_type<tc>, window_params = [{transform_indices = @transform_0, window_bounds = array<i64: 512, 128>}, {transform_indices = @transform_1, window_bounds = array<i64: 32, 512>}, {pipeline_mode = #tpu.pipeline_mode<synchronous>, transform_indices = @transform_2, window_bounds = array<i64: 32, 1>}, {transform_indices = @transform_3, window_bounds = array<i64: 32, 128>}]} {
    %c0_i32 = arith.constant 0 : i32
    %0 = arith.cmpi eq, %arg1, %c0_i32 : i32
    %1 = arith.extui %0 : i1 to i32
    %c0_i32_0 = arith.constant 0 : i32
    %2 = arith.cmpi ne, %1, %c0_i32_0 : i32
    scf.if %2 {
      %cst_10 = arith.constant 0.000000e+00 : f32
      %12 = vector.broadcast %cst_10 : f32 to vector<32x128xf32>
      %c0_11 = arith.constant 0 : index
      %c0_12 = arith.constant 0 : index
      %13 = vector.load %arg6[%c0_11, %c0_12] : memref<32x128xf32, #tpu.memory_space<vmem>>, vector<32x128xf32>
      tpu.vector_store %arg6[%c0_11, %c0_12], %12 {strides = array<i32>} : memref<32x128xf32, #tpu.memory_space<vmem>>, vector<32x128xf32>,
    } else {
    }
    %c0 = arith.constant 0 : index
    %c0_1 = arith.constant 0 : index
    %3 = vector.load %arg6[%c0, %c0_1] : memref<32x128xf32, #tpu.memory_space<vmem>>, vector<32x128xf32>
    %c0_2 = arith.constant 0 : index
    %c0_3 = arith.constant 0 : index
    %4 = vector.load %arg3[%c0_2, %c0_3] : memref<32x512xbf16, #tpu.memory_space<vmem>>, vector<32x512xbf16>
    %c0_4 = arith.constant 0 : index
    %c0_5 = arith.constant 0 : index
    %5 = vector.load %arg2[%c0_4, %c0_5] : memref<512x128xbf16, #tpu.memory_space<vmem>>, vector<512x128xbf16>
    %cst = arith.constant dense<0.000000e+00> : vector<32x128xf32>
    %6 = tpu.matmul %4, %5, %cst {dimension_numbers = #tpu.dot_dimension_numbers<[1], [0], [0], [1], [0, 0, 1, 1], [], []>} : vector<32x512xbf16>, vector<512x128xbf16>, vector<32x128xf32> -> vector<32x128xf32>
    %7 = arith.addf %3, %6 : vector<32x128xf32>
    %c0_6 = arith.constant 0 : index
    %c0_7 = arith.constant 0 : index
    %8 = vector.load %arg6[%c0_6, %c0_7] : memref<32x128xf32, #tpu.memory_space<vmem>>, vector<32x128xf32>
    tpu.vector_store %arg6[%c0_6, %c0_7], %7 {strides = array<i32>} : memref<32x128xf32, #tpu.memory_space<vmem>>, vector<32x128xf32>,
    %c0_i32_8 = arith.constant 0 : i32
    %9 = arith.cmpi eq, %arg1, %c0_i32_8 : i32
    %10 = arith.extui %9 : i1 to i32
    %c0_i32_9 = arith.constant 0 : i32
    %11 = arith.cmpi ne, %10, %c0_i32_9 : i32
    scf.if %11 {
      %c0_10 = arith.constant 0 : index
      %c0_11 = arith.constant 0 : index
      %12 = vector.load %arg6[%c0_10, %c0_11] : memref<32x128xf32, #tpu.memory_space<vmem>>, vector<32x128xf32>
      %c0_12 = arith.constant 0 : index
      %c0_13 = arith.constant 0 : index
      %13 = vector.load %arg4[%c0_12, %c0_13] : memref<32x1xf32, #tpu.memory_space<vmem>>, vector<32x1xf32>
      %14 = vector.broadcast %13 : vector<32x1xf32> to vector<32x128xf32>
      %15 = arith.addf %12, %14 : vector<32x128xf32>
      %cst_14 = arith.constant 0.000000e+00 : f32
      %cst_15 = arith.constant 2.000000e+01 : f32
      %16 = vector.broadcast %cst_14 : f32 to vector<32x128xf32>
      %17 = arith.maximumf %16, %15 : vector<32x128xf32>
      %18 = vector.broadcast %cst_15 : f32 to vector<32x128xf32>
      %19 = arith.minimumf %18, %17 : vector<32x128xf32>
      %c0_16 = arith.constant 0 : index
      %c0_17 = arith.constant 0 : index
      %20 = vector.load %arg5[%c0_16, %c0_17] : memref<32x128xf32, #tpu.memory_space<vmem>>, vector<32x128xf32>
      tpu.vector_store %arg5[%c0_16, %c0_17], %19 {strides = array<i32>} : memref<32x128xf32, #tpu.memory_space<vmem>>, vector<32x128xf32>,
    } else {
    }
    return
  }
  func.func @transform_0(%arg0: i32, %arg1: i32) -> (i32, i32) {
    %c0_i32 = arith.constant 0 : i32
    return %arg1, %arg0 : i32, i32
  }
  func.func @transform_1(%arg0: i32, %arg1: i32) -> (i32, i32) {
    %c0_i32 = arith.constant 0 : i32
    %c0_i32_0 = arith.constant 0 : i32
    return %c0_i32, %arg1 : i32, i32
  }
  func.func @transform_2(%arg0: i32, %arg1: i32) -> (i32, i32) {
    %c0_i32 = arith.constant 0 : i32
    %c0_i32_0 = arith.constant 0 : i32
    %c0_i32_1 = arith.constant 0 : i32
    return %c0_i32, %c0_i32_0 : i32, i32
  }
  func.func @transform_3(%arg0: i32, %arg1: i32) -> (i32, i32) {
    %c0_i32 = arith.constant 0 : i32
    %c0_i32_0 = arith.constant 0 : i32
    return %c0_i32, %arg0 : i32, i32
  }
}

module attributes {stable_mosaic.version = 11 : i64} {
  func.func @_conv_mm_htanh_kernel(%arg0: i32, %arg1: i32, %arg2: memref<512x128xbf16, #tpu.memory_space<vmem>>, %arg3: memref<32x512xbf16, #tpu.memory_space<vmem>>, %arg4: memref<32x1xf32, #tpu.memory_space<vmem>>, %arg5: memref<32x128xf32, #tpu.memory_space<vmem>>, %arg6: memref<32x128xf32, #tpu.memory_space<vmem>>) attributes {dimension_semantics = [#tpu.dimension_semantics<parallel>, #tpu.dimension_semantics<arbitrary>], iteration_bounds = array<i64: 1, 15>, scalar_prefetch = 0 : i64, scratch_operands = 1 : i64, tpu.core_type = #tpu.core_type<tc>, window_params = [{transform_indices = @transform_0, window_bounds = array<i64: 512, 128>}, {transform_indices = @transform_1, window_bounds = array<i64: 32, 512>}, {pipeline_mode = #tpu.pipeline_mode<synchronous>, transform_indices = @transform_2, window_bounds = array<i64: 32, 1>}, {transform_indices = @transform_3, window_bounds = array<i64: 32, 128>}]} {
    %c0_i32 = arith.constant 0 : i32
    %0 = arith.cmpi eq, %arg1, %c0_i32 : i32
    %1 = arith.extui %0 : i1 to i32
    %c0_i32_0 = arith.constant 0 : i32
    %2 = arith.cmpi ne, %1, %c0_i32_0 : i32
    scf.if %2 {
      %cst_9 = arith.constant 0.000000e+00 : f32
      %12 = vector.broadcast %cst_9 : f32 to vector<32x128xf32>
      %c0_10 = arith.constant 0 : index
      %c0_11 = arith.constant 0 : index
      %13 = vector.load %arg6[%c0_10, %c0_11] : memref<32x128xf32, #tpu.memory_space<vmem>>, vector<32x128xf32>
      tpu.vector_store %arg6[%c0_10, %c0_11], %12 {strides = array<i32>} : memref<32x128xf32, #tpu.memory_space<vmem>>, vector<32x128xf32>,
    } else {
    }
    %c0 = arith.constant 0 : index
    %c0_1 = arith.constant 0 : index
    %3 = vector.load %arg6[%c0, %c0_1] : memref<32x128xf32, #tpu.memory_space<vmem>>, vector<32x128xf32>
    %c0_2 = arith.constant 0 : index
    %c0_3 = arith.constant 0 : index
    %4 = vector.load %arg3[%c0_2, %c0_3] : memref<32x512xbf16, #tpu.memory_space<vmem>>, vector<32x512xbf16>
    %c0_4 = arith.constant 0 : index
    %c0_5 = arith.constant 0 : index
    %5 = vector.load %arg2[%c0_4, %c0_5] : memref<512x128xbf16, #tpu.memory_space<vmem>>, vector<512x128xbf16>
    %cst = arith.constant dense<0.000000e+00> : vector<32x128xf32>
    %6 = tpu.matmul %4, %5, %cst {dimension_numbers = #tpu.dot_dimension_numbers<[1], [0], [0], [1], [0, 0, 1, 1], [], []>} : vector<32x512xbf16>, vector<512x128xbf16>, vector<32x128xf32> -> vector<32x128xf32>
    %7 = arith.addf %3, %6 : vector<32x128xf32>
    %c0_6 = arith.constant 0 : index
    %c0_7 = arith.constant 0 : index
    %8 = vector.load %arg6[%c0_6, %c0_7] : memref<32x128xf32, #tpu.memory_space<vmem>>, vector<32x128xf32>
    tpu.vector_store %arg6[%c0_6, %c0_7], %7 {strides = array<i32>} : memref<32x128xf32, #tpu.memory_space<vmem>>, vector<32x128xf32>,
    %c14_i32 = arith.constant 14 : i32
    %9 = arith.cmpi eq, %arg1, %c14_i32 : i32
    %10 = arith.extui %9 : i1 to i32
    %c0_i32_8 = arith.constant 0 : i32
    %11 = arith.cmpi ne, %10, %c0_i32_8 : i32
    scf.if %11 {
      %c0_9 = arith.constant 0 : index
      %c0_10 = arith.constant 0 : index
      %12 = vector.load %arg6[%c0_9, %c0_10] : memref<32x128xf32, #tpu.memory_space<vmem>>, vector<32x128xf32>
      %c0_11 = arith.constant 0 : index
      %c0_12 = arith.constant 0 : index
      %13 = vector.load %arg4[%c0_11, %c0_12] : memref<32x1xf32, #tpu.memory_space<vmem>>, vector<32x1xf32>
      %14 = vector.broadcast %13 : vector<32x1xf32> to vector<32x128xf32>
      %15 = arith.addf %12, %14 : vector<32x128xf32>
      %cst_13 = arith.constant 0.000000e+00 : f32
      %cst_14 = arith.constant 2.000000e+01 : f32
      %16 = vector.broadcast %cst_13 : f32 to vector<32x128xf32>
      %17 = arith.maximumf %16, %15 : vector<32x128xf32>
      %18 = vector.broadcast %cst_14 : f32 to vector<32x128xf32>
      %19 = arith.minimumf %18, %17 : vector<32x128xf32>
      %c0_15 = arith.constant 0 : index
      %c0_16 = arith.constant 0 : index
      %20 = vector.load %arg5[%c0_15, %c0_16] : memref<32x128xf32, #tpu.memory_space<vmem>>, vector<32x128xf32>
      tpu.vector_store %arg5[%c0_15, %c0_16], %19 {strides = array<i32>} : memref<32x128xf32, #tpu.memory_space<vmem>>, vector<32x128xf32>,
    } else {
    }
    return
  }
  func.func @transform_0(%arg0: i32, %arg1: i32) -> (i32, i32) {
    %c0_i32 = arith.constant 0 : i32
    return %arg1, %arg0 : i32, i32
  }
  func.func @transform_1(%arg0: i32, %arg1: i32) -> (i32, i32) {
    %c0_i32 = arith.constant 0 : i32
    %c0_i32_0 = arith.constant 0 : i32
    return %c0_i32, %arg1 : i32, i32
  }
  func.func @transform_2(%arg0: i32, %arg1: i32) -> (i32, i32) {
    %c0_i32 = arith.constant 0 : i32
    %c0_i32_0 = arith.constant 0 : i32
    %c0_i32_1 = arith.constant 0 : i32
    return %c0_i32, %c0_i32_0 : i32, i32
  }
  func.func @transform_3(%arg0: i32, %arg1: i32) -> (i32, i32) {
    %c0_i32 = arith.constant 0 : i32
    %c0_i32_0 = arith.constant 0 : i32
    return %c0_i32, %arg0 : i32, i32
  }
}

module attributes {stable_mosaic.version = 11 : i64} {
  func.func @kernel(%arg0: i32, %arg1: memref<4x2x64xf32, #tpu.memory_space<vmem>>, %arg2: memref<4x2x64xf32, #tpu.memory_space<vmem>>, %arg3: memref<4x1x32xf32, #tpu.memory_space<vmem>>, %arg4: memref<4x1x32xf32, #tpu.memory_space<vmem>>, %arg5: memref<64x96xbf16, #tpu.memory_space<vmem>>, %arg6: memref<64x96xbf16, #tpu.memory_space<vmem>>, %arg7: memref<64x192xbf16, #tpu.memory_space<vmem>>, %arg8: memref<1x96xf32, #tpu.memory_space<vmem>>, %arg9: memref<1x96xf32, #tpu.memory_space<vmem>>, %arg10: memref<1x192xf32, #tpu.memory_space<vmem>>, %arg11: memref<4x2x32xf32, #tpu.memory_space<vmem>>, %arg12: memref<4x2x32xf32, #tpu.memory_space<vmem>>, %arg13: memref<2x2x32xf32, #tpu.memory_space<vmem>>, %arg14: memref<2x64xf32, #tpu.memory_space<vmem>>, %arg15: memref<4x2x96xf32, #tpu.memory_space<vmem>>, %arg16: memref<4x2x96xf32, #tpu.memory_space<vmem>>) attributes {dimension_semantics = [#tpu.dimension_semantics<arbitrary>], iteration_bounds = array<i64: 1>, scalar_prefetch = 0 : i64, scratch_operands = 3 : i64, tpu.core_type = #tpu.core_type<tc>, window_params = [{transform_indices = @transform_0, window_bounds = array<i64: 4, 2, 64>}, {transform_indices = @transform_1, window_bounds = array<i64: 4, 2, 64>}, {transform_indices = @transform_2, window_bounds = array<i64: 4, 1, 32>}, {transform_indices = @transform_3, window_bounds = array<i64: 4, 1, 32>}, {pipeline_mode = #tpu.pipeline_mode<synchronous>, transform_indices = @transform_4, window_bounds = array<i64: 64, 96>}, {pipeline_mode = #tpu.pipeline_mode<synchronous>, transform_indices = @transform_5, window_bounds = array<i64: 64, 96>}, {pipeline_mode = #tpu.pipeline_mode<synchronous>, transform_indices = @transform_6, window_bounds = array<i64: 64, 192>}, {pipeline_mode = #tpu.pipeline_mode<synchronous>, transform_indices = @transform_7, window_bounds = array<i64: 1, 96>}, {pipeline_mode = #tpu.pipeline_mode<synchronous>, transform_indices = @transform_8, window_bounds = array<i64: 1, 96>}, {pipeline_mode = #tpu.pipeline_mode<synchronous>, transform_indices = @transform_9, window_bounds = array<i64: 1, 192>}, {transform_indices = @transform_10, window_bounds = array<i64: 4, 2, 32>}, {transform_indices = @transform_11, window_bounds = array<i64: 4, 2, 32>}, {pipeline_mode = #tpu.pipeline_mode<synchronous>, transform_indices = @transform_12, window_bounds = array<i64: 2, 2, 32>}]} {
    %c0_i32 = arith.constant 0 : i32
    %0 = arith.cmpi eq, %arg0, %c0_i32 : i32
    %1 = arith.extui %0 : i1 to i32
    %c0_i32_0 = arith.constant 0 : i32
    %2 = arith.cmpi ne, %1, %c0_i32_0 : i32
    scf.if %2 {
      %cst_128 = arith.constant 0.000000e+00 : f32
      %313 = vector.broadcast %cst_128 : f32 to vector<2x64xf32>
      %c0_129 = arith.constant 0 : index
      %c0_130 = arith.constant 0 : index
      %314 = vector.load %arg14[%c0_129, %c0_130] : memref<2x64xf32, #tpu.memory_space<vmem>>, vector<2x64xf32>
      tpu.vector_store %arg14[%c0_129, %c0_130], %313 {strides = array<i32>} : memref<2x64xf32, #tpu.memory_space<vmem>>, vector<2x64xf32>,
    } else {
    }
    %c0 = arith.constant 0 : index
    %c0_1 = arith.constant 0 : index
    %c0_2 = arith.constant 0 : index
    %3 = vector.load %arg1[%c0, %c0_1, %c0_2] : memref<4x2x64xf32, #tpu.memory_space<vmem>>, vector<4x2x64xf32>
    %4 = vector.shape_cast %3 : vector<4x2x64xf32> to vector<8x64xf32>
    %5 = arith.truncf %4 : vector<8x64xf32> to vector<8x64xbf16>
    %c0_3 = arith.constant 0 : index
    %c0_4 = arith.constant 0 : index
    %c0_5 = arith.constant 0 : index
    %6 = vector.load %arg2[%c0_3, %c0_4, %c0_5] : memref<4x2x64xf32, #tpu.memory_space<vmem>>, vector<4x2x64xf32>
    %7 = vector.shape_cast %6 : vector<4x2x64xf32> to vector<8x64xf32>
    %8 = arith.truncf %7 : vector<8x64xf32> to vector<8x64xbf16>
    %c0_6 = arith.constant 0 : index
    %c0_7 = arith.constant 0 : index
    %9 = vector.load %arg5[%c0_6, %c0_7] : memref<64x96xbf16, #tpu.memory_space<vmem>>, vector<64x96xbf16>
    %cst = arith.constant dense<0.000000e+00> : vector<8x96xf32>
    %10 = tpu.matmul %5, %9, %cst {dimension_numbers = #tpu.dot_dimension_numbers<[1], [0], [0], [1], [0, 0, 1, 1], [], []>} : vector<8x64xbf16>, vector<64x96xbf16>, vector<8x96xf32> -> vector<8x96xf32>
    %c0_8 = arith.constant 0 : index
    %c0_9 = arith.constant 0 : index
    %11 = vector.load %arg8[%c0_8, %c0_9] : memref<1x96xf32, #tpu.memory_space<vmem>>, vector<1x96xf32>
    %12 = vector.broadcast %11 : vector<1x96xf32> to vector<8x96xf32>
    %13 = arith.addf %10, %12 : vector<8x96xf32>
    %14 = vector.shape_cast %13 : vector<8x96xf32> to vector<4x2x96xf32>
    %c0_10 = arith.constant 0 : index
    %c0_11 = arith.constant 0 : index
    %15 = vector.load %arg6[%c0_10, %c0_11] : memref<64x96xbf16, #tpu.memory_space<vmem>>, vector<64x96xbf16>
    %cst_12 = arith.constant dense<0.000000e+00> : vector<8x96xf32>
    %16 = tpu.matmul %8, %15, %cst_12 {dimension_numbers = #tpu.dot_dimension_numbers<[1], [0], [0], [1], [0, 0, 1, 1], [], []>} : vector<8x64xbf16>, vector<64x96xbf16>, vector<8x96xf32> -> vector<8x96xf32>
    %c0_13 = arith.constant 0 : index
    %c0_14 = arith.constant 0 : index
    %17 = vector.load %arg9[%c0_13, %c0_14] : memref<1x96xf32, #tpu.memory_space<vmem>>, vector<1x96xf32>
    %18 = vector.broadcast %17 : vector<1x96xf32> to vector<8x96xf32>
    %19 = arith.addf %16, %18 : vector<8x96xf32>
    %20 = vector.shape_cast %19 : vector<8x96xf32> to vector<4x2x96xf32>
    %21 = vector.extract_strided_slice %14 {offsets = [0, 0, 0], sizes = [4, 2, 32], strides = [1, 1, 1]} : vector<4x2x96xf32> to vector<4x2x32xf32>
    %22 = vector.extract_strided_slice %14 {offsets = [0, 0, 32], sizes = [4, 2, 32], strides = [1, 1, 1]} : vector<4x2x96xf32> to vector<4x2x32xf32>
    %c0_15 = arith.constant 0 : index
    %c0_16 = arith.constant 0 : index
    %c0_17 = arith.constant 0 : index
    %23 = vector.load %arg3[%c0_15, %c0_16, %c0_17] : memref<4x1x32xf32, #tpu.memory_space<vmem>>, vector<4x1x32xf32>
    %24 = vector.broadcast %23 : vector<4x1x32xf32> to vector<4x2x32xf32>
    %25 = arith.addf %22, %24 : vector<4x2x32xf32>
    %26 = vector.extract_strided_slice %14 {offsets = [0, 0, 64], sizes = [4, 2, 32], strides = [1, 1, 1]} : vector<4x2x96xf32> to vector<4x2x32xf32>
    %27 = tpu.concatenate %21, %25, %26 in 2 : vector<4x2x32xf32>, vector<4x2x32xf32>, vector<4x2x32xf32> -> vector<4x2x96xf32>
    %c0_18 = arith.constant 0 : index
    %c0_19 = arith.constant 0 : index
    %c0_20 = arith.constant 0 : index
    %28 = vector.load %arg15[%c0_18, %c0_19, %c0_20] : memref<4x2x96xf32, #tpu.memory_space<vmem>>, vector<4x2x96xf32>
    tpu.vector_store %arg15[%c0_18, %c0_19, %c0_20], %27 {strides = array<i32>} : memref<4x2x96xf32, #tpu.memory_space<vmem>>, vector<4x2x96xf32>,
    %29 = vector.extract_strided_slice %20 {offsets = [0, 0, 0], sizes = [4, 2, 32], strides = [1, 1, 1]} : vector<4x2x96xf32> to vector<4x2x32xf32>
    %30 = vector.extract_strided_slice %20 {offsets = [0, 0, 32], sizes = [4, 2, 32], strides = [1, 1, 1]} : vector<4x2x96xf32> to vector<4x2x32xf32>
    %c0_21 = arith.constant 0 : index
    %c0_22 = arith.constant 0 : index
    %c0_23 = arith.constant 0 : index
    %31 = vector.load %arg4[%c0_21, %c0_22, %c0_23] : memref<4x1x32xf32, #tpu.memory_space<vmem>>, vector<4x1x32xf32>
    %32 = vector.broadcast %31 : vector<4x1x32xf32> to vector<4x2x32xf32>
    %33 = arith.addf %30, %32 : vector<4x2x32xf32>
    %34 = vector.extract_strided_slice %20 {offsets = [0, 0, 64], sizes = [4, 2, 32], strides = [1, 1, 1]} : vector<4x2x96xf32> to vector<4x2x32xf32>
    %35 = tpu.concatenate %29, %33, %34 in 2 : vector<4x2x32xf32>, vector<4x2x32xf32>, vector<4x2x32xf32> -> vector<4x2x96xf32>
    %c0_24 = arith.constant 0 : index
    %c0_25 = arith.constant 0 : index
    %c0_26 = arith.constant 0 : index
    %36 = vector.load %arg16[%c0_24, %c0_25, %c0_26] : memref<4x2x96xf32, #tpu.memory_space<vmem>>, vector<4x2x96xf32>
    tpu.vector_store %arg16[%c0_24, %c0_25, %c0_26], %35 {strides = array<i32>} : memref<4x2x96xf32, #tpu.memory_space<vmem>>, vector<4x2x96xf32>,
    %c0_i32_27 = arith.constant 0 : i32
    %c0_28 = arith.constant 0 : index
    %c0_29 = arith.constant 0 : index
    %37 = vector.load %arg14[%c0_28, %c0_29] : memref<2x64xf32, #tpu.memory_space<vmem>>, vector<2x64xf32>
    %38 = arith.truncf %37 : vector<2x64xf32> to vector<2x64xbf16>
    %c0_30 = arith.constant 0 : index
    %c0_31 = arith.constant 0 : index
    %39 = vector.load %arg7[%c0_30, %c0_31] : memref<64x192xbf16, #tpu.memory_space<vmem>>, vector<64x192xbf16>
    %cst_32 = arith.constant dense<0.000000e+00> : vector<2x192xf32>
    %40 = tpu.matmul %38, %39, %cst_32 {dimension_numbers = #tpu.dot_dimension_numbers<[1], [0], [0], [1], [0, 0, 1, 1], [], []>} : vector<2x64xbf16>, vector<64x192xbf16>, vector<2x192xf32> -> vector<2x192xf32>
    %c0_33 = arith.constant 0 : index
    %c0_34 = arith.constant 0 : index
    %41 = vector.load %arg10[%c0_33, %c0_34] : memref<1x192xf32, #tpu.memory_space<vmem>>, vector<1x192xf32>
    %42 = vector.broadcast %41 : vector<1x192xf32> to vector<2x192xf32>
    %43 = arith.addf %40, %42 : vector<2x192xf32>
    %44 = arith.index_cast %c0_i32_27 : i32 to index
    %c0_35 = arith.constant 0 : index
    %c0_36 = arith.constant 0 : index
    %45 = vector.load %arg15[%44, %c0_35, %c0_36] : memref<4x2x96xf32, #tpu.memory_space<vmem>>, vector<1x2x96xf32>
    %46 = vector.shape_cast %45 : vector<1x2x96xf32> to vector<2x96xf32>
    %c3_i32 = arith.constant 3 : i32
    %47 = arith.subi %c3_i32, %c0_i32_27 : i32
    %48 = arith.index_cast %47 : i32 to index
    %c0_37 = arith.constant 0 : index
    %c0_38 = arith.constant 0 : index
    %49 = vector.load %arg16[%48, %c0_37, %c0_38] : memref<4x2x96xf32, #tpu.memory_space<vmem>>, vector<1x2x96xf32>
    %50 = vector.shape_cast %49 : vector<1x2x96xf32> to vector<2x96xf32>
    %51 = vector.extract_strided_slice %46 {offsets = [0, 0], sizes = [2, 64], strides = [1, 1]} : vector<2x96xf32> to vector<2x64xf32>
    %52 = vector.extract_strided_slice %43 {offsets = [0, 0], sizes = [2, 64], strides = [1, 1]} : vector<2x192xf32> to vector<2x64xf32>
    %53 = arith.addf %51, %52 : vector<2x64xf32>
    %54 = arith.negf %53 : vector<2x64xf32>
    %55 = math.exp %54 : vector<2x64xf32>
    %cst_39 = arith.constant 1.000000e+00 : f32
    %56 = vector.broadcast %cst_39 : f32 to vector<2x64xf32>
    %57 = arith.addf %56, %55 : vector<2x64xf32>
    %58 = arith.divf %56, %57 : vector<2x64xf32>
    %59 = vector.extract_strided_slice %50 {offsets = [0, 0], sizes = [2, 64], strides = [1, 1]} : vector<2x96xf32> to vector<2x64xf32>
    %60 = vector.extract_strided_slice %43 {offsets = [0, 96], sizes = [2, 64], strides = [1, 1]} : vector<2x192xf32> to vector<2x64xf32>
    %61 = arith.addf %59, %60 : vector<2x64xf32>
    %62 = arith.negf %61 : vector<2x64xf32>
    %63 = math.exp %62 : vector<2x64xf32>
    %cst_40 = arith.constant 1.000000e+00 : f32
    %64 = vector.broadcast %cst_40 : f32 to vector<2x64xf32>
    %65 = arith.addf %64, %63 : vector<2x64xf32>
    %66 = arith.divf %64, %65 : vector<2x64xf32>
    %67 = vector.extract_strided_slice %46 {offsets = [0, 64], sizes = [2, 32], strides = [1, 1]} : vector<2x96xf32> to vector<2x32xf32>
    %68 = vector.extract_strided_slice %58 {offsets = [0, 0], sizes = [2, 32], strides = [1, 1]} : vector<2x64xf32> to vector<2x32xf32>
    %69 = vector.extract_strided_slice %43 {offsets = [0, 64], sizes = [2, 32], strides = [1, 1]} : vector<2x192xf32> to vector<2x32xf32>
    %70 = arith.mulf %68, %69 : vector<2x32xf32>
    %71 = arith.addf %67, %70 : vector<2x32xf32>
    %72 = math.tanh %71 : vector<2x32xf32>
    %73 = vector.extract_strided_slice %50 {offsets = [0, 64], sizes = [2, 32], strides = [1, 1]} : vector<2x96xf32> to vector<2x32xf32>
    %74 = vector.extract_strided_slice %66 {offsets = [0, 0], sizes = [2, 32], strides = [1, 1]} : vector<2x64xf32> to vector<2x32xf32>
    %75 = vector.extract_strided_slice %43 {offsets = [0, 160], sizes = [2, 32], strides = [1, 1]} : vector<2x192xf32> to vector<2x32xf32>
    %76 = arith.mulf %74, %75 : vector<2x32xf32>
    %77 = arith.addf %73, %76 : vector<2x32xf32>
    %78 = math.tanh %77 : vector<2x32xf32>
    %79 = vector.extract_strided_slice %58 {offsets = [0, 32], sizes = [2, 32], strides = [1, 1]} : vector<2x64xf32> to vector<2x32xf32>
    %80 = vector.extract_strided_slice %66 {offsets = [0, 32], sizes = [2, 32], strides = [1, 1]} : vector<2x64xf32> to vector<2x32xf32>
    %cst_41 = arith.constant 1.000000e+00 : f32
    %81 = vector.broadcast %cst_41 : f32 to vector<2x32xf32>
    %82 = arith.subf %81, %79 : vector<2x32xf32>
    %83 = arith.mulf %82, %72 : vector<2x32xf32>
    %84 = vector.extract_strided_slice %37 {offsets = [0, 0], sizes = [2, 32], strides = [1, 1]} : vector<2x64xf32> to vector<2x32xf32>
    %85 = arith.mulf %79, %84 : vector<2x32xf32>
    %86 = arith.addf %83, %85 : vector<2x32xf32>
    %cst_42 = arith.constant 1.000000e+00 : f32
    %87 = vector.broadcast %cst_42 : f32 to vector<2x32xf32>
    %88 = arith.subf %87, %80 : vector<2x32xf32>
    %89 = arith.mulf %88, %78 : vector<2x32xf32>
    %90 = vector.extract_strided_slice %37 {offsets = [0, 32], sizes = [2, 32], strides = [1, 1]} : vector<2x64xf32> to vector<2x32xf32>
    %91 = arith.mulf %80, %90 : vector<2x32xf32>
    %92 = arith.addf %89, %91 : vector<2x32xf32>
    %93 = tpu.concatenate %86, %92 in 1 : vector<2x32xf32>, vector<2x32xf32> -> vector<2x64xf32>
    %c0_43 = arith.constant 0 : index
    %c0_44 = arith.constant 0 : index
    %94 = vector.load %arg14[%c0_43, %c0_44] : memref<2x64xf32, #tpu.memory_space<vmem>>, vector<2x64xf32>
    tpu.vector_store %arg14[%c0_43, %c0_44], %93 {strides = array<i32>} : memref<2x64xf32, #tpu.memory_space<vmem>>, vector<2x64xf32>,
    %95 = arith.index_cast %c0_i32_27 : i32 to index
    %c0_45 = arith.constant 0 : index
    %c0_46 = arith.constant 0 : index
    %96 = vector.load %arg11[%95, %c0_45, %c0_46] : memref<4x2x32xf32, #tpu.memory_space<vmem>>, vector<1x2x32xf32>
    %97 = vector.shape_cast %96 : vector<1x2x32xf32> to vector<2x32xf32>
    %98 = vector.shape_cast %86 : vector<2x32xf32> to vector<1x2x32xf32>
    tpu.vector_store %arg11[%95, %c0_45, %c0_46], %98 {strides = array<i32>} : memref<4x2x32xf32, #tpu.memory_space<vmem>>, vector<1x2x32xf32>,
    %c3_i32_47 = arith.constant 3 : i32
    %99 = arith.subi %c3_i32_47, %c0_i32_27 : i32
    %100 = arith.index_cast %99 : i32 to index
    %c0_48 = arith.constant 0 : index
    %c0_49 = arith.constant 0 : index
    %101 = vector.load %arg12[%100, %c0_48, %c0_49] : memref<4x2x32xf32, #tpu.memory_space<vmem>>, vector<1x2x32xf32>
    %102 = vector.shape_cast %101 : vector<1x2x32xf32> to vector<2x32xf32>
    %103 = vector.shape_cast %92 : vector<2x32xf32> to vector<1x2x32xf32>
    tpu.vector_store %arg12[%100, %c0_48, %c0_49], %103 {strides = array<i32>} : memref<4x2x32xf32, #tpu.memory_space<vmem>>, vector<1x2x32xf32>,
    %c1_i32 = arith.constant 1 : i32
    %c0_50 = arith.constant 0 : index
    %c0_51 = arith.constant 0 : index
    %104 = vector.load %arg14[%c0_50, %c0_51] : memref<2x64xf32, #tpu.memory_space<vmem>>, vector<2x64xf32>
    %105 = arith.truncf %104 : vector<2x64xf32> to vector<2x64xbf16>
    %c0_52 = arith.constant 0 : index
    %c0_53 = arith.constant 0 : index
    %106 = vector.load %arg7[%c0_52, %c0_53] : memref<64x192xbf16, #tpu.memory_space<vmem>>, vector<64x192xbf16>
    %cst_54 = arith.constant dense<0.000000e+00> : vector<2x192xf32>
    %107 = tpu.matmul %105, %106, %cst_54 {dimension_numbers = #tpu.dot_dimension_numbers<[1], [0], [0], [1], [0, 0, 1, 1], [], []>} : vector<2x64xbf16>, vector<64x192xbf16>, vector<2x192xf32> -> vector<2x192xf32>
    %c0_55 = arith.constant 0 : index
    %c0_56 = arith.constant 0 : index
    %108 = vector.load %arg10[%c0_55, %c0_56] : memref<1x192xf32, #tpu.memory_space<vmem>>, vector<1x192xf32>
    %109 = vector.broadcast %108 : vector<1x192xf32> to vector<2x192xf32>
    %110 = arith.addf %107, %109 : vector<2x192xf32>
    %111 = arith.index_cast %c1_i32 : i32 to index
    %c0_57 = arith.constant 0 : index
    %c0_58 = arith.constant 0 : index
    %112 = vector.load %arg15[%111, %c0_57, %c0_58] : memref<4x2x96xf32, #tpu.memory_space<vmem>>, vector<1x2x96xf32>
    %113 = vector.shape_cast %112 : vector<1x2x96xf32> to vector<2x96xf32>
    %c3_i32_59 = arith.constant 3 : i32
    %114 = arith.subi %c3_i32_59, %c1_i32 : i32
    %115 = arith.index_cast %114 : i32 to index
    %c0_60 = arith.constant 0 : index
    %c0_61 = arith.constant 0 : index
    %116 = vector.load %arg16[%115, %c0_60, %c0_61] : memref<4x2x96xf32, #tpu.memory_space<vmem>>, vector<1x2x96xf32>
    %117 = vector.shape_cast %116 : vector<1x2x96xf32> to vector<2x96xf32>
    %118 = vector.extract_strided_slice %113 {offsets = [0, 0], sizes = [2, 64], strides = [1, 1]} : vector<2x96xf32> to vector<2x64xf32>
    %119 = vector.extract_strided_slice %110 {offsets = [0, 0], sizes = [2, 64], strides = [1, 1]} : vector<2x192xf32> to vector<2x64xf32>
    %120 = arith.addf %118, %119 : vector<2x64xf32>
    %121 = arith.negf %120 : vector<2x64xf32>
    %122 = math.exp %121 : vector<2x64xf32>
    %cst_62 = arith.constant 1.000000e+00 : f32
    %123 = vector.broadcast %cst_62 : f32 to vector<2x64xf32>
    %124 = arith.addf %123, %122 : vector<2x64xf32>
    %125 = arith.divf %123, %124 : vector<2x64xf32>
    %126 = vector.extract_strided_slice %117 {offsets = [0, 0], sizes = [2, 64], strides = [1, 1]} : vector<2x96xf32> to vector<2x64xf32>
    %127 = vector.extract_strided_slice %110 {offsets = [0, 96], sizes = [2, 64], strides = [1, 1]} : vector<2x192xf32> to vector<2x64xf32>
    %128 = arith.addf %126, %127 : vector<2x64xf32>
    %129 = arith.negf %128 : vector<2x64xf32>
    %130 = math.exp %129 : vector<2x64xf32>
    %cst_63 = arith.constant 1.000000e+00 : f32
    %131 = vector.broadcast %cst_63 : f32 to vector<2x64xf32>
    %132 = arith.addf %131, %130 : vector<2x64xf32>
    %133 = arith.divf %131, %132 : vector<2x64xf32>
    %134 = vector.extract_strided_slice %113 {offsets = [0, 64], sizes = [2, 32], strides = [1, 1]} : vector<2x96xf32> to vector<2x32xf32>
    %135 = vector.extract_strided_slice %125 {offsets = [0, 0], sizes = [2, 32], strides = [1, 1]} : vector<2x64xf32> to vector<2x32xf32>
    %136 = vector.extract_strided_slice %110 {offsets = [0, 64], sizes = [2, 32], strides = [1, 1]} : vector<2x192xf32> to vector<2x32xf32>
    %137 = arith.mulf %135, %136 : vector<2x32xf32>
    %138 = arith.addf %134, %137 : vector<2x32xf32>
    %139 = math.tanh %138 : vector<2x32xf32>
    %140 = vector.extract_strided_slice %117 {offsets = [0, 64], sizes = [2, 32], strides = [1, 1]} : vector<2x96xf32> to vector<2x32xf32>
    %141 = vector.extract_strided_slice %133 {offsets = [0, 0], sizes = [2, 32], strides = [1, 1]} : vector<2x64xf32> to vector<2x32xf32>
    %142 = vector.extract_strided_slice %110 {offsets = [0, 160], sizes = [2, 32], strides = [1, 1]} : vector<2x192xf32> to vector<2x32xf32>
    %143 = arith.mulf %141, %142 : vector<2x32xf32>
    %144 = arith.addf %140, %143 : vector<2x32xf32>
    %145 = math.tanh %144 : vector<2x32xf32>
    %146 = vector.extract_strided_slice %125 {offsets = [0, 32], sizes = [2, 32], strides = [1, 1]} : vector<2x64xf32> to vector<2x32xf32>
    %147 = vector.extract_strided_slice %133 {offsets = [0, 32], sizes = [2, 32], strides = [1, 1]} : vector<2x64xf32> to vector<2x32xf32>
    %cst_64 = arith.constant 1.000000e+00 : f32
    %148 = vector.broadcast %cst_64 : f32 to vector<2x32xf32>
    %149 = arith.subf %148, %146 : vector<2x32xf32>
    %150 = arith.mulf %149, %139 : vector<2x32xf32>
    %151 = vector.extract_strided_slice %104 {offsets = [0, 0], sizes = [2, 32], strides = [1, 1]} : vector<2x64xf32> to vector<2x32xf32>
    %152 = arith.mulf %146, %151 : vector<2x32xf32>
    %153 = arith.addf %150, %152 : vector<2x32xf32>
    %cst_65 = arith.constant 1.000000e+00 : f32
    %154 = vector.broadcast %cst_65 : f32 to vector<2x32xf32>
    %155 = arith.subf %154, %147 : vector<2x32xf32>
    %156 = arith.mulf %155, %145 : vector<2x32xf32>
    %157 = vector.extract_strided_slice %104 {offsets = [0, 32], sizes = [2, 32], strides = [1, 1]} : vector<2x64xf32> to vector<2x32xf32>
    %158 = arith.mulf %147, %157 : vector<2x32xf32>
    %159 = arith.addf %156, %158 : vector<2x32xf32>
    %160 = tpu.concatenate %153, %159 in 1 : vector<2x32xf32>, vector<2x32xf32> -> vector<2x64xf32>
    %c0_66 = arith.constant 0 : index
    %c0_67 = arith.constant 0 : index
    %161 = vector.load %arg14[%c0_66, %c0_67] : memref<2x64xf32, #tpu.memory_space<vmem>>, vector<2x64xf32>
    tpu.vector_store %arg14[%c0_66, %c0_67], %160 {strides = array<i32>} : memref<2x64xf32, #tpu.memory_space<vmem>>, vector<2x64xf32>,
    %162 = arith.index_cast %c1_i32 : i32 to index
    %c0_68 = arith.constant 0 : index
    %c0_69 = arith.constant 0 : index
    %163 = vector.load %arg11[%162, %c0_68, %c0_69] : memref<4x2x32xf32, #tpu.memory_space<vmem>>, vector<1x2x32xf32>
    %164 = vector.shape_cast %163 : vector<1x2x32xf32> to vector<2x32xf32>
    %165 = vector.shape_cast %153 : vector<2x32xf32> to vector<1x2x32xf32>
    tpu.vector_store %arg11[%162, %c0_68, %c0_69], %165 {strides = array<i32>} : memref<4x2x32xf32, #tpu.memory_space<vmem>>, vector<1x2x32xf32>,
    %c3_i32_70 = arith.constant 3 : i32
    %166 = arith.subi %c3_i32_70, %c1_i32 : i32
    %167 = arith.index_cast %166 : i32 to index
    %c0_71 = arith.constant 0 : index
    %c0_72 = arith.constant 0 : index
    %168 = vector.load %arg12[%167, %c0_71, %c0_72] : memref<4x2x32xf32, #tpu.memory_space<vmem>>, vector<1x2x32xf32>
    %169 = vector.shape_cast %168 : vector<1x2x32xf32> to vector<2x32xf32>
    %170 = vector.shape_cast %159 : vector<2x32xf32> to vector<1x2x32xf32>
    tpu.vector_store %arg12[%167, %c0_71, %c0_72], %170 {strides = array<i32>} : memref<4x2x32xf32, #tpu.memory_space<vmem>>, vector<1x2x32xf32>,
    %c2_i32 = arith.constant 2 : i32
    %c0_73 = arith.constant 0 : index
    %c0_74 = arith.constant 0 : index
    %171 = vector.load %arg14[%c0_73, %c0_74] : memref<2x64xf32, #tpu.memory_space<vmem>>, vector<2x64xf32>
    %172 = arith.truncf %171 : vector<2x64xf32> to vector<2x64xbf16>
    %c0_75 = arith.constant 0 : index
    %c0_76 = arith.constant 0 : index
    %173 = vector.load %arg7[%c0_75, %c0_76] : memref<64x192xbf16, #tpu.memory_space<vmem>>, vector<64x192xbf16>
    %cst_77 = arith.constant dense<0.000000e+00> : vector<2x192xf32>
    %174 = tpu.matmul %172, %173, %cst_77 {dimension_numbers = #tpu.dot_dimension_numbers<[1], [0], [0], [1], [0, 0, 1, 1], [], []>} : vector<2x64xbf16>, vector<64x192xbf16>, vector<2x192xf32> -> vector<2x192xf32>
    %c0_78 = arith.constant 0 : index
    %c0_79 = arith.constant 0 : index
    %175 = vector.load %arg10[%c0_78, %c0_79] : memref<1x192xf32, #tpu.memory_space<vmem>>, vector<1x192xf32>
    %176 = vector.broadcast %175 : vector<1x192xf32> to vector<2x192xf32>
    %177 = arith.addf %174, %176 : vector<2x192xf32>
    %178 = arith.index_cast %c2_i32 : i32 to index
    %c0_80 = arith.constant 0 : index
    %c0_81 = arith.constant 0 : index
    %179 = vector.load %arg15[%178, %c0_80, %c0_81] : memref<4x2x96xf32, #tpu.memory_space<vmem>>, vector<1x2x96xf32>
    %180 = vector.shape_cast %179 : vector<1x2x96xf32> to vector<2x96xf32>
    %c3_i32_82 = arith.constant 3 : i32
    %181 = arith.subi %c3_i32_82, %c2_i32 : i32
    %182 = arith.index_cast %181 : i32 to index
    %c0_83 = arith.constant 0 : index
    %c0_84 = arith.constant 0 : index
    %183 = vector.load %arg16[%182, %c0_83, %c0_84] : memref<4x2x96xf32, #tpu.memory_space<vmem>>, vector<1x2x96xf32>
    %184 = vector.shape_cast %183 : vector<1x2x96xf32> to vector<2x96xf32>
    %185 = vector.extract_strided_slice %180 {offsets = [0, 0], sizes = [2, 64], strides = [1, 1]} : vector<2x96xf32> to vector<2x64xf32>
    %186 = vector.extract_strided_slice %177 {offsets = [0, 0], sizes = [2, 64], strides = [1, 1]} : vector<2x192xf32> to vector<2x64xf32>
    %187 = arith.addf %185, %186 : vector<2x64xf32>
    %188 = arith.negf %187 : vector<2x64xf32>
    %189 = math.exp %188 : vector<2x64xf32>
    %cst_85 = arith.constant 1.000000e+00 : f32
    %190 = vector.broadcast %cst_85 : f32 to vector<2x64xf32>
    %191 = arith.addf %190, %189 : vector<2x64xf32>
    %192 = arith.divf %190, %191 : vector<2x64xf32>
    %193 = vector.extract_strided_slice %184 {offsets = [0, 0], sizes = [2, 64], strides = [1, 1]} : vector<2x96xf32> to vector<2x64xf32>
    %194 = vector.extract_strided_slice %177 {offsets = [0, 96], sizes = [2, 64], strides = [1, 1]} : vector<2x192xf32> to vector<2x64xf32>
    %195 = arith.addf %193, %194 : vector<2x64xf32>
    %196 = arith.negf %195 : vector<2x64xf32>
    %197 = math.exp %196 : vector<2x64xf32>
    %cst_86 = arith.constant 1.000000e+00 : f32
    %198 = vector.broadcast %cst_86 : f32 to vector<2x64xf32>
    %199 = arith.addf %198, %197 : vector<2x64xf32>
    %200 = arith.divf %198, %199 : vector<2x64xf32>
    %201 = vector.extract_strided_slice %180 {offsets = [0, 64], sizes = [2, 32], strides = [1, 1]} : vector<2x96xf32> to vector<2x32xf32>
    %202 = vector.extract_strided_slice %192 {offsets = [0, 0], sizes = [2, 32], strides = [1, 1]} : vector<2x64xf32> to vector<2x32xf32>
    %203 = vector.extract_strided_slice %177 {offsets = [0, 64], sizes = [2, 32], strides = [1, 1]} : vector<2x192xf32> to vector<2x32xf32>
    %204 = arith.mulf %202, %203 : vector<2x32xf32>
    %205 = arith.addf %201, %204 : vector<2x32xf32>
    %206 = math.tanh %205 : vector<2x32xf32>
    %207 = vector.extract_strided_slice %184 {offsets = [0, 64], sizes = [2, 32], strides = [1, 1]} : vector<2x96xf32> to vector<2x32xf32>
    %208 = vector.extract_strided_slice %200 {offsets = [0, 0], sizes = [2, 32], strides = [1, 1]} : vector<2x64xf32> to vector<2x32xf32>
    %209 = vector.extract_strided_slice %177 {offsets = [0, 160], sizes = [2, 32], strides = [1, 1]} : vector<2x192xf32> to vector<2x32xf32>
    %210 = arith.mulf %208, %209 : vector<2x32xf32>
    %211 = arith.addf %207, %210 : vector<2x32xf32>
    %212 = math.tanh %211 : vector<2x32xf32>
    %213 = vector.extract_strided_slice %192 {offsets = [0, 32], sizes = [2, 32], strides = [1, 1]} : vector<2x64xf32> to vector<2x32xf32>
    %214 = vector.extract_strided_slice %200 {offsets = [0, 32], sizes = [2, 32], strides = [1, 1]} : vector<2x64xf32> to vector<2x32xf32>
    %cst_87 = arith.constant 1.000000e+00 : f32
    %215 = vector.broadcast %cst_87 : f32 to vector<2x32xf32>
    %216 = arith.subf %215, %213 : vector<2x32xf32>
    %217 = arith.mulf %216, %206 : vector<2x32xf32>
    %218 = vector.extract_strided_slice %171 {offsets = [0, 0], sizes = [2, 32], strides = [1, 1]} : vector<2x64xf32> to vector<2x32xf32>
    %219 = arith.mulf %213, %218 : vector<2x32xf32>
    %220 = arith.addf %217, %219 : vector<2x32xf32>
    %cst_88 = arith.constant 1.000000e+00 : f32
    %221 = vector.broadcast %cst_88 : f32 to vector<2x32xf32>
    %222 = arith.subf %221, %214 : vector<2x32xf32>
    %223 = arith.mulf %222, %212 : vector<2x32xf32>
    %224 = vector.extract_strided_slice %171 {offsets = [0, 32], sizes = [2, 32], strides = [1, 1]} : vector<2x64xf32> to vector<2x32xf32>
    %225 = arith.mulf %214, %224 : vector<2x32xf32>
    %226 = arith.addf %223, %225 : vector<2x32xf32>
    %227 = tpu.concatenate %220, %226 in 1 : vector<2x32xf32>, vector<2x32xf32> -> vector<2x64xf32>
    %c0_89 = arith.constant 0 : index
    %c0_90 = arith.constant 0 : index
    %228 = vector.load %arg14[%c0_89, %c0_90] : memref<2x64xf32, #tpu.memory_space<vmem>>, vector<2x64xf32>
    tpu.vector_store %arg14[%c0_89, %c0_90], %227 {strides = array<i32>} : memref<2x64xf32, #tpu.memory_space<vmem>>, vector<2x64xf32>,
    %229 = arith.index_cast %c2_i32 : i32 to index
    %c0_91 = arith.constant 0 : index
    %c0_92 = arith.constant 0 : index
    %230 = vector.load %arg11[%229, %c0_91, %c0_92] : memref<4x2x32xf32, #tpu.memory_space<vmem>>, vector<1x2x32xf32>
    %231 = vector.shape_cast %230 : vector<1x2x32xf32> to vector<2x32xf32>
    %232 = vector.shape_cast %220 : vector<2x32xf32> to vector<1x2x32xf32>
    tpu.vector_store %arg11[%229, %c0_91, %c0_92], %232 {strides = array<i32>} : memref<4x2x32xf32, #tpu.memory_space<vmem>>, vector<1x2x32xf32>,
    %c3_i32_93 = arith.constant 3 : i32
    %233 = arith.subi %c3_i32_93, %c2_i32 : i32
    %234 = arith.index_cast %233 : i32 to index
    %c0_94 = arith.constant 0 : index
    %c0_95 = arith.constant 0 : index
    %235 = vector.load %arg12[%234, %c0_94, %c0_95] : memref<4x2x32xf32, #tpu.memory_space<vmem>>, vector<1x2x32xf32>
    %236 = vector.shape_cast %235 : vector<1x2x32xf32> to vector<2x32xf32>
    %237 = vector.shape_cast %226 : vector<2x32xf32> to vector<1x2x32xf32>
    tpu.vector_store %arg12[%234, %c0_94, %c0_95], %237 {strides = array<i32>} : memref<4x2x32xf32, #tpu.memory_space<vmem>>, vector<1x2x32xf32>,
    %c3_i32_96 = arith.constant 3 : i32
    %c0_97 = arith.constant 0 : index
    %c0_98 = arith.constant 0 : index
    %238 = vector.load %arg14[%c0_97, %c0_98] : memref<2x64xf32, #tpu.memory_space<vmem>>, vector<2x64xf32>
    %239 = arith.truncf %238 : vector<2x64xf32> to vector<2x64xbf16>
    %c0_99 = arith.constant 0 : index
    %c0_100 = arith.constant 0 : index
    %240 = vector.load %arg7[%c0_99, %c0_100] : memref<64x192xbf16, #tpu.memory_space<vmem>>, vector<64x192xbf16>
    %cst_101 = arith.constant dense<0.000000e+00> : vector<2x192xf32>
    %241 = tpu.matmul %239, %240, %cst_101 {dimension_numbers = #tpu.dot_dimension_numbers<[1], [0], [0], [1], [0, 0, 1, 1], [], []>} : vector<2x64xbf16>, vector<64x192xbf16>, vector<2x192xf32> -> vector<2x192xf32>
    %c0_102 = arith.constant 0 : index
    %c0_103 = arith.constant 0 : index
    %242 = vector.load %arg10[%c0_102, %c0_103] : memref<1x192xf32, #tpu.memory_space<vmem>>, vector<1x192xf32>
    %243 = vector.broadcast %242 : vector<1x192xf32> to vector<2x192xf32>
    %244 = arith.addf %241, %243 : vector<2x192xf32>
    %245 = arith.index_cast %c3_i32_96 : i32 to index
    %c0_104 = arith.constant 0 : index
    %c0_105 = arith.constant 0 : index
    %246 = vector.load %arg15[%245, %c0_104, %c0_105] : memref<4x2x96xf32, #tpu.memory_space<vmem>>, vector<1x2x96xf32>
    %247 = vector.shape_cast %246 : vector<1x2x96xf32> to vector<2x96xf32>
    %c3_i32_106 = arith.constant 3 : i32
    %248 = arith.subi %c3_i32_106, %c3_i32_96 : i32
    %249 = arith.index_cast %248 : i32 to index
    %c0_107 = arith.constant 0 : index
    %c0_108 = arith.constant 0 : index
    %250 = vector.load %arg16[%249, %c0_107, %c0_108] : memref<4x2x96xf32, #tpu.memory_space<vmem>>, vector<1x2x96xf32>
    %251 = vector.shape_cast %250 : vector<1x2x96xf32> to vector<2x96xf32>
    %252 = vector.extract_strided_slice %247 {offsets = [0, 0], sizes = [2, 64], strides = [1, 1]} : vector<2x96xf32> to vector<2x64xf32>
    %253 = vector.extract_strided_slice %244 {offsets = [0, 0], sizes = [2, 64], strides = [1, 1]} : vector<2x192xf32> to vector<2x64xf32>
    %254 = arith.addf %252, %253 : vector<2x64xf32>
    %255 = arith.negf %254 : vector<2x64xf32>
    %256 = math.exp %255 : vector<2x64xf32>
    %cst_109 = arith.constant 1.000000e+00 : f32
    %257 = vector.broadcast %cst_109 : f32 to vector<2x64xf32>
    %258 = arith.addf %257, %256 : vector<2x64xf32>
    %259 = arith.divf %257, %258 : vector<2x64xf32>
    %260 = vector.extract_strided_slice %251 {offsets = [0, 0], sizes = [2, 64], strides = [1, 1]} : vector<2x96xf32> to vector<2x64xf32>
    %261 = vector.extract_strided_slice %244 {offsets = [0, 96], sizes = [2, 64], strides = [1, 1]} : vector<2x192xf32> to vector<2x64xf32>
    %262 = arith.addf %260, %261 : vector<2x64xf32>
    %263 = arith.negf %262 : vector<2x64xf32>
    %264 = math.exp %263 : vector<2x64xf32>
    %cst_110 = arith.constant 1.000000e+00 : f32
    %265 = vector.broadcast %cst_110 : f32 to vector<2x64xf32>
    %266 = arith.addf %265, %264 : vector<2x64xf32>
    %267 = arith.divf %265, %266 : vector<2x64xf32>
    %268 = vector.extract_strided_slice %247 {offsets = [0, 64], sizes = [2, 32], strides = [1, 1]} : vector<2x96xf32> to vector<2x32xf32>
    %269 = vector.extract_strided_slice %259 {offsets = [0, 0], sizes = [2, 32], strides = [1, 1]} : vector<2x64xf32> to vector<2x32xf32>
    %270 = vector.extract_strided_slice %244 {offsets = [0, 64], sizes = [2, 32], strides = [1, 1]} : vector<2x192xf32> to vector<2x32xf32>
    %271 = arith.mulf %269, %270 : vector<2x32xf32>
    %272 = arith.addf %268, %271 : vector<2x32xf32>
    %273 = math.tanh %272 : vector<2x32xf32>
    %274 = vector.extract_strided_slice %251 {offsets = [0, 64], sizes = [2, 32], strides = [1, 1]} : vector<2x96xf32> to vector<2x32xf32>
    %275 = vector.extract_strided_slice %267 {offsets = [0, 0], sizes = [2, 32], strides = [1, 1]} : vector<2x64xf32> to vector<2x32xf32>
    %276 = vector.extract_strided_slice %244 {offsets = [0, 160], sizes = [2, 32], strides = [1, 1]} : vector<2x192xf32> to vector<2x32xf32>
    %277 = arith.mulf %275, %276 : vector<2x32xf32>
    %278 = arith.addf %274, %277 : vector<2x32xf32>
    %279 = math.tanh %278 : vector<2x32xf32>
    %280 = vector.extract_strided_slice %259 {offsets = [0, 32], sizes = [2, 32], strides = [1, 1]} : vector<2x64xf32> to vector<2x32xf32>
    %281 = vector.extract_strided_slice %267 {offsets = [0, 32], sizes = [2, 32], strides = [1, 1]} : vector<2x64xf32> to vector<2x32xf32>
    %cst_111 = arith.constant 1.000000e+00 : f32
    %282 = vector.broadcast %cst_111 : f32 to vector<2x32xf32>
    %283 = arith.subf %282, %280 : vector<2x32xf32>
    %284 = arith.mulf %283, %273 : vector<2x32xf32>
    %285 = vector.extract_strided_slice %238 {offsets = [0, 0], sizes = [2, 32], strides = [1, 1]} : vector<2x64xf32> to vector<2x32xf32>
    %286 = arith.mulf %280, %285 : vector<2x32xf32>
    %287 = arith.addf %284, %286 : vector<2x32xf32>
    %cst_112 = arith.constant 1.000000e+00 : f32
    %288 = vector.broadcast %cst_112 : f32 to vector<2x32xf32>
    %289 = arith.subf %288, %281 : vector<2x32xf32>
    %290 = arith.mulf %289, %279 : vector<2x32xf32>
    %291 = vector.extract_strided_slice %238 {offsets = [0, 32], sizes = [2, 32], strides = [1, 1]} : vector<2x64xf32> to vector<2x32xf32>
    %292 = arith.mulf %281, %291 : vector<2x32xf32>
    %293 = arith.addf %290, %292 : vector<2x32xf32>
    %294 = tpu.concatenate %287, %293 in 1 : vector<2x32xf32>, vector<2x32xf32> -> vector<2x64xf32>
    %c0_113 = arith.constant 0 : index
    %c0_114 = arith.constant 0 : index
    %295 = vector.load %arg14[%c0_113, %c0_114] : memref<2x64xf32, #tpu.memory_space<vmem>>, vector<2x64xf32>
    tpu.vector_store %arg14[%c0_113, %c0_114], %294 {strides = array<i32>} : memref<2x64xf32, #tpu.memory_space<vmem>>, vector<2x64xf32>,
    %296 = arith.index_cast %c3_i32_96 : i32 to index
    %c0_115 = arith.constant 0 : index
    %c0_116 = arith.constant 0 : index
    %297 = vector.load %arg11[%296, %c0_115, %c0_116] : memref<4x2x32xf32, #tpu.memory_space<vmem>>, vector<1x2x32xf32>
    %298 = vector.shape_cast %297 : vector<1x2x32xf32> to vector<2x32xf32>
    %299 = vector.shape_cast %287 : vector<2x32xf32> to vector<1x2x32xf32>
    tpu.vector_store %arg11[%296, %c0_115, %c0_116], %299 {strides = array<i32>} : memref<4x2x32xf32, #tpu.memory_space<vmem>>, vector<1x2x32xf32>,
    %c3_i32_117 = arith.constant 3 : i32
    %300 = arith.subi %c3_i32_117, %c3_i32_96 : i32
    %301 = arith.index_cast %300 : i32 to index
    %c0_118 = arith.constant 0 : index
    %c0_119 = arith.constant 0 : index
    %302 = vector.load %arg12[%301, %c0_118, %c0_119] : memref<4x2x32xf32, #tpu.memory_space<vmem>>, vector<1x2x32xf32>
    %303 = vector.shape_cast %302 : vector<1x2x32xf32> to vector<2x32xf32>
    %304 = vector.shape_cast %293 : vector<2x32xf32> to vector<1x2x32xf32>
    tpu.vector_store %arg12[%301, %c0_118, %c0_119], %304 {strides = array<i32>} : memref<4x2x32xf32, #tpu.memory_space<vmem>>, vector<1x2x32xf32>,
    %c4_i32 = arith.constant 4 : i32
    %c0_120 = arith.constant 0 : index
    %c0_121 = arith.constant 0 : index
    %305 = vector.load %arg14[%c0_120, %c0_121] : memref<2x64xf32, #tpu.memory_space<vmem>>, vector<2x32xf32>
    %c0_122 = arith.constant 0 : index
    %c0_123 = arith.constant 0 : index
    %c0_124 = arith.constant 0 : index
    %306 = vector.load %arg13[%c0_122, %c0_123, %c0_124] : memref<2x2x32xf32, #tpu.memory_space<vmem>>, vector<1x2x32xf32>
    %307 = vector.shape_cast %306 : vector<1x2x32xf32> to vector<2x32xf32>
    %308 = vector.shape_cast %305 : vector<2x32xf32> to vector<1x2x32xf32>
    tpu.vector_store %arg13[%c0_122, %c0_123, %c0_124], %308 {strides = array<i32>} : memref<2x2x32xf32, #tpu.memory_space<vmem>>, vector<1x2x32xf32>,
    %c0_125 = arith.constant 0 : index
    %c32 = arith.constant 32 : index
    %309 = vector.load %arg14[%c0_125, %c32] : memref<2x64xf32, #tpu.memory_space<vmem>>, vector<2x32xf32>
    %c1 = arith.constant 1 : index
    %c0_126 = arith.constant 0 : index
    %c0_127 = arith.constant 0 : index
    %310 = vector.load %arg13[%c1, %c0_126, %c0_127] : memref<2x2x32xf32, #tpu.memory_space<vmem>>, vector<1x2x32xf32>
    %311 = vector.shape_cast %310 : vector<1x2x32xf32> to vector<2x32xf32>
    %312 = vector.shape_cast %309 : vector<2x32xf32> to vector<1x2x32xf32>
    tpu.vector_store %arg13[%c1, %c0_126, %c0_127], %312 {strides = array<i32>} : memref<2x2x32xf32, #tpu.memory_space<vmem>>, vector<1x2x32xf32>,
    return
  }
  func.func @transform_0(%arg0: i32) -> (i32, i32, i32) {
    %c0_i32 = arith.constant 0 : i32
    %c0_i32_0 = arith.constant 0 : i32
    %c0_i32_1 = arith.constant 0 : i32
    return %arg0, %c0_i32, %c0_i32_0 : i32, i32, i32
  }
  func.func @transform_1(%arg0: i32) -> (i32, i32, i32) {
    %c0_i32 = arith.constant 0 : i32
    %0 = arith.subi %c0_i32, %arg0 : i32
    %c0_i32_0 = arith.constant 0 : i32
    %c0_i32_1 = arith.constant 0 : i32
    %c0_i32_2 = arith.constant 0 : i32
    return %0, %c0_i32_0, %c0_i32_1 : i32, i32, i32
  }
  func.func @transform_2(%arg0: i32) -> (i32, i32, i32) {
    %c0_i32 = arith.constant 0 : i32
    %c0_i32_0 = arith.constant 0 : i32
    %c0_i32_1 = arith.constant 0 : i32
    return %arg0, %c0_i32, %c0_i32_0 : i32, i32, i32
  }
  func.func @transform_3(%arg0: i32) -> (i32, i32, i32) {
    %c0_i32 = arith.constant 0 : i32
    %0 = arith.subi %c0_i32, %arg0 : i32
    %c0_i32_0 = arith.constant 0 : i32
    %c0_i32_1 = arith.constant 0 : i32
    %c0_i32_2 = arith.constant 0 : i32
    return %0, %c0_i32_0, %c0_i32_1 : i32, i32, i32
  }
  func.func @transform_4(%arg0: i32) -> (i32, i32) {
    %c0_i32 = arith.constant 0 : i32
    %c0_i32_0 = arith.constant 0 : i32
    %c0_i32_1 = arith.constant 0 : i32
    return %c0_i32, %c0_i32_0 : i32, i32
  }
  func.func @transform_5(%arg0: i32) -> (i32, i32) {
    %c0_i32 = arith.constant 0 : i32
    %c0_i32_0 = arith.constant 0 : i32
    %c0_i32_1 = arith.constant 0 : i32
    return %c0_i32, %c0_i32_0 : i32, i32
  }
  func.func @transform_6(%arg0: i32) -> (i32, i32) {
    %c0_i32 = arith.constant 0 : i32
    %c0_i32_0 = arith.constant 0 : i32
    %c0_i32_1 = arith.constant 0 : i32
    return %c0_i32, %c0_i32_0 : i32, i32
  }
  func.func @transform_7(%arg0: i32) -> (i32, i32) {
    %c0_i32 = arith.constant 0 : i32
    %c0_i32_0 = arith.constant 0 : i32
    %c0_i32_1 = arith.constant 0 : i32
    return %c0_i32, %c0_i32_0 : i32, i32
  }
  func.func @transform_8(%arg0: i32) -> (i32, i32) {
    %c0_i32 = arith.constant 0 : i32
    %c0_i32_0 = arith.constant 0 : i32
    %c0_i32_1 = arith.constant 0 : i32
    return %c0_i32, %c0_i32_0 : i32, i32
  }
  func.func @transform_9(%arg0: i32) -> (i32, i32) {
    %c0_i32 = arith.constant 0 : i32
    %c0_i32_0 = arith.constant 0 : i32
    %c0_i32_1 = arith.constant 0 : i32
    return %c0_i32, %c0_i32_0 : i32, i32
  }
  func.func @transform_10(%arg0: i32) -> (i32, i32, i32) {
    %c0_i32 = arith.constant 0 : i32
    %c0_i32_0 = arith.constant 0 : i32
    %c0_i32_1 = arith.constant 0 : i32
    return %arg0, %c0_i32, %c0_i32_0 : i32, i32, i32
  }
  func.func @transform_11(%arg0: i32) -> (i32, i32, i32) {
    %c0_i32 = arith.constant 0 : i32
    %0 = arith.subi %c0_i32, %arg0 : i32
    %c0_i32_0 = arith.constant 0 : i32
    %c0_i32_1 = arith.constant 0 : i32
    %c0_i32_2 = arith.constant 0 : i32
    return %0, %c0_i32_0, %c0_i32_1 : i32, i32, i32
  }
  func.func @transform_12(%arg0: i32) -> (i32, i32, i32) {
    %c0_i32 = arith.constant 0 : i32
    %c0_i32_0 = arith.constant 0 : i32
    %c0_i32_1 = arith.constant 0 : i32
    %c0_i32_2 = arith.constant 0 : i32
    return %c0_i32, %c0_i32_0, %c0_i32_1 : i32, i32, i32
  }
}

module attributes {stable_mosaic.version = 11 : i64} {
  func.func @kernel(%arg0: i32, %arg1: memref<4x2x256xf32, #tpu.memory_space<vmem>>, %arg2: memref<4x2x256xf32, #tpu.memory_space<vmem>>, %arg3: memref<4x1x32xf32, #tpu.memory_space<vmem>>, %arg4: memref<4x1x32xf32, #tpu.memory_space<vmem>>, %arg5: memref<256x96xbf16, #tpu.memory_space<vmem>>, %arg6: memref<256x96xbf16, #tpu.memory_space<vmem>>, %arg7: memref<64x192xbf16, #tpu.memory_space<vmem>>, %arg8: memref<1x96xf32, #tpu.memory_space<vmem>>, %arg9: memref<1x96xf32, #tpu.memory_space<vmem>>, %arg10: memref<1x192xf32, #tpu.memory_space<vmem>>, %arg11: memref<4x2x32xf32, #tpu.memory_space<vmem>>, %arg12: memref<4x2x32xf32, #tpu.memory_space<vmem>>, %arg13: memref<2x2x32xf32, #tpu.memory_space<vmem>>, %arg14: memref<2x64xf32, #tpu.memory_space<vmem>>, %arg15: memref<4x2x96xf32, #tpu.memory_space<vmem>>, %arg16: memref<4x2x96xf32, #tpu.memory_space<vmem>>) attributes {dimension_semantics = [#tpu.dimension_semantics<arbitrary>], iteration_bounds = array<i64: 1>, scalar_prefetch = 0 : i64, scratch_operands = 3 : i64, tpu.core_type = #tpu.core_type<tc>, window_params = [{transform_indices = @transform_0, window_bounds = array<i64: 4, 2, 256>}, {transform_indices = @transform_1, window_bounds = array<i64: 4, 2, 256>}, {transform_indices = @transform_2, window_bounds = array<i64: 4, 1, 32>}, {transform_indices = @transform_3, window_bounds = array<i64: 4, 1, 32>}, {pipeline_mode = #tpu.pipeline_mode<synchronous>, transform_indices = @transform_4, window_bounds = array<i64: 256, 96>}, {pipeline_mode = #tpu.pipeline_mode<synchronous>, transform_indices = @transform_5, window_bounds = array<i64: 256, 96>}, {pipeline_mode = #tpu.pipeline_mode<synchronous>, transform_indices = @transform_6, window_bounds = array<i64: 64, 192>}, {pipeline_mode = #tpu.pipeline_mode<synchronous>, transform_indices = @transform_7, window_bounds = array<i64: 1, 96>}, {pipeline_mode = #tpu.pipeline_mode<synchronous>, transform_indices = @transform_8, window_bounds = array<i64: 1, 96>}, {pipeline_mode = #tpu.pipeline_mode<synchronous>, transform_indices = @transform_9, window_bounds = array<i64: 1, 192>}, {transform_indices = @transform_10, window_bounds = array<i64: 4, 2, 32>}, {transform_indices = @transform_11, window_bounds = array<i64: 4, 2, 32>}, {pipeline_mode = #tpu.pipeline_mode<synchronous>, transform_indices = @transform_12, window_bounds = array<i64: 2, 2, 32>}]} {
    %c0_i32 = arith.constant 0 : i32
    %0 = arith.cmpi eq, %arg0, %c0_i32 : i32
    %1 = arith.extui %0 : i1 to i32
    %c0_i32_0 = arith.constant 0 : i32
    %2 = arith.cmpi ne, %1, %c0_i32_0 : i32
    scf.if %2 {
      %cst_128 = arith.constant 0.000000e+00 : f32
      %313 = vector.broadcast %cst_128 : f32 to vector<2x64xf32>
      %c0_129 = arith.constant 0 : index
      %c0_130 = arith.constant 0 : index
      %314 = vector.load %arg14[%c0_129, %c0_130] : memref<2x64xf32, #tpu.memory_space<vmem>>, vector<2x64xf32>
      tpu.vector_store %arg14[%c0_129, %c0_130], %313 {strides = array<i32>} : memref<2x64xf32, #tpu.memory_space<vmem>>, vector<2x64xf32>,
    } else {
    }
    %c0 = arith.constant 0 : index
    %c0_1 = arith.constant 0 : index
    %c0_2 = arith.constant 0 : index
    %3 = vector.load %arg1[%c0, %c0_1, %c0_2] : memref<4x2x256xf32, #tpu.memory_space<vmem>>, vector<4x2x256xf32>
    %4 = vector.shape_cast %3 : vector<4x2x256xf32> to vector<8x256xf32>
    %5 = arith.truncf %4 : vector<8x256xf32> to vector<8x256xbf16>
    %c0_3 = arith.constant 0 : index
    %c0_4 = arith.constant 0 : index
    %c0_5 = arith.constant 0 : index
    %6 = vector.load %arg2[%c0_3, %c0_4, %c0_5] : memref<4x2x256xf32, #tpu.memory_space<vmem>>, vector<4x2x256xf32>
    %7 = vector.shape_cast %6 : vector<4x2x256xf32> to vector<8x256xf32>
    %8 = arith.truncf %7 : vector<8x256xf32> to vector<8x256xbf16>
    %c0_6 = arith.constant 0 : index
    %c0_7 = arith.constant 0 : index
    %9 = vector.load %arg5[%c0_6, %c0_7] : memref<256x96xbf16, #tpu.memory_space<vmem>>, vector<256x96xbf16>
    %cst = arith.constant dense<0.000000e+00> : vector<8x96xf32>
    %10 = tpu.matmul %5, %9, %cst {dimension_numbers = #tpu.dot_dimension_numbers<[1], [0], [0], [1], [0, 0, 1, 1], [], []>} : vector<8x256xbf16>, vector<256x96xbf16>, vector<8x96xf32> -> vector<8x96xf32>
    %c0_8 = arith.constant 0 : index
    %c0_9 = arith.constant 0 : index
    %11 = vector.load %arg8[%c0_8, %c0_9] : memref<1x96xf32, #tpu.memory_space<vmem>>, vector<1x96xf32>
    %12 = vector.broadcast %11 : vector<1x96xf32> to vector<8x96xf32>
    %13 = arith.addf %10, %12 : vector<8x96xf32>
    %14 = vector.shape_cast %13 : vector<8x96xf32> to vector<4x2x96xf32>
    %c0_10 = arith.constant 0 : index
    %c0_11 = arith.constant 0 : index
    %15 = vector.load %arg6[%c0_10, %c0_11] : memref<256x96xbf16, #tpu.memory_space<vmem>>, vector<256x96xbf16>
    %cst_12 = arith.constant dense<0.000000e+00> : vector<8x96xf32>
    %16 = tpu.matmul %8, %15, %cst_12 {dimension_numbers = #tpu.dot_dimension_numbers<[1], [0], [0], [1], [0, 0, 1, 1], [], []>} : vector<8x256xbf16>, vector<256x96xbf16>, vector<8x96xf32> -> vector<8x96xf32>
    %c0_13 = arith.constant 0 : index
    %c0_14 = arith.constant 0 : index
    %17 = vector.load %arg9[%c0_13, %c0_14] : memref<1x96xf32, #tpu.memory_space<vmem>>, vector<1x96xf32>
    %18 = vector.broadcast %17 : vector<1x96xf32> to vector<8x96xf32>
    %19 = arith.addf %16, %18 : vector<8x96xf32>
    %20 = vector.shape_cast %19 : vector<8x96xf32> to vector<4x2x96xf32>
    %21 = vector.extract_strided_slice %14 {offsets = [0, 0, 0], sizes = [4, 2, 32], strides = [1, 1, 1]} : vector<4x2x96xf32> to vector<4x2x32xf32>
    %22 = vector.extract_strided_slice %14 {offsets = [0, 0, 32], sizes = [4, 2, 32], strides = [1, 1, 1]} : vector<4x2x96xf32> to vector<4x2x32xf32>
    %c0_15 = arith.constant 0 : index
    %c0_16 = arith.constant 0 : index
    %c0_17 = arith.constant 0 : index
    %23 = vector.load %arg3[%c0_15, %c0_16, %c0_17] : memref<4x1x32xf32, #tpu.memory_space<vmem>>, vector<4x1x32xf32>
    %24 = vector.broadcast %23 : vector<4x1x32xf32> to vector<4x2x32xf32>
    %25 = arith.addf %22, %24 : vector<4x2x32xf32>
    %26 = vector.extract_strided_slice %14 {offsets = [0, 0, 64], sizes = [4, 2, 32], strides = [1, 1, 1]} : vector<4x2x96xf32> to vector<4x2x32xf32>
    %27 = tpu.concatenate %21, %25, %26 in 2 : vector<4x2x32xf32>, vector<4x2x32xf32>, vector<4x2x32xf32> -> vector<4x2x96xf32>
    %c0_18 = arith.constant 0 : index
    %c0_19 = arith.constant 0 : index
    %c0_20 = arith.constant 0 : index
    %28 = vector.load %arg15[%c0_18, %c0_19, %c0_20] : memref<4x2x96xf32, #tpu.memory_space<vmem>>, vector<4x2x96xf32>
    tpu.vector_store %arg15[%c0_18, %c0_19, %c0_20], %27 {strides = array<i32>} : memref<4x2x96xf32, #tpu.memory_space<vmem>>, vector<4x2x96xf32>,
    %29 = vector.extract_strided_slice %20 {offsets = [0, 0, 0], sizes = [4, 2, 32], strides = [1, 1, 1]} : vector<4x2x96xf32> to vector<4x2x32xf32>
    %30 = vector.extract_strided_slice %20 {offsets = [0, 0, 32], sizes = [4, 2, 32], strides = [1, 1, 1]} : vector<4x2x96xf32> to vector<4x2x32xf32>
    %c0_21 = arith.constant 0 : index
    %c0_22 = arith.constant 0 : index
    %c0_23 = arith.constant 0 : index
    %31 = vector.load %arg4[%c0_21, %c0_22, %c0_23] : memref<4x1x32xf32, #tpu.memory_space<vmem>>, vector<4x1x32xf32>
    %32 = vector.broadcast %31 : vector<4x1x32xf32> to vector<4x2x32xf32>
    %33 = arith.addf %30, %32 : vector<4x2x32xf32>
    %34 = vector.extract_strided_slice %20 {offsets = [0, 0, 64], sizes = [4, 2, 32], strides = [1, 1, 1]} : vector<4x2x96xf32> to vector<4x2x32xf32>
    %35 = tpu.concatenate %29, %33, %34 in 2 : vector<4x2x32xf32>, vector<4x2x32xf32>, vector<4x2x32xf32> -> vector<4x2x96xf32>
    %c0_24 = arith.constant 0 : index
    %c0_25 = arith.constant 0 : index
    %c0_26 = arith.constant 0 : index
    %36 = vector.load %arg16[%c0_24, %c0_25, %c0_26] : memref<4x2x96xf32, #tpu.memory_space<vmem>>, vector<4x2x96xf32>
    tpu.vector_store %arg16[%c0_24, %c0_25, %c0_26], %35 {strides = array<i32>} : memref<4x2x96xf32, #tpu.memory_space<vmem>>, vector<4x2x96xf32>,
    %c0_i32_27 = arith.constant 0 : i32
    %c0_28 = arith.constant 0 : index
    %c0_29 = arith.constant 0 : index
    %37 = vector.load %arg14[%c0_28, %c0_29] : memref<2x64xf32, #tpu.memory_space<vmem>>, vector<2x64xf32>
    %38 = arith.truncf %37 : vector<2x64xf32> to vector<2x64xbf16>
    %c0_30 = arith.constant 0 : index
    %c0_31 = arith.constant 0 : index
    %39 = vector.load %arg7[%c0_30, %c0_31] : memref<64x192xbf16, #tpu.memory_space<vmem>>, vector<64x192xbf16>
    %cst_32 = arith.constant dense<0.000000e+00> : vector<2x192xf32>
    %40 = tpu.matmul %38, %39, %cst_32 {dimension_numbers = #tpu.dot_dimension_numbers<[1], [0], [0], [1], [0, 0, 1, 1], [], []>} : vector<2x64xbf16>, vector<64x192xbf16>, vector<2x192xf32> -> vector<2x192xf32>
    %c0_33 = arith.constant 0 : index
    %c0_34 = arith.constant 0 : index
    %41 = vector.load %arg10[%c0_33, %c0_34] : memref<1x192xf32, #tpu.memory_space<vmem>>, vector<1x192xf32>
    %42 = vector.broadcast %41 : vector<1x192xf32> to vector<2x192xf32>
    %43 = arith.addf %40, %42 : vector<2x192xf32>
    %44 = arith.index_cast %c0_i32_27 : i32 to index
    %c0_35 = arith.constant 0 : index
    %c0_36 = arith.constant 0 : index
    %45 = vector.load %arg15[%44, %c0_35, %c0_36] : memref<4x2x96xf32, #tpu.memory_space<vmem>>, vector<1x2x96xf32>
    %46 = vector.shape_cast %45 : vector<1x2x96xf32> to vector<2x96xf32>
    %c3_i32 = arith.constant 3 : i32
    %47 = arith.subi %c3_i32, %c0_i32_27 : i32
    %48 = arith.index_cast %47 : i32 to index
    %c0_37 = arith.constant 0 : index
    %c0_38 = arith.constant 0 : index
    %49 = vector.load %arg16[%48, %c0_37, %c0_38] : memref<4x2x96xf32, #tpu.memory_space<vmem>>, vector<1x2x96xf32>
    %50 = vector.shape_cast %49 : vector<1x2x96xf32> to vector<2x96xf32>
    %51 = vector.extract_strided_slice %46 {offsets = [0, 0], sizes = [2, 64], strides = [1, 1]} : vector<2x96xf32> to vector<2x64xf32>
    %52 = vector.extract_strided_slice %43 {offsets = [0, 0], sizes = [2, 64], strides = [1, 1]} : vector<2x192xf32> to vector<2x64xf32>
    %53 = arith.addf %51, %52 : vector<2x64xf32>
    %54 = arith.negf %53 : vector<2x64xf32>
    %55 = math.exp %54 : vector<2x64xf32>
    %cst_39 = arith.constant 1.000000e+00 : f32
    %56 = vector.broadcast %cst_39 : f32 to vector<2x64xf32>
    %57 = arith.addf %56, %55 : vector<2x64xf32>
    %58 = arith.divf %56, %57 : vector<2x64xf32>
    %59 = vector.extract_strided_slice %50 {offsets = [0, 0], sizes = [2, 64], strides = [1, 1]} : vector<2x96xf32> to vector<2x64xf32>
    %60 = vector.extract_strided_slice %43 {offsets = [0, 96], sizes = [2, 64], strides = [1, 1]} : vector<2x192xf32> to vector<2x64xf32>
    %61 = arith.addf %59, %60 : vector<2x64xf32>
    %62 = arith.negf %61 : vector<2x64xf32>
    %63 = math.exp %62 : vector<2x64xf32>
    %cst_40 = arith.constant 1.000000e+00 : f32
    %64 = vector.broadcast %cst_40 : f32 to vector<2x64xf32>
    %65 = arith.addf %64, %63 : vector<2x64xf32>
    %66 = arith.divf %64, %65 : vector<2x64xf32>
    %67 = vector.extract_strided_slice %46 {offsets = [0, 64], sizes = [2, 32], strides = [1, 1]} : vector<2x96xf32> to vector<2x32xf32>
    %68 = vector.extract_strided_slice %58 {offsets = [0, 0], sizes = [2, 32], strides = [1, 1]} : vector<2x64xf32> to vector<2x32xf32>
    %69 = vector.extract_strided_slice %43 {offsets = [0, 64], sizes = [2, 32], strides = [1, 1]} : vector<2x192xf32> to vector<2x32xf32>
    %70 = arith.mulf %68, %69 : vector<2x32xf32>
    %71 = arith.addf %67, %70 : vector<2x32xf32>
    %72 = math.tanh %71 : vector<2x32xf32>
    %73 = vector.extract_strided_slice %50 {offsets = [0, 64], sizes = [2, 32], strides = [1, 1]} : vector<2x96xf32> to vector<2x32xf32>
    %74 = vector.extract_strided_slice %66 {offsets = [0, 0], sizes = [2, 32], strides = [1, 1]} : vector<2x64xf32> to vector<2x32xf32>
    %75 = vector.extract_strided_slice %43 {offsets = [0, 160], sizes = [2, 32], strides = [1, 1]} : vector<2x192xf32> to vector<2x32xf32>
    %76 = arith.mulf %74, %75 : vector<2x32xf32>
    %77 = arith.addf %73, %76 : vector<2x32xf32>
    %78 = math.tanh %77 : vector<2x32xf32>
    %79 = vector.extract_strided_slice %58 {offsets = [0, 32], sizes = [2, 32], strides = [1, 1]} : vector<2x64xf32> to vector<2x32xf32>
    %80 = vector.extract_strided_slice %66 {offsets = [0, 32], sizes = [2, 32], strides = [1, 1]} : vector<2x64xf32> to vector<2x32xf32>
    %cst_41 = arith.constant 1.000000e+00 : f32
    %81 = vector.broadcast %cst_41 : f32 to vector<2x32xf32>
    %82 = arith.subf %81, %79 : vector<2x32xf32>
    %83 = arith.mulf %82, %72 : vector<2x32xf32>
    %84 = vector.extract_strided_slice %37 {offsets = [0, 0], sizes = [2, 32], strides = [1, 1]} : vector<2x64xf32> to vector<2x32xf32>
    %85 = arith.mulf %79, %84 : vector<2x32xf32>
    %86 = arith.addf %83, %85 : vector<2x32xf32>
    %cst_42 = arith.constant 1.000000e+00 : f32
    %87 = vector.broadcast %cst_42 : f32 to vector<2x32xf32>
    %88 = arith.subf %87, %80 : vector<2x32xf32>
    %89 = arith.mulf %88, %78 : vector<2x32xf32>
    %90 = vector.extract_strided_slice %37 {offsets = [0, 32], sizes = [2, 32], strides = [1, 1]} : vector<2x64xf32> to vector<2x32xf32>
    %91 = arith.mulf %80, %90 : vector<2x32xf32>
    %92 = arith.addf %89, %91 : vector<2x32xf32>
    %93 = tpu.concatenate %86, %92 in 1 : vector<2x32xf32>, vector<2x32xf32> -> vector<2x64xf32>
    %c0_43 = arith.constant 0 : index
    %c0_44 = arith.constant 0 : index
    %94 = vector.load %arg14[%c0_43, %c0_44] : memref<2x64xf32, #tpu.memory_space<vmem>>, vector<2x64xf32>
    tpu.vector_store %arg14[%c0_43, %c0_44], %93 {strides = array<i32>} : memref<2x64xf32, #tpu.memory_space<vmem>>, vector<2x64xf32>,
    %95 = arith.index_cast %c0_i32_27 : i32 to index
    %c0_45 = arith.constant 0 : index
    %c0_46 = arith.constant 0 : index
    %96 = vector.load %arg11[%95, %c0_45, %c0_46] : memref<4x2x32xf32, #tpu.memory_space<vmem>>, vector<1x2x32xf32>
    %97 = vector.shape_cast %96 : vector<1x2x32xf32> to vector<2x32xf32>
    %98 = vector.shape_cast %86 : vector<2x32xf32> to vector<1x2x32xf32>
    tpu.vector_store %arg11[%95, %c0_45, %c0_46], %98 {strides = array<i32>} : memref<4x2x32xf32, #tpu.memory_space<vmem>>, vector<1x2x32xf32>,
    %c3_i32_47 = arith.constant 3 : i32
    %99 = arith.subi %c3_i32_47, %c0_i32_27 : i32
    %100 = arith.index_cast %99 : i32 to index
    %c0_48 = arith.constant 0 : index
    %c0_49 = arith.constant 0 : index
    %101 = vector.load %arg12[%100, %c0_48, %c0_49] : memref<4x2x32xf32, #tpu.memory_space<vmem>>, vector<1x2x32xf32>
    %102 = vector.shape_cast %101 : vector<1x2x32xf32> to vector<2x32xf32>
    %103 = vector.shape_cast %92 : vector<2x32xf32> to vector<1x2x32xf32>
    tpu.vector_store %arg12[%100, %c0_48, %c0_49], %103 {strides = array<i32>} : memref<4x2x32xf32, #tpu.memory_space<vmem>>, vector<1x2x32xf32>,
    %c1_i32 = arith.constant 1 : i32
    %c0_50 = arith.constant 0 : index
    %c0_51 = arith.constant 0 : index
    %104 = vector.load %arg14[%c0_50, %c0_51] : memref<2x64xf32, #tpu.memory_space<vmem>>, vector<2x64xf32>
    %105 = arith.truncf %104 : vector<2x64xf32> to vector<2x64xbf16>
    %c0_52 = arith.constant 0 : index
    %c0_53 = arith.constant 0 : index
    %106 = vector.load %arg7[%c0_52, %c0_53] : memref<64x192xbf16, #tpu.memory_space<vmem>>, vector<64x192xbf16>
    %cst_54 = arith.constant dense<0.000000e+00> : vector<2x192xf32>
    %107 = tpu.matmul %105, %106, %cst_54 {dimension_numbers = #tpu.dot_dimension_numbers<[1], [0], [0], [1], [0, 0, 1, 1], [], []>} : vector<2x64xbf16>, vector<64x192xbf16>, vector<2x192xf32> -> vector<2x192xf32>
    %c0_55 = arith.constant 0 : index
    %c0_56 = arith.constant 0 : index
    %108 = vector.load %arg10[%c0_55, %c0_56] : memref<1x192xf32, #tpu.memory_space<vmem>>, vector<1x192xf32>
    %109 = vector.broadcast %108 : vector<1x192xf32> to vector<2x192xf32>
    %110 = arith.addf %107, %109 : vector<2x192xf32>
    %111 = arith.index_cast %c1_i32 : i32 to index
    %c0_57 = arith.constant 0 : index
    %c0_58 = arith.constant 0 : index
    %112 = vector.load %arg15[%111, %c0_57, %c0_58] : memref<4x2x96xf32, #tpu.memory_space<vmem>>, vector<1x2x96xf32>
    %113 = vector.shape_cast %112 : vector<1x2x96xf32> to vector<2x96xf32>
    %c3_i32_59 = arith.constant 3 : i32
    %114 = arith.subi %c3_i32_59, %c1_i32 : i32
    %115 = arith.index_cast %114 : i32 to index
    %c0_60 = arith.constant 0 : index
    %c0_61 = arith.constant 0 : index
    %116 = vector.load %arg16[%115, %c0_60, %c0_61] : memref<4x2x96xf32, #tpu.memory_space<vmem>>, vector<1x2x96xf32>
    %117 = vector.shape_cast %116 : vector<1x2x96xf32> to vector<2x96xf32>
    %118 = vector.extract_strided_slice %113 {offsets = [0, 0], sizes = [2, 64], strides = [1, 1]} : vector<2x96xf32> to vector<2x64xf32>
    %119 = vector.extract_strided_slice %110 {offsets = [0, 0], sizes = [2, 64], strides = [1, 1]} : vector<2x192xf32> to vector<2x64xf32>
    %120 = arith.addf %118, %119 : vector<2x64xf32>
    %121 = arith.negf %120 : vector<2x64xf32>
    %122 = math.exp %121 : vector<2x64xf32>
    %cst_62 = arith.constant 1.000000e+00 : f32
    %123 = vector.broadcast %cst_62 : f32 to vector<2x64xf32>
    %124 = arith.addf %123, %122 : vector<2x64xf32>
    %125 = arith.divf %123, %124 : vector<2x64xf32>
    %126 = vector.extract_strided_slice %117 {offsets = [0, 0], sizes = [2, 64], strides = [1, 1]} : vector<2x96xf32> to vector<2x64xf32>
    %127 = vector.extract_strided_slice %110 {offsets = [0, 96], sizes = [2, 64], strides = [1, 1]} : vector<2x192xf32> to vector<2x64xf32>
    %128 = arith.addf %126, %127 : vector<2x64xf32>
    %129 = arith.negf %128 : vector<2x64xf32>
    %130 = math.exp %129 : vector<2x64xf32>
    %cst_63 = arith.constant 1.000000e+00 : f32
    %131 = vector.broadcast %cst_63 : f32 to vector<2x64xf32>
    %132 = arith.addf %131, %130 : vector<2x64xf32>
    %133 = arith.divf %131, %132 : vector<2x64xf32>
    %134 = vector.extract_strided_slice %113 {offsets = [0, 64], sizes = [2, 32], strides = [1, 1]} : vector<2x96xf32> to vector<2x32xf32>
    %135 = vector.extract_strided_slice %125 {offsets = [0, 0], sizes = [2, 32], strides = [1, 1]} : vector<2x64xf32> to vector<2x32xf32>
    %136 = vector.extract_strided_slice %110 {offsets = [0, 64], sizes = [2, 32], strides = [1, 1]} : vector<2x192xf32> to vector<2x32xf32>
    %137 = arith.mulf %135, %136 : vector<2x32xf32>
    %138 = arith.addf %134, %137 : vector<2x32xf32>
    %139 = math.tanh %138 : vector<2x32xf32>
    %140 = vector.extract_strided_slice %117 {offsets = [0, 64], sizes = [2, 32], strides = [1, 1]} : vector<2x96xf32> to vector<2x32xf32>
    %141 = vector.extract_strided_slice %133 {offsets = [0, 0], sizes = [2, 32], strides = [1, 1]} : vector<2x64xf32> to vector<2x32xf32>
    %142 = vector.extract_strided_slice %110 {offsets = [0, 160], sizes = [2, 32], strides = [1, 1]} : vector<2x192xf32> to vector<2x32xf32>
    %143 = arith.mulf %141, %142 : vector<2x32xf32>
    %144 = arith.addf %140, %143 : vector<2x32xf32>
    %145 = math.tanh %144 : vector<2x32xf32>
    %146 = vector.extract_strided_slice %125 {offsets = [0, 32], sizes = [2, 32], strides = [1, 1]} : vector<2x64xf32> to vector<2x32xf32>
    %147 = vector.extract_strided_slice %133 {offsets = [0, 32], sizes = [2, 32], strides = [1, 1]} : vector<2x64xf32> to vector<2x32xf32>
    %cst_64 = arith.constant 1.000000e+00 : f32
    %148 = vector.broadcast %cst_64 : f32 to vector<2x32xf32>
    %149 = arith.subf %148, %146 : vector<2x32xf32>
    %150 = arith.mulf %149, %139 : vector<2x32xf32>
    %151 = vector.extract_strided_slice %104 {offsets = [0, 0], sizes = [2, 32], strides = [1, 1]} : vector<2x64xf32> to vector<2x32xf32>
    %152 = arith.mulf %146, %151 : vector<2x32xf32>
    %153 = arith.addf %150, %152 : vector<2x32xf32>
    %cst_65 = arith.constant 1.000000e+00 : f32
    %154 = vector.broadcast %cst_65 : f32 to vector<2x32xf32>
    %155 = arith.subf %154, %147 : vector<2x32xf32>
    %156 = arith.mulf %155, %145 : vector<2x32xf32>
    %157 = vector.extract_strided_slice %104 {offsets = [0, 32], sizes = [2, 32], strides = [1, 1]} : vector<2x64xf32> to vector<2x32xf32>
    %158 = arith.mulf %147, %157 : vector<2x32xf32>
    %159 = arith.addf %156, %158 : vector<2x32xf32>
    %160 = tpu.concatenate %153, %159 in 1 : vector<2x32xf32>, vector<2x32xf32> -> vector<2x64xf32>
    %c0_66 = arith.constant 0 : index
    %c0_67 = arith.constant 0 : index
    %161 = vector.load %arg14[%c0_66, %c0_67] : memref<2x64xf32, #tpu.memory_space<vmem>>, vector<2x64xf32>
    tpu.vector_store %arg14[%c0_66, %c0_67], %160 {strides = array<i32>} : memref<2x64xf32, #tpu.memory_space<vmem>>, vector<2x64xf32>,
    %162 = arith.index_cast %c1_i32 : i32 to index
    %c0_68 = arith.constant 0 : index
    %c0_69 = arith.constant 0 : index
    %163 = vector.load %arg11[%162, %c0_68, %c0_69] : memref<4x2x32xf32, #tpu.memory_space<vmem>>, vector<1x2x32xf32>
    %164 = vector.shape_cast %163 : vector<1x2x32xf32> to vector<2x32xf32>
    %165 = vector.shape_cast %153 : vector<2x32xf32> to vector<1x2x32xf32>
    tpu.vector_store %arg11[%162, %c0_68, %c0_69], %165 {strides = array<i32>} : memref<4x2x32xf32, #tpu.memory_space<vmem>>, vector<1x2x32xf32>,
    %c3_i32_70 = arith.constant 3 : i32
    %166 = arith.subi %c3_i32_70, %c1_i32 : i32
    %167 = arith.index_cast %166 : i32 to index
    %c0_71 = arith.constant 0 : index
    %c0_72 = arith.constant 0 : index
    %168 = vector.load %arg12[%167, %c0_71, %c0_72] : memref<4x2x32xf32, #tpu.memory_space<vmem>>, vector<1x2x32xf32>
    %169 = vector.shape_cast %168 : vector<1x2x32xf32> to vector<2x32xf32>
    %170 = vector.shape_cast %159 : vector<2x32xf32> to vector<1x2x32xf32>
    tpu.vector_store %arg12[%167, %c0_71, %c0_72], %170 {strides = array<i32>} : memref<4x2x32xf32, #tpu.memory_space<vmem>>, vector<1x2x32xf32>,
    %c2_i32 = arith.constant 2 : i32
    %c0_73 = arith.constant 0 : index
    %c0_74 = arith.constant 0 : index
    %171 = vector.load %arg14[%c0_73, %c0_74] : memref<2x64xf32, #tpu.memory_space<vmem>>, vector<2x64xf32>
    %172 = arith.truncf %171 : vector<2x64xf32> to vector<2x64xbf16>
    %c0_75 = arith.constant 0 : index
    %c0_76 = arith.constant 0 : index
    %173 = vector.load %arg7[%c0_75, %c0_76] : memref<64x192xbf16, #tpu.memory_space<vmem>>, vector<64x192xbf16>
    %cst_77 = arith.constant dense<0.000000e+00> : vector<2x192xf32>
    %174 = tpu.matmul %172, %173, %cst_77 {dimension_numbers = #tpu.dot_dimension_numbers<[1], [0], [0], [1], [0, 0, 1, 1], [], []>} : vector<2x64xbf16>, vector<64x192xbf16>, vector<2x192xf32> -> vector<2x192xf32>
    %c0_78 = arith.constant 0 : index
    %c0_79 = arith.constant 0 : index
    %175 = vector.load %arg10[%c0_78, %c0_79] : memref<1x192xf32, #tpu.memory_space<vmem>>, vector<1x192xf32>
    %176 = vector.broadcast %175 : vector<1x192xf32> to vector<2x192xf32>
    %177 = arith.addf %174, %176 : vector<2x192xf32>
    %178 = arith.index_cast %c2_i32 : i32 to index
    %c0_80 = arith.constant 0 : index
    %c0_81 = arith.constant 0 : index
    %179 = vector.load %arg15[%178, %c0_80, %c0_81] : memref<4x2x96xf32, #tpu.memory_space<vmem>>, vector<1x2x96xf32>
    %180 = vector.shape_cast %179 : vector<1x2x96xf32> to vector<2x96xf32>
    %c3_i32_82 = arith.constant 3 : i32
    %181 = arith.subi %c3_i32_82, %c2_i32 : i32
    %182 = arith.index_cast %181 : i32 to index
    %c0_83 = arith.constant 0 : index
    %c0_84 = arith.constant 0 : index
    %183 = vector.load %arg16[%182, %c0_83, %c0_84] : memref<4x2x96xf32, #tpu.memory_space<vmem>>, vector<1x2x96xf32>
    %184 = vector.shape_cast %183 : vector<1x2x96xf32> to vector<2x96xf32>
    %185 = vector.extract_strided_slice %180 {offsets = [0, 0], sizes = [2, 64], strides = [1, 1]} : vector<2x96xf32> to vector<2x64xf32>
    %186 = vector.extract_strided_slice %177 {offsets = [0, 0], sizes = [2, 64], strides = [1, 1]} : vector<2x192xf32> to vector<2x64xf32>
    %187 = arith.addf %185, %186 : vector<2x64xf32>
    %188 = arith.negf %187 : vector<2x64xf32>
    %189 = math.exp %188 : vector<2x64xf32>
    %cst_85 = arith.constant 1.000000e+00 : f32
    %190 = vector.broadcast %cst_85 : f32 to vector<2x64xf32>
    %191 = arith.addf %190, %189 : vector<2x64xf32>
    %192 = arith.divf %190, %191 : vector<2x64xf32>
    %193 = vector.extract_strided_slice %184 {offsets = [0, 0], sizes = [2, 64], strides = [1, 1]} : vector<2x96xf32> to vector<2x64xf32>
    %194 = vector.extract_strided_slice %177 {offsets = [0, 96], sizes = [2, 64], strides = [1, 1]} : vector<2x192xf32> to vector<2x64xf32>
    %195 = arith.addf %193, %194 : vector<2x64xf32>
    %196 = arith.negf %195 : vector<2x64xf32>
    %197 = math.exp %196 : vector<2x64xf32>
    %cst_86 = arith.constant 1.000000e+00 : f32
    %198 = vector.broadcast %cst_86 : f32 to vector<2x64xf32>
    %199 = arith.addf %198, %197 : vector<2x64xf32>
    %200 = arith.divf %198, %199 : vector<2x64xf32>
    %201 = vector.extract_strided_slice %180 {offsets = [0, 64], sizes = [2, 32], strides = [1, 1]} : vector<2x96xf32> to vector<2x32xf32>
    %202 = vector.extract_strided_slice %192 {offsets = [0, 0], sizes = [2, 32], strides = [1, 1]} : vector<2x64xf32> to vector<2x32xf32>
    %203 = vector.extract_strided_slice %177 {offsets = [0, 64], sizes = [2, 32], strides = [1, 1]} : vector<2x192xf32> to vector<2x32xf32>
    %204 = arith.mulf %202, %203 : vector<2x32xf32>
    %205 = arith.addf %201, %204 : vector<2x32xf32>
    %206 = math.tanh %205 : vector<2x32xf32>
    %207 = vector.extract_strided_slice %184 {offsets = [0, 64], sizes = [2, 32], strides = [1, 1]} : vector<2x96xf32> to vector<2x32xf32>
    %208 = vector.extract_strided_slice %200 {offsets = [0, 0], sizes = [2, 32], strides = [1, 1]} : vector<2x64xf32> to vector<2x32xf32>
    %209 = vector.extract_strided_slice %177 {offsets = [0, 160], sizes = [2, 32], strides = [1, 1]} : vector<2x192xf32> to vector<2x32xf32>
    %210 = arith.mulf %208, %209 : vector<2x32xf32>
    %211 = arith.addf %207, %210 : vector<2x32xf32>
    %212 = math.tanh %211 : vector<2x32xf32>
    %213 = vector.extract_strided_slice %192 {offsets = [0, 32], sizes = [2, 32], strides = [1, 1]} : vector<2x64xf32> to vector<2x32xf32>
    %214 = vector.extract_strided_slice %200 {offsets = [0, 32], sizes = [2, 32], strides = [1, 1]} : vector<2x64xf32> to vector<2x32xf32>
    %cst_87 = arith.constant 1.000000e+00 : f32
    %215 = vector.broadcast %cst_87 : f32 to vector<2x32xf32>
    %216 = arith.subf %215, %213 : vector<2x32xf32>
    %217 = arith.mulf %216, %206 : vector<2x32xf32>
    %218 = vector.extract_strided_slice %171 {offsets = [0, 0], sizes = [2, 32], strides = [1, 1]} : vector<2x64xf32> to vector<2x32xf32>
    %219 = arith.mulf %213, %218 : vector<2x32xf32>
    %220 = arith.addf %217, %219 : vector<2x32xf32>
    %cst_88 = arith.constant 1.000000e+00 : f32
    %221 = vector.broadcast %cst_88 : f32 to vector<2x32xf32>
    %222 = arith.subf %221, %214 : vector<2x32xf32>
    %223 = arith.mulf %222, %212 : vector<2x32xf32>
    %224 = vector.extract_strided_slice %171 {offsets = [0, 32], sizes = [2, 32], strides = [1, 1]} : vector<2x64xf32> to vector<2x32xf32>
    %225 = arith.mulf %214, %224 : vector<2x32xf32>
    %226 = arith.addf %223, %225 : vector<2x32xf32>
    %227 = tpu.concatenate %220, %226 in 1 : vector<2x32xf32>, vector<2x32xf32> -> vector<2x64xf32>
    %c0_89 = arith.constant 0 : index
    %c0_90 = arith.constant 0 : index
    %228 = vector.load %arg14[%c0_89, %c0_90] : memref<2x64xf32, #tpu.memory_space<vmem>>, vector<2x64xf32>
    tpu.vector_store %arg14[%c0_89, %c0_90], %227 {strides = array<i32>} : memref<2x64xf32, #tpu.memory_space<vmem>>, vector<2x64xf32>,
    %229 = arith.index_cast %c2_i32 : i32 to index
    %c0_91 = arith.constant 0 : index
    %c0_92 = arith.constant 0 : index
    %230 = vector.load %arg11[%229, %c0_91, %c0_92] : memref<4x2x32xf32, #tpu.memory_space<vmem>>, vector<1x2x32xf32>
    %231 = vector.shape_cast %230 : vector<1x2x32xf32> to vector<2x32xf32>
    %232 = vector.shape_cast %220 : vector<2x32xf32> to vector<1x2x32xf32>
    tpu.vector_store %arg11[%229, %c0_91, %c0_92], %232 {strides = array<i32>} : memref<4x2x32xf32, #tpu.memory_space<vmem>>, vector<1x2x32xf32>,
    %c3_i32_93 = arith.constant 3 : i32
    %233 = arith.subi %c3_i32_93, %c2_i32 : i32
    %234 = arith.index_cast %233 : i32 to index
    %c0_94 = arith.constant 0 : index
    %c0_95 = arith.constant 0 : index
    %235 = vector.load %arg12[%234, %c0_94, %c0_95] : memref<4x2x32xf32, #tpu.memory_space<vmem>>, vector<1x2x32xf32>
    %236 = vector.shape_cast %235 : vector<1x2x32xf32> to vector<2x32xf32>
    %237 = vector.shape_cast %226 : vector<2x32xf32> to vector<1x2x32xf32>
    tpu.vector_store %arg12[%234, %c0_94, %c0_95], %237 {strides = array<i32>} : memref<4x2x32xf32, #tpu.memory_space<vmem>>, vector<1x2x32xf32>,
    %c3_i32_96 = arith.constant 3 : i32
    %c0_97 = arith.constant 0 : index
    %c0_98 = arith.constant 0 : index
    %238 = vector.load %arg14[%c0_97, %c0_98] : memref<2x64xf32, #tpu.memory_space<vmem>>, vector<2x64xf32>
    %239 = arith.truncf %238 : vector<2x64xf32> to vector<2x64xbf16>
    %c0_99 = arith.constant 0 : index
    %c0_100 = arith.constant 0 : index
    %240 = vector.load %arg7[%c0_99, %c0_100] : memref<64x192xbf16, #tpu.memory_space<vmem>>, vector<64x192xbf16>
    %cst_101 = arith.constant dense<0.000000e+00> : vector<2x192xf32>
    %241 = tpu.matmul %239, %240, %cst_101 {dimension_numbers = #tpu.dot_dimension_numbers<[1], [0], [0], [1], [0, 0, 1, 1], [], []>} : vector<2x64xbf16>, vector<64x192xbf16>, vector<2x192xf32> -> vector<2x192xf32>
    %c0_102 = arith.constant 0 : index
    %c0_103 = arith.constant 0 : index
    %242 = vector.load %arg10[%c0_102, %c0_103] : memref<1x192xf32, #tpu.memory_space<vmem>>, vector<1x192xf32>
    %243 = vector.broadcast %242 : vector<1x192xf32> to vector<2x192xf32>
    %244 = arith.addf %241, %243 : vector<2x192xf32>
    %245 = arith.index_cast %c3_i32_96 : i32 to index
    %c0_104 = arith.constant 0 : index
    %c0_105 = arith.constant 0 : index
    %246 = vector.load %arg15[%245, %c0_104, %c0_105] : memref<4x2x96xf32, #tpu.memory_space<vmem>>, vector<1x2x96xf32>
    %247 = vector.shape_cast %246 : vector<1x2x96xf32> to vector<2x96xf32>
    %c3_i32_106 = arith.constant 3 : i32
    %248 = arith.subi %c3_i32_106, %c3_i32_96 : i32
    %249 = arith.index_cast %248 : i32 to index
    %c0_107 = arith.constant 0 : index
    %c0_108 = arith.constant 0 : index
    %250 = vector.load %arg16[%249, %c0_107, %c0_108] : memref<4x2x96xf32, #tpu.memory_space<vmem>>, vector<1x2x96xf32>
    %251 = vector.shape_cast %250 : vector<1x2x96xf32> to vector<2x96xf32>
    %252 = vector.extract_strided_slice %247 {offsets = [0, 0], sizes = [2, 64], strides = [1, 1]} : vector<2x96xf32> to vector<2x64xf32>
    %253 = vector.extract_strided_slice %244 {offsets = [0, 0], sizes = [2, 64], strides = [1, 1]} : vector<2x192xf32> to vector<2x64xf32>
    %254 = arith.addf %252, %253 : vector<2x64xf32>
    %255 = arith.negf %254 : vector<2x64xf32>
    %256 = math.exp %255 : vector<2x64xf32>
    %cst_109 = arith.constant 1.000000e+00 : f32
    %257 = vector.broadcast %cst_109 : f32 to vector<2x64xf32>
    %258 = arith.addf %257, %256 : vector<2x64xf32>
    %259 = arith.divf %257, %258 : vector<2x64xf32>
    %260 = vector.extract_strided_slice %251 {offsets = [0, 0], sizes = [2, 64], strides = [1, 1]} : vector<2x96xf32> to vector<2x64xf32>
    %261 = vector.extract_strided_slice %244 {offsets = [0, 96], sizes = [2, 64], strides = [1, 1]} : vector<2x192xf32> to vector<2x64xf32>
    %262 = arith.addf %260, %261 : vector<2x64xf32>
    %263 = arith.negf %262 : vector<2x64xf32>
    %264 = math.exp %263 : vector<2x64xf32>
    %cst_110 = arith.constant 1.000000e+00 : f32
    %265 = vector.broadcast %cst_110 : f32 to vector<2x64xf32>
    %266 = arith.addf %265, %264 : vector<2x64xf32>
    %267 = arith.divf %265, %266 : vector<2x64xf32>
    %268 = vector.extract_strided_slice %247 {offsets = [0, 64], sizes = [2, 32], strides = [1, 1]} : vector<2x96xf32> to vector<2x32xf32>
    %269 = vector.extract_strided_slice %259 {offsets = [0, 0], sizes = [2, 32], strides = [1, 1]} : vector<2x64xf32> to vector<2x32xf32>
    %270 = vector.extract_strided_slice %244 {offsets = [0, 64], sizes = [2, 32], strides = [1, 1]} : vector<2x192xf32> to vector<2x32xf32>
    %271 = arith.mulf %269, %270 : vector<2x32xf32>
    %272 = arith.addf %268, %271 : vector<2x32xf32>
    %273 = math.tanh %272 : vector<2x32xf32>
    %274 = vector.extract_strided_slice %251 {offsets = [0, 64], sizes = [2, 32], strides = [1, 1]} : vector<2x96xf32> to vector<2x32xf32>
    %275 = vector.extract_strided_slice %267 {offsets = [0, 0], sizes = [2, 32], strides = [1, 1]} : vector<2x64xf32> to vector<2x32xf32>
    %276 = vector.extract_strided_slice %244 {offsets = [0, 160], sizes = [2, 32], strides = [1, 1]} : vector<2x192xf32> to vector<2x32xf32>
    %277 = arith.mulf %275, %276 : vector<2x32xf32>
    %278 = arith.addf %274, %277 : vector<2x32xf32>
    %279 = math.tanh %278 : vector<2x32xf32>
    %280 = vector.extract_strided_slice %259 {offsets = [0, 32], sizes = [2, 32], strides = [1, 1]} : vector<2x64xf32> to vector<2x32xf32>
    %281 = vector.extract_strided_slice %267 {offsets = [0, 32], sizes = [2, 32], strides = [1, 1]} : vector<2x64xf32> to vector<2x32xf32>
    %cst_111 = arith.constant 1.000000e+00 : f32
    %282 = vector.broadcast %cst_111 : f32 to vector<2x32xf32>
    %283 = arith.subf %282, %280 : vector<2x32xf32>
    %284 = arith.mulf %283, %273 : vector<2x32xf32>
    %285 = vector.extract_strided_slice %238 {offsets = [0, 0], sizes = [2, 32], strides = [1, 1]} : vector<2x64xf32> to vector<2x32xf32>
    %286 = arith.mulf %280, %285 : vector<2x32xf32>
    %287 = arith.addf %284, %286 : vector<2x32xf32>
    %cst_112 = arith.constant 1.000000e+00 : f32
    %288 = vector.broadcast %cst_112 : f32 to vector<2x32xf32>
    %289 = arith.subf %288, %281 : vector<2x32xf32>
    %290 = arith.mulf %289, %279 : vector<2x32xf32>
    %291 = vector.extract_strided_slice %238 {offsets = [0, 32], sizes = [2, 32], strides = [1, 1]} : vector<2x64xf32> to vector<2x32xf32>
    %292 = arith.mulf %281, %291 : vector<2x32xf32>
    %293 = arith.addf %290, %292 : vector<2x32xf32>
    %294 = tpu.concatenate %287, %293 in 1 : vector<2x32xf32>, vector<2x32xf32> -> vector<2x64xf32>
    %c0_113 = arith.constant 0 : index
    %c0_114 = arith.constant 0 : index
    %295 = vector.load %arg14[%c0_113, %c0_114] : memref<2x64xf32, #tpu.memory_space<vmem>>, vector<2x64xf32>
    tpu.vector_store %arg14[%c0_113, %c0_114], %294 {strides = array<i32>} : memref<2x64xf32, #tpu.memory_space<vmem>>, vector<2x64xf32>,
    %296 = arith.index_cast %c3_i32_96 : i32 to index
    %c0_115 = arith.constant 0 : index
    %c0_116 = arith.constant 0 : index
    %297 = vector.load %arg11[%296, %c0_115, %c0_116] : memref<4x2x32xf32, #tpu.memory_space<vmem>>, vector<1x2x32xf32>
    %298 = vector.shape_cast %297 : vector<1x2x32xf32> to vector<2x32xf32>
    %299 = vector.shape_cast %287 : vector<2x32xf32> to vector<1x2x32xf32>
    tpu.vector_store %arg11[%296, %c0_115, %c0_116], %299 {strides = array<i32>} : memref<4x2x32xf32, #tpu.memory_space<vmem>>, vector<1x2x32xf32>,
    %c3_i32_117 = arith.constant 3 : i32
    %300 = arith.subi %c3_i32_117, %c3_i32_96 : i32
    %301 = arith.index_cast %300 : i32 to index
    %c0_118 = arith.constant 0 : index
    %c0_119 = arith.constant 0 : index
    %302 = vector.load %arg12[%301, %c0_118, %c0_119] : memref<4x2x32xf32, #tpu.memory_space<vmem>>, vector<1x2x32xf32>
    %303 = vector.shape_cast %302 : vector<1x2x32xf32> to vector<2x32xf32>
    %304 = vector.shape_cast %293 : vector<2x32xf32> to vector<1x2x32xf32>
    tpu.vector_store %arg12[%301, %c0_118, %c0_119], %304 {strides = array<i32>} : memref<4x2x32xf32, #tpu.memory_space<vmem>>, vector<1x2x32xf32>,
    %c4_i32 = arith.constant 4 : i32
    %c0_120 = arith.constant 0 : index
    %c0_121 = arith.constant 0 : index
    %305 = vector.load %arg14[%c0_120, %c0_121] : memref<2x64xf32, #tpu.memory_space<vmem>>, vector<2x32xf32>
    %c0_122 = arith.constant 0 : index
    %c0_123 = arith.constant 0 : index
    %c0_124 = arith.constant 0 : index
    %306 = vector.load %arg13[%c0_122, %c0_123, %c0_124] : memref<2x2x32xf32, #tpu.memory_space<vmem>>, vector<1x2x32xf32>
    %307 = vector.shape_cast %306 : vector<1x2x32xf32> to vector<2x32xf32>
    %308 = vector.shape_cast %305 : vector<2x32xf32> to vector<1x2x32xf32>
    tpu.vector_store %arg13[%c0_122, %c0_123, %c0_124], %308 {strides = array<i32>} : memref<2x2x32xf32, #tpu.memory_space<vmem>>, vector<1x2x32xf32>,
    %c0_125 = arith.constant 0 : index
    %c32 = arith.constant 32 : index
    %309 = vector.load %arg14[%c0_125, %c32] : memref<2x64xf32, #tpu.memory_space<vmem>>, vector<2x32xf32>
    %c1 = arith.constant 1 : index
    %c0_126 = arith.constant 0 : index
    %c0_127 = arith.constant 0 : index
    %310 = vector.load %arg13[%c1, %c0_126, %c0_127] : memref<2x2x32xf32, #tpu.memory_space<vmem>>, vector<1x2x32xf32>
    %311 = vector.shape_cast %310 : vector<1x2x32xf32> to vector<2x32xf32>
    %312 = vector.shape_cast %309 : vector<2x32xf32> to vector<1x2x32xf32>
    tpu.vector_store %arg13[%c1, %c0_126, %c0_127], %312 {strides = array<i32>} : memref<2x2x32xf32, #tpu.memory_space<vmem>>, vector<1x2x32xf32>,
    return
  }
  func.func @transform_0(%arg0: i32) -> (i32, i32, i32) {
    %c0_i32 = arith.constant 0 : i32
    %c0_i32_0 = arith.constant 0 : i32
    %c0_i32_1 = arith.constant 0 : i32
    return %arg0, %c0_i32, %c0_i32_0 : i32, i32, i32
  }
  func.func @transform_1(%arg0: i32) -> (i32, i32, i32) {
    %c0_i32 = arith.constant 0 : i32
    %0 = arith.subi %c0_i32, %arg0 : i32
    %c0_i32_0 = arith.constant 0 : i32
    %c0_i32_1 = arith.constant 0 : i32
    %c0_i32_2 = arith.constant 0 : i32
    return %0, %c0_i32_0, %c0_i32_1 : i32, i32, i32
  }
  func.func @transform_2(%arg0: i32) -> (i32, i32, i32) {
    %c0_i32 = arith.constant 0 : i32
    %c0_i32_0 = arith.constant 0 : i32
    %c0_i32_1 = arith.constant 0 : i32
    return %arg0, %c0_i32, %c0_i32_0 : i32, i32, i32
  }
  func.func @transform_3(%arg0: i32) -> (i32, i32, i32) {
    %c0_i32 = arith.constant 0 : i32
    %0 = arith.subi %c0_i32, %arg0 : i32
    %c0_i32_0 = arith.constant 0 : i32
    %c0_i32_1 = arith.constant 0 : i32
    %c0_i32_2 = arith.constant 0 : i32
    return %0, %c0_i32_0, %c0_i32_1 : i32, i32, i32
  }
  func.func @transform_4(%arg0: i32) -> (i32, i32) {
    %c0_i32 = arith.constant 0 : i32
    %c0_i32_0 = arith.constant 0 : i32
    %c0_i32_1 = arith.constant 0 : i32
    return %c0_i32, %c0_i32_0 : i32, i32
  }
  func.func @transform_5(%arg0: i32) -> (i32, i32) {
    %c0_i32 = arith.constant 0 : i32
    %c0_i32_0 = arith.constant 0 : i32
    %c0_i32_1 = arith.constant 0 : i32
    return %c0_i32, %c0_i32_0 : i32, i32
  }
  func.func @transform_6(%arg0: i32) -> (i32, i32) {
    %c0_i32 = arith.constant 0 : i32
    %c0_i32_0 = arith.constant 0 : i32
    %c0_i32_1 = arith.constant 0 : i32
    return %c0_i32, %c0_i32_0 : i32, i32
  }
  func.func @transform_7(%arg0: i32) -> (i32, i32) {
    %c0_i32 = arith.constant 0 : i32
    %c0_i32_0 = arith.constant 0 : i32
    %c0_i32_1 = arith.constant 0 : i32
    return %c0_i32, %c0_i32_0 : i32, i32
  }
  func.func @transform_8(%arg0: i32) -> (i32, i32) {
    %c0_i32 = arith.constant 0 : i32
    %c0_i32_0 = arith.constant 0 : i32
    %c0_i32_1 = arith.constant 0 : i32
    return %c0_i32, %c0_i32_0 : i32, i32
  }
  func.func @transform_9(%arg0: i32) -> (i32, i32) {
    %c0_i32 = arith.constant 0 : i32
    %c0_i32_0 = arith.constant 0 : i32
    %c0_i32_1 = arith.constant 0 : i32
    return %c0_i32, %c0_i32_0 : i32, i32
  }
  func.func @transform_10(%arg0: i32) -> (i32, i32, i32) {
    %c0_i32 = arith.constant 0 : i32
    %c0_i32_0 = arith.constant 0 : i32
    %c0_i32_1 = arith.constant 0 : i32
    return %arg0, %c0_i32, %c0_i32_0 : i32, i32, i32
  }
  func.func @transform_11(%arg0: i32) -> (i32, i32, i32) {
    %c0_i32 = arith.constant 0 : i32
    %0 = arith.subi %c0_i32, %arg0 : i32
    %c0_i32_0 = arith.constant 0 : i32
    %c0_i32_1 = arith.constant 0 : i32
    %c0_i32_2 = arith.constant 0 : i32
    return %0, %c0_i32_0, %c0_i32_1 : i32, i32, i32
  }
  func.func @transform_12(%arg0: i32) -> (i32, i32, i32) {
    %c0_i32 = arith.constant 0 : i32
    %c0_i32_0 = arith.constant 0 : i32
    %c0_i32_1 = arith.constant 0 : i32
    %c0_i32_2 = arith.constant 0 : i32
    return %c0_i32, %c0_i32_0, %c0_i32_1 : i32, i32, i32
  }
}

</mosaic_0001>

<llo_original>
// kernel: listen_rnn_forward.5
$region0: #{listen_rnn_forward.5}
  #allocation0 [shape = 'u32[]', space=smem, size = 0x4, offset = 0x4, fixed_abs, tag = 'smem constant byte address 0x4 - core index']
  #allocation1 [shape = 'u32[144,128]{1,0:T(1,128)}', space=vmem, size = 0x12000, scoped, tag = 'internal scratch']
  #allocation2 [shape = 'f32[32,128]{1,0:T(8,128)}', space=vmem, size = 0x4000, scoped, tag = 'scratch operand']
  %s0 = inlined_call_operand.vmem [shape: bf16[512,128], index: 0, kind: input, shape index: {}]
  %s1 = inlined_call_operand.vmem [shape: bf16[32,512], index: 1, kind: input, shape index: {}]
  %s2 = inlined_call_operand.vmem [shape: f32[32,1], index: 2, kind: input, shape index: {}]
  %s3 = inlined_call_operand.vmem [shape: f32[32,128], index: 3, kind: output, shape index: {}]
  %s4 = sld [smem:[#allocation0]]
  $region30: #{listen_rnn_forward.5} parent=0
    _
  %s6 = ssub.s32 1, %s4
  %s7 = scalar_select 0, %s6, %s4
  // Predicated region
  $region2: #{listen_rnn_forward.5} parent=0 // pred_check
    _
  $region3: #{listen_rnn_forward.5} parent=0 // pred_check_branch
    %9 = sbr.rel (0) target = $region5
  $region4: #{listen_rnn_forward.5} parent=0 // pred_region
    _
  $region5: #{listen_rnn_forward.5} parent=0 // pred_fallthru
    _
  // Predicated region
  $region6: #{listen_rnn_forward.5} parent=0 // pred_check
    _
  $region7: #{listen_rnn_forward.5} parent=0 // pred_check_branch
    %11 = sbr.rel (0) target = $region9
  $region8: #{listen_rnn_forward.5} parent=0 // pred_region
    _
  $region9: #{listen_rnn_forward.5} parent=0 // pred_fallthru
    _
  // Predicated region
  $region10: #{listen_rnn_forward.5} parent=0 // pred_check
    _
  $region11: #{listen_rnn_forward.5} parent=0 // pred_check_branch
    %13 = sbr.rel (0) target = $region13
  $region12: #{listen_rnn_forward.5} parent=0 // pred_region
    _
  $region13: #{listen_rnn_forward.5} parent=0 // pred_fallthru
    _
  %p15 = scmp.eq.s32.totalorder 0, 0
  // Predicated region
  $region14: #{listen_rnn_forward.5} parent=0 // pred_check
    %p16 = pneg %p15
  $region15: #{listen_rnn_forward.5} parent=0 // pred_check_branch
    %18 = sbr.rel (%p16) target = $region17
  $region16: #{listen_rnn_forward.5} parent=0 // pred_region
    %19 = vst [vmem:[#allocation2] sm:$0xff] 0.0
    %20 = vst [vmem:[#allocation2 + $0x8] sm:$0xff] 0.0
    %21 = vst [vmem:[#allocation2 + $0x10] sm:$0xff] 0.0
    %22 = vst [vmem:[#allocation2 + $0x18] sm:$0xff] 0.0
  $region17: #{listen_rnn_forward.5} parent=0 // pred_fallthru
    _
  %v23 = vld [vmem:[#allocation2] sm:$0xff]
  %v24 = vld [vmem:[#allocation2 + $0x8] sm:$0xff]
  %v25 = vld [vmem:[#allocation2 + $0x10] sm:$0xff]
  %v26 = vld [vmem:[#allocation2 + $0x18] sm:$0xff]
  %v27 = vld [vmem:[%s1] sm:$0xff]
  %v28 = vld [vmem:[%s1 + $0x8] sm:$0xff]
  %v29 = vld [vmem:[%s1 + $0x10] sm:$0xff]
  %v30 = vld [vmem:[%s1 + $0x18] sm:$0xff]
  %v31 = vld [vmem:[%s1 + $0x20] sm:$0xff]
  %v32 = vld [vmem:[%s1 + $0x28] sm:$0xff]
  %v33 = vld [vmem:[%s1 + $0x30] sm:$0xff]
  %v34 = vld [vmem:[%s1 + $0x38] sm:$0xff]
  %v35 = vld [vmem:[%s0] sm:$0xf]
  %v36 = vld [vmem:[%s0 + $0x4] sm:$0xf]
  %v37 = vld [vmem:[%s0 + $0x8] sm:$0xf]
  %v38 = vld [vmem:[%s0 + $0xc] sm:$0xf]
  %v39 = vld [vmem:[%s0 + $0x10] sm:$0xf]
  %v40 = vld [vmem:[%s0 + $0x14] sm:$0xf]
  %v41 = vld [vmem:[%s0 + $0x18] sm:$0xf]
  %v42 = vld [vmem:[%s0 + $0x1c] sm:$0xf]
  %v43 = vld [vmem:[%s0 + $0x20] sm:$0xf]
  %v44 = vld [vmem:[%s0 + $0x24] sm:$0xf]
  %v45 = vld [vmem:[%s0 + $0x28] sm:$0xf]
  %v46 = vld [vmem:[%s0 + $0x2c] sm:$0xf]
  %v47 = vld [vmem:[%s0 + $0x30] sm:$0xf]
  %v48 = vld [vmem:[%s0 + $0x34] sm:$0xf]
  %v49 = vld [vmem:[%s0 + $0x38] sm:$0xf]
  %v50 = vld [vmem:[%s0 + $0x3c] sm:$0xf]
  %v51 = vld [vmem:[%s0 + $0x40] sm:$0xf]
  %v52 = vld [vmem:[%s0 + $0x44] sm:$0xf]
  %v53 = vld [vmem:[%s0 + $0x48] sm:$0xf]
  %v54 = vld [vmem:[%s0 + $0x4c] sm:$0xf]
  %v55 = vld [vmem:[%s0 + $0x50] sm:$0xf]
  %v56 = vld [vmem:[%s0 + $0x54] sm:$0xf]
  %v57 = vld [vmem:[%s0 + $0x58] sm:$0xf]
  %v58 = vld [vmem:[%s0 + $0x5c] sm:$0xf]
  %v59 = vld [vmem:[%s0 + $0x60] sm:$0xf]
  %v60 = vld [vmem:[%s0 + $0x64] sm:$0xf]
  %v61 = vld [vmem:[%s0 + $0x68] sm:$0xf]
  %v62 = vld [vmem:[%s0 + $0x6c] sm:$0xf]
  %v63 = vld [vmem:[%s0 + $0x70] sm:$0xf]
  %v64 = vld [vmem:[%s0 + $0x74] sm:$0xf]
  %v65 = vld [vmem:[%s0 + $0x78] sm:$0xf]
  %v66 = vld [vmem:[%s0 + $0x7c] sm:$0xf]
  %v67 = vld [vmem:[%s0 + $0x80] sm:$0xf]
  %v68 = vld [vmem:[%s0 + $0x84] sm:$0xf]
  %v69 = vld [vmem:[%s0 + $0x88] sm:$0xf]
  %v70 = vld [vmem:[%s0 + $0x8c] sm:$0xf]
  %v71 = vld [vmem:[%s0 + $0x90] sm:$0xf]
  %v72 = vld [vmem:[%s0 + $0x94] sm:$0xf]
  %v73 = vld [vmem:[%s0 + $0x98] sm:$0xf]
  %v74 = vld [vmem:[%s0 + $0x9c] sm:$0xf]
  %v75 = vld [vmem:[%s0 + $0xa0] sm:$0xf]
  %v76 = vld [vmem:[%s0 + $0xa4] sm:$0xf]
  %v77 = vld [vmem:[%s0 + $0xa8] sm:$0xf]
  %v78 = vld [vmem:[%s0 + $0xac] sm:$0xf]
  %v79 = vld [vmem:[%s0 + $0xb0] sm:$0xf]
  %v80 = vld [vmem:[%s0 + $0xb4] sm:$0xf]
  %v81 = vld [vmem:[%s0 + $0xb8] sm:$0xf]
  %v82 = vld [vmem:[%s0 + $0xbc] sm:$0xf]
  %v83 = vld [vmem:[%s0 + $0xc0] sm:$0xf]
  %v84 = vld [vmem:[%s0 + $0xc4] sm:$0xf]
  %v85 = vld [vmem:[%s0 + $0xc8] sm:$0xf]
  %v86 = vld [vmem:[%s0 + $0xcc] sm:$0xf]
  %v87 = vld [vmem:[%s0 + $0xd0] sm:$0xf]
  %v88 = vld [vmem:[%s0 + $0xd4] sm:$0xf]
  %v89 = vld [vmem:[%s0 + $0xd8] sm:$0xf]
  %v90 = vld [vmem:[%s0 + $0xdc] sm:$0xf]
  %v91 = vld [vmem:[%s0 + $0xe0] sm:$0xf]
  %v92 = vld [vmem:[%s0 + $0xe4] sm:$0xf]
  %v93 = vld [vmem:[%s0 + $0xe8] sm:$0xf]
  %v94 = vld [vmem:[%s0 + $0xec] sm:$0xf]
  %v95 = vld [vmem:[%s0 + $0xf0] sm:$0xf]
  %v96 = vld [vmem:[%s0 + $0xf4] sm:$0xf]
  %v97 = vld [vmem:[%s0 + $0xf8] sm:$0xf]
  %v98 = vld [vmem:[%s0 + $0xfc] sm:$0xf]
  %v107 = vunpack.c.l.b16 %v27
  %v108 = vunpack.c.h.b16 %v27
  %v109 = vunpack.c.l.b16 %v28
  %v110 = vunpack.c.h.b16 %v28
  %v111 = vunpack.c.l.b16 %v29
  %v112 = vunpack.c.h.b16 %v29
  %v113 = vunpack.c.l.b16 %v30
  %v114 = vunpack.c.h.b16 %v30
  %v115 = vunpack.c.l.b16 %v31
  %v116 = vunpack.c.h.b16 %v31
  %v117 = vunpack.c.l.b16 %v32
  %v118 = vunpack.c.h.b16 %v32
  %v119 = vunpack.c.l.b16 %v33
  %v120 = vunpack.c.h.b16 %v33
  %v121 = vunpack.c.l.b16 %v34
  %v122 = vunpack.c.h.b16 %v34
  %v123 = vpack.c.b16 %v111, %v107
  %v124 = vpack.c.b16 %v112, %v108
  %v125 = vpack.c.b16 %v113, %v109
  %v126 = vpack.c.b16 %v114, %v110
  %v127 = vpack.c.b16 %v119, %v115
  %v128 = vpack.c.b16 %v120, %v116
  %v129 = vpack.c.b16 %v121, %v117
  %v130 = vpack.c.b16 %v122, %v118
  %v203 = vunpack.c.l.b16 %v35
  %v204 = vunpack.c.l.b16 %v36
  %v205 = vunpack.c.l.b16 %v37
  %v206 = vunpack.c.l.b16 %v38
  %v207 = vunpack.c.l.b16 %v39
  %v208 = vunpack.c.l.b16 %v40
  %v209 = vunpack.c.l.b16 %v41
  %v210 = vunpack.c.l.b16 %v42
  %v211 = vunpack.c.l.b16 %v43
  %v212 = vunpack.c.l.b16 %v44
  %v213 = vunpack.c.l.b16 %v45
  %v214 = vunpack.c.l.b16 %v46
  %v215 = vunpack.c.l.b16 %v47
  %v216 = vunpack.c.l.b16 %v48
  %v217 = vunpack.c.l.b16 %v49
  %v218 = vunpack.c.l.b16 %v50
  %v219 = vunpack.c.l.b16 %v51
  %v220 = vunpack.c.l.b16 %v52
  %v221 = vunpack.c.l.b16 %v53
  %v222 = vunpack.c.l.b16 %v54
  %v223 = vunpack.c.l.b16 %v55
  %v224 = vunpack.c.l.b16 %v56
  %v225 = vunpack.c.l.b16 %v57
  %v226 = vunpack.c.l.b16 %v58
  %v227 = vunpack.c.l.b16 %v59
  %v228 = vunpack.c.l.b16 %v60
  %v229 = vunpack.c.l.b16 %v61
  %v230 = vunpack.c.l.b16 %v62
  %v231 = vunpack.c.l.b16 %v63
  %v232 = vunpack.c.l.b16 %v64
  %v233 = vunpack.c.l.b16 %v65
  %v234 = vunpack.c.l.b16 %v66
  %v235 = vunpack.c.l.b16 %v67
  %v236 = vunpack.c.l.b16 %v68
  %v237 = vunpack.c.l.b16 %v69
  %v238 = vunpack.c.l.b16 %v70
  %v239 = vunpack.c.l.b16 %v71
  %v240 = vunpack.c.l.b16 %v72
  %v241 = vunpack.c.l.b16 %v73
  %v242 = vunpack.c.l.b16 %v74
  %v243 = vunpack.c.l.b16 %v75
  %v244 = vunpack.c.l.b16 %v76
  %v245 = vunpack.c.l.b16 %v77
  %v246 = vunpack.c.l.b16 %v78
  %v247 = vunpack.c.l.b16 %v79
  %v248 = vunpack.c.l.b16 %v80
  %v249 = vunpack.c.l.b16 %v81
  %v250 = vunpack.c.l.b16 %v82
  %v251 = vunpack.c.l.b16 %v83
  %v252 = vunpack.c.l.b16 %v84
  %v253 = vunpack.c.l.b16 %v85
  %v254 = vunpack.c.l.b16 %v86
  %v255 = vunpack.c.l.b16 %v87
  %v256 = vunpack.c.l.b16 %v88
  %v257 = vunpack.c.l.b16 %v89
  %v258 = vunpack.c.l.b16 %v90
  %v259 = vunpack.c.l.b16 %v91
  %v260 = vunpack.c.l.b16 %v92
  %v261 = vunpack.c.l.b16 %v93
  %v262 = vunpack.c.l.b16 %v94
  %v263 = vunpack.c.l.b16 %v95
  %v264 = vunpack.c.l.b16 %v96
  %v265 = vunpack.c.l.b16 %v97
  %v266 = vunpack.c.l.b16 %v98
  %v267 = vpack.c.b16 %v204, %v203
  %v268 = vpack.c.b16 %v206, %v205
  %v269 = vpack.c.b16 %v208, %v207
  %v270 = vpack.c.b16 %v210, %v209
  %v271 = vpack.c.b16 %v212, %v211
  %v272 = vpack.c.b16 %v214, %v213
  %v273 = vpack.c.b16 %v216, %v215
  %v274 = vpack.c.b16 %v218, %v217
  %v275 = vpack.c.b16 %v220, %v219
  %v276 = vpack.c.b16 %v222, %v221
  %v277 = vpack.c.b16 %v224, %v223
  %v278 = vpack.c.b16 %v226, %v225
  %v279 = vpack.c.b16 %v228, %v227
  %v280 = vpack.c.b16 %v230, %v229
  %v281 = vpack.c.b16 %v232, %v231
  %v282 = vpack.c.b16 %v234, %v233
  %v283 = vpack.c.b16 %v236, %v235
  %v284 = vpack.c.b16 %v238, %v237
  %v285 = vpack.c.b16 %v240, %v239
  %v286 = vpack.c.b16 %v242, %v241
  %v287 = vpack.c.b16 %v244, %v243
  %v288 = vpack.c.b16 %v246, %v245
  %v289 = vpack.c.b16 %v248, %v247
  %v290 = vpack.c.b16 %v250, %v249
  %v291 = vpack.c.b16 %v252, %v251
  %v292 = vpack.c.b16 %v254, %v253
  %v293 = vpack.c.b16 %v256, %v255
  %v294 = vpack.c.b16 %v258, %v257
  %v295 = vpack.c.b16 %v260, %v259
  %v296 = vpack.c.b16 %v262, %v261
  %v297 = vpack.c.b16 %v264, %v263
  %v298 = vpack.c.b16 %v266, %v265
  %331 = vmatprep.subr.bf16.mxu0 0
  %332 = vmatpush1.bf16.msra.mxu0 %v267
  %333 = vmatprep.subr.bf16.mxu0 0
  %334 = vmatpush1.bf16.msra.mxu0 %v268
  %335 = vmatprep.subr.bf16.mxu0 0
  %336 = vmatpush1.bf16.msra.mxu0 %v269
  %337 = vmatprep.subr.bf16.mxu0 0
  %338 = vmatpush1.bf16.msra.mxu0 %v270
  %339 = vmatprep.subr.bf16.mxu0 0
  %340 = vmatpush1.bf16.msra.mxu0 %v271
  %341 = vmatprep.subr.bf16.mxu0 0
  %342 = vmatpush1.bf16.msra.mxu0 %v272
  %343 = vmatprep.subr.bf16.mxu0 0
  %344 = vmatpush1.bf16.msra.mxu0 %v273
  %345 = vmatprep.subr.bf16.mxu0 0
  %346 = vmatpush1.bf16.msra.mxu0 %v274
  %347 = vmatprep.subr.bf16.mxu0 0
  %348 = vmatpush1.bf16.msra.mxu0 %v275
  %349 = vmatprep.subr.bf16.mxu0 0
  %350 = vmatpush1.bf16.msra.mxu0 %v276
  %351 = vmatprep.subr.bf16.mxu0 0
  %352 = vmatpush1.bf16.msra.mxu0 %v277
  %353 = vmatprep.subr.bf16.mxu0 0
  %354 = vmatpush1.bf16.msra.mxu0 %v278
  %355 = vmatprep.subr.bf16.mxu0 0
  %356 = vmatpush1.bf16.msra.mxu0 %v279
  %357 = vmatprep.subr.bf16.mxu0 0
  %358 = vmatpush1.bf16.msra.mxu0 %v280
  %359 = vmatprep.subr.bf16.mxu0 0
  %360 = vmatpush1.bf16.msra.mxu0 %v281
  %361 = vmatprep.subr.bf16.mxu0 0
  %362 = vmatpush1.bf16.msra.mxu0 %v282
  %363 = vmatprep.mubr.bf16.mxu0 %v124
  %364 = vmatmul.mubr.bf16.gmra.mrb[0].mxu0 %v123
  %v365 = vpop.f32.mrb[0].mxu0
  %v366 = vadd.f32 0.0, %v365
  %v367 = vpop.f32.mrb[0].mxu0
  %v368 = vpop.f32.mrb[0].mxu0
  %v369 = vadd.f32 0.0, %v368
  %v370 = vpop.f32.mrb[0].mxu0
  %371 = vmatprep.mubr.bf16.mxu0 %v128
  %372 = vmatmul.mubr.bf16.gmra.mrb[0].mxu0 %v127
  %v373 = vpop.f32.mrb[0].mxu0
  %v374 = vadd.f32 0.0, %v373
  %v375 = vpop.f32.mrb[0].mxu0
  %v376 = vpop.f32.mrb[0].mxu0
  %v377 = vadd.f32 0.0, %v376
  %v378 = vpop.f32.mrb[0].mxu0
  %379 = vdwg.mxu0
  %380 = vmatprep.subr.bf16.mxu0 0
  %381 = vmatpush1.bf16.msra.mxu0 %v283
  %382 = vmatprep.subr.bf16.mxu0 0
  %383 = vmatpush1.bf16.msra.mxu0 %v284
  %384 = vmatprep.subr.bf16.mxu0 0
  %385 = vmatpush1.bf16.msra.mxu0 %v285
  %386 = vmatprep.subr.bf16.mxu0 0
  %387 = vmatpush1.bf16.msra.mxu0 %v286
  %388 = vmatprep.subr.bf16.mxu0 0
  %389 = vmatpush1.bf16.msra.mxu0 %v287
  %390 = vmatprep.subr.bf16.mxu0 0
  %391 = vmatpush1.bf16.msra.mxu0 %v288
  %392 = vmatprep.subr.bf16.mxu0 0
  %393 = vmatpush1.bf16.msra.mxu0 %v289
  %394 = vmatprep.subr.bf16.mxu0 0
  %395 = vmatpush1.bf16.msra.mxu0 %v290
  %396 = vmatprep.subr.bf16.mxu0 0
  %397 = vmatpush1.bf16.msra.mxu0 %v291
  %398 = vmatprep.subr.bf16.mxu0 0
  %399 = vmatpush1.bf16.msra.mxu0 %v292
  %400 = vmatprep.subr.bf16.mxu0 0
  %401 = vmatpush1.bf16.msra.mxu0 %v293
  %402 = vmatprep.subr.bf16.mxu0 0
  %403 = vmatpush1.bf16.msra.mxu0 %v294
  %404 = vmatprep.subr.bf16.mxu0 0
  %405 = vmatpush1.bf16.msra.mxu0 %v295
  %406 = vmatprep.subr.bf16.mxu0 0
  %407 = vmatpush1.bf16.msra.mxu0 %v296
  %408 = vmatprep.subr.bf16.mxu0 0
  %409 = vmatpush1.bf16.msra.mxu0 %v297
  %410 = vmatprep.subr.bf16.mxu0 0
  %411 = vmatpush1.bf16.msra.mxu0 %v298
  %412 = vmatprep.mubr.bf16.mxu0 %v126
  %413 = vmatmul.mubr.bf16.gmra.mrb[0].mxu0 %v125
  %v414 = vpop.f32.mrb[0].mxu0
  %v415 = vadd.f32 %v366, %v414
  %v416 = vpop.f32.mrb[0].mxu0
  %v417 = vpop.f32.mrb[0].mxu0
  %v418 = vadd.f32 %v369, %v417
  %v419 = vpop.f32.mrb[0].mxu0
  %420 = vmatprep.mubr.bf16.mxu0 %v130
  %421 = vmatmul.mubr.bf16.gmra.mrb[0].mxu0 %v129
  %v422 = vpop.f32.mrb[0].mxu0
  %v423 = vadd.f32 %v374, %v422
  %v424 = vpop.f32.mrb[0].mxu0
  %v425 = vpop.f32.mrb[0].mxu0
  %v426 = vadd.f32 %v377, %v425
  %v427 = vpop.f32.mrb[0].mxu0
  %428 = vdwg.mxu0
  %v429 = vadd.f32 %v23, %v415
  %v430 = vadd.f32 %v24, %v418
  %v431 = vadd.f32 %v25, %v423
  %v432 = vadd.f32 %v26, %v426
  %433 = vst [vmem:[#allocation2] sm:$0xff] %v429
  %434 = vst [vmem:[#allocation2 + $0x8] sm:$0xff] %v430
  %435 = vst [vmem:[#allocation2 + $0x10] sm:$0xff] %v431
  %436 = vst [vmem:[#allocation2 + $0x18] sm:$0xff] %v432
  // Predicated region
  $region18: #{listen_rnn_forward.5} parent=0 // pred_check
    %p437 = pneg %p15
  $region19: #{listen_rnn_forward.5} parent=0 // pred_check_branch
    %439 = sbr.rel (%p437) target = $region21
  $region20: #{listen_rnn_forward.5} parent=0 // pred_region
    %v440 = vld [vmem:[#allocation2] sm:$0xff]
    %v441 = vld [vmem:[#allocation2 + $0x8] sm:$0xff]
    %v442 = vld [vmem:[#allocation2 + $0x10] sm:$0xff]
    %v443 = vld [vmem:[#allocation2 + $0x18] sm:$0xff]
    %v444 = vld [vmem:[%s2] sm:$0xff]
    %v445 = vld [vmem:[%s2 + $0x8] sm:$0xff]
    %v446 = vld [vmem:[%s2 + $0x10] sm:$0xff]
    %v447 = vld [vmem:[%s2 + $0x18] sm:$0xff]
    %449 = vset.pattern.permute.xlu0 0
    %450 = vperm.xlu0 %449, %v444
    %v451 = vpop.permute.xlu0 %450
    %454 = vset.pattern.permute.xlu0 0
    %455 = vperm.xlu0 %454, %v445
    %v456 = vpop.permute.xlu0 %455
    %459 = vset.pattern.permute.xlu0 0
    %460 = vperm.xlu0 %459, %v446
    %v461 = vpop.permute.xlu0 %460
    %464 = vset.pattern.permute.xlu0 0
    %465 = vperm.xlu0 %464, %v447
    %v466 = vpop.permute.xlu0 %465
    %v468 = vadd.f32 %v440, %v451
    %v469 = vadd.f32 %v441, %v456
    %v470 = vadd.f32 %v442, %v461
    %v471 = vadd.f32 %v443, %v466
    %v472 = vmax.f32 %v468, 0.0
    %v473 = vmax.f32 %v469, 0.0
    %v474 = vmax.f32 %v470, 0.0
    %v475 = vmax.f32 %v471, 0.0
    %v476 = vmin.f32 %v472, 20.0
    %v477 = vmin.f32 %v473, 20.0
    %v478 = vmin.f32 %v474, 20.0
    %v479 = vmin.f32 %v475, 20.0
    %480 = vst [vmem:[%s3] sm:$0xff] %v476
    %481 = vst [vmem:[%s3 + $0x8] sm:$0xff] %v477
    %482 = vst [vmem:[%s3 + $0x10] sm:$0xff] %v478
    %483 = vst [vmem:[%s3 + $0x18] sm:$0xff] %v479
  $region21: #{listen_rnn_forward.5} parent=0 // pred_fallthru
    _
  // Predicated region
  $region22: #{listen_rnn_forward.5} parent=0 // pred_check
    _
  $region23: #{listen_rnn_forward.5} parent=0 // pred_check_branch
    %485 = sbr.rel (0) target = $region25
  $region24: #{listen_rnn_forward.5} parent=0 // pred_region
    _
  $region25: #{listen_rnn_forward.5} parent=0 // pred_fallthru
    _
  // Predicated region
  $region26: #{listen_rnn_forward.5} parent=0 // pred_check
    _
  $region27: #{listen_rnn_forward.5} parent=0 // pred_check_branch
    %487 = sbr.rel (0) target = $region29
  $region28: #{listen_rnn_forward.5} parent=0 // pred_region
    _
  $region29: #{listen_rnn_forward.5} parent=0 // pred_fallthru
    _

// kernel: listen_rnn_forward.6
$region0: #{listen_rnn_forward.6}
  #allocation0 [shape = 'u32[]', space=smem, size = 0x4, offset = 0x4, fixed_abs, tag = 'smem constant byte address 0x4 - core index']
  #allocation1 [shape = 'u32[144,128]{1,0:T(1,128)}', space=vmem, size = 0x12000, scoped, tag = 'internal scratch']
  #allocation2 [shape = 'f32[32,128]{1,0:T(8,128)}', space=vmem, size = 0x4000, scoped, tag = 'scratch operand']
  %s0 = inlined_call_operand.vmem [shape: bf16[7680,128], index: 0, kind: input, shape index: {}]
  %s1 = inlined_call_operand.vmem [shape: bf16[32,7680], index: 1, kind: input, shape index: {}]
  %s2 = inlined_call_operand.vmem [shape: f32[32,1], index: 2, kind: input, shape index: {}]
  %s3 = inlined_call_operand.vmem [shape: f32[32,128], index: 3, kind: output, shape index: {}]
  %s4 = sld [smem:[#allocation0]]
  $region76: #{listen_rnn_forward.6} parent=0
    _
  %s6 = ssub.s32 1, %s4
  %s7 = scalar_select 0, %s6, %s4
  $region1: #{listen_rnn_forward.6} parent=0
    #allocation3 [shape = 'u8[65536]{0}', space=vmem, size = 0x10000, scoped, tag = 'input window, operand 1']
    loop: start=0, step=1, limit=17
    $region2: #{listen_rnn_forward.6} parent=1 // loop_pre_header
      _
    $region3: #{listen_rnn_forward.6} parent=1 // loop_header
      %s9 = sphi 0, %s13
      %p10 = scmp.ge.s32.totalorder %s9, 17
      %s16 = sphi 0, %s28
      %s17 = sphi 0, %s24
      %s18 = sphi 0, %s16
      %s19 = sphi 0, %s17
      %s20 = sphi 0, %s18
      %s21 = sphi 0, %s19
      %s33 = sphi 0, %s35
      %s36 = sphi 0, %s33
      %s37 = sphi 0, %s36
      %s53 = sphi 0, %s37
      %s59 = sphi 0, %s61
      %s62 = sphi 0, %s59
      %s63 = sphi 0, %s62
      %s79 = sphi 0, %s63
      %s83 = sphi 0, %s83
      %s85 = sphi 0, %s83
      %s86 = sphi 0, %s85
      %s100 = sphi 0, %s86
      %s106 = sphi 0, %s108
      %s109 = sphi 0, %s106
      %s110 = sphi 0, %s109
      %s126 = sphi 0, %s110
    $region4: #{listen_rnn_forward.6} parent=1 // loop_header_branch
      %12 = sbr.rel (%p10) target = $region8
    $region5: #{listen_rnn_forward.6} parent=1 // loop_body
      %s14 = ssub.s32 %s9, 1
      %s15 = ssub.s32 %s9, 2
      %s22 = sadd.s32 1, %s17
      %p23 = scmp.ge.s32.totalorder %s22, 15
      %s24 = scalar_select %p23, 0, %s22
      %s25 = sadd.s32 1, %s16
      %s26 = scalar_select %p23, %s25, %s16
      %p27 = scmp.ge.s32.totalorder %s26, 1
      %s28 = scalar_select %p27, 0, %s26
      %s29 = ssub.s32 %s17, %s24
      %s30 = ssub.s32 %s16, %s28
      %s31 = sor.u32 %s29, %s30
      %p32 = scmp.eq.s32.totalorder %s31, 0
      %s34 = sadd.s32 %s33, 1
      %s35 = scalar_select %p32, %s33, %s34
      %p38 = pneg %p32
      %p39 = scmp.eq.s32.totalorder %s9, 14
      %p40 = por %p38, %p39
      %p41 = scmp.ne.s32.totalorder %s33, %s36
      %p42 = scmp.eq.s32.totalorder %s9, 0
      %p43 = por %p41, %p42
      %p44 = scmp.ne.s32.totalorder %s33, %s36
      %p45 = scmp.eq.s32.totalorder %s14, 14
      %p46 = por %p44, %p45
      %p47 = scmp.ne.s32.totalorder %s36, %s37
      %p48 = scmp.eq.s32.totalorder %s14, 0
      %p49 = por %p47, %p48
      %p50 = scmp.ne.s32.totalorder %s36, %s37
      %p51 = scmp.eq.s32.totalorder %s15, 14
      %p52 = por %p50, %p51
      %p54 = scmp.ne.s32.totalorder %s37, %s53
      %p55 = scmp.eq.s32.totalorder %s15, 0
      %p56 = por %p54, %p55
      %s57 = ssub.s32 %s17, %s24
      %p58 = scmp.eq.s32.totalorder %s57, 0
      %s60 = sadd.s32 %s59, 1
      %s61 = scalar_select %p58, %s59, %s60
      %p64 = pneg %p58
      %p65 = scmp.eq.s32.totalorder %s9, 14
      %p66 = por %p64, %p65
      %p67 = scmp.ne.s32.totalorder %s59, %s62
      %p68 = scmp.eq.s32.totalorder %s9, 0
      %p69 = por %p67, %p68
      %p70 = scmp.ne.s32.totalorder %s59, %s62
      %p71 = scmp.eq.s32.totalorder %s14, 14
      %p72 = por %p70, %p71
      %p73 = scmp.ne.s32.totalorder %s62, %s63
      %p74 = scmp.eq.s32.totalorder %s14, 0
      %p75 = por %p73, %p74
      %p76 = scmp.ne.s32.totalorder %s62, %s63
      %p77 = scmp.eq.s32.totalorder %s15, 14
      %p78 = por %p76, %p77
      %p80 = scmp.ne.s32.totalorder %s63, %s79
      %p81 = scmp.eq.s32.totalorder %s15, 0
      %p82 = por %p80, %p81
      %s84 = sadd.s32 %s83, 1
      %p87 = scmp.eq.s32.totalorder %s9, 14
      %p88 = scmp.ne.s32.totalorder %s83, %s85
      %p89 = scmp.eq.s32.totalorder %s9, 0
      %p90 = por %p88, %p89
      %p91 = scmp.ne.s32.totalorder %s83, %s85
      %p92 = scmp.eq.s32.totalorder %s14, 14
      %p93 = por %p91, %p92
      %p94 = scmp.ne.s32.totalorder %s85, %s86
      %p95 = scmp.eq.s32.totalorder %s14, 0
      %p96 = por %p94, %p95
      %p97 = scmp.ne.s32.totalorder %s85, %s86
      %p98 = scmp.eq.s32.totalorder %s15, 14
      %p99 = por %p97, %p98
      %p101 = scmp.ne.s32.totalorder %s86, %s100
      %p102 = scmp.eq.s32.totalorder %s15, 0
      %p103 = por %p101, %p102
      %s104 = ssub.s32 %s16, %s28
      %p105 = scmp.eq.s32.totalorder %s104, 0
      %s107 = sadd.s32 %s106, 1
      %s108 = scalar_select %p105, %s106, %s107
      %p111 = pneg %p105
      %p112 = scmp.eq.s32.totalorder %s9, 14
      %p113 = por %p111, %p112
      %p114 = scmp.ne.s32.totalorder %s106, %s109
      %p115 = scmp.eq.s32.totalorder %s9, 0
      %p116 = por %p114, %p115
      %p117 = scmp.ne.s32.totalorder %s106, %s109
      %p118 = scmp.eq.s32.totalorder %s14, 14
      %p119 = por %p117, %p118
      %p120 = scmp.ne.s32.totalorder %s109, %s110
      %p121 = scmp.eq.s32.totalorder %s14, 0
      %p122 = por %p120, %p121
      %p123 = scmp.ne.s32.totalorder %s109, %s110
      %p124 = scmp.eq.s32.totalorder %s15, 14
      %p125 = por %p123, %p124
      %p127 = scmp.ne.s32.totalorder %s110, %s126
      %p128 = scmp.eq.s32.totalorder %s15, 0
      %p129 = por %p127, %p128
      %p130 = scmp.le.s32.totalorder 1, %s9
      %p131 = scmp.lt.s32.totalorder %s9, 16
      %p132 = pnand %p130, %p131
      %p133 = pneg %p132
      // Predicated region
      $region9: #{listen_rnn_forward.6} parent=5 // pred_check
        _
      $region10: #{listen_rnn_forward.6} parent=5 // pred_check_branch
        %135 = sbr.rel (%p132) target = $region12
      $region11: #{listen_rnn_forward.6} parent=5 // pred_region
        %s136 = ssub.s32 %s9, 1
        // Predicated region
        $region13: #{listen_rnn_forward.6} parent=11 // pred_check
          %p137 = pneg %p96
        $region14: #{listen_rnn_forward.6} parent=11 // pred_check_branch
          %139 = sbr.rel (%p137) target = $region16
        $region15: #{listen_rnn_forward.6} parent=11 // pred_region
          _
        $region16: #{listen_rnn_forward.6} parent=11 // pred_fallthru
          _
      $region12: #{listen_rnn_forward.6} parent=5 // pred_fallthru
        _
      %p140 = scmp.lt.s32.totalorder %s9, 15
      // Predicated region
      $region17: #{listen_rnn_forward.6} parent=5 // pred_check
        %p141 = pneg %p140
      $region18: #{listen_rnn_forward.6} parent=5 // pred_check_branch
        %143 = sbr.rel (%p141) target = $region20
      $region19: #{listen_rnn_forward.6} parent=5 // pred_region
        // Predicated region
        $region21: #{listen_rnn_forward.6} parent=19 // pred_check
          %p144 = pneg %p43
        $region22: #{listen_rnn_forward.6} parent=19 // pred_check_branch
          %146 = sbr.rel (%p144) target = $region24
        $region23: #{listen_rnn_forward.6} parent=19 // pred_region
          %s147 = smul.u32 64, %s17
          %p148 = scmp.lt.s32.totalorder %s147, 959
          %s149 = scalar_select %p148, %s147, 959
          %p150 = scmp.lt.s32.totalorder %s16, 0
          %s151 = scalar_select %p150, %s16, 0
          %s152 = sadd.s32 %s151, %s149
          %s153 = smul.addr %s152, 4
          %s154 = scalar_lea.vmem %s0, %s153
          %s155 = smul.u32 64, %s17
        $region24: #{listen_rnn_forward.6} parent=19 // pred_fallthru
          _
        // Predicated region
        $region25: #{listen_rnn_forward.6} parent=19 // pred_check
          %p156 = pneg %p69
        $region26: #{listen_rnn_forward.6} parent=19 // pred_check_branch
          %158 = sbr.rel (%p156) target = $region28
        $region27: #{listen_rnn_forward.6} parent=19 // pred_region
          %s159 = sand.u32 %s59, 1
          %s160 = sand.u32 %s59, 1
          %s161 = smul.addr %s160, 64
          %s162 = scalar_lea.vmem [#allocation3], %s161
          %s163 = smul.u32 4, %s17
          %s164 = smul.addr %s163, 4
          %s165 = scalar_lea.vmem %s1, %s164
          // Predicated region
          $region29: #{listen_rnn_forward.6} parent=27 // pred_check
            _
          $region30: #{listen_rnn_forward.6} parent=27 // pred_check_branch
            %167 = sbr.rel (0) target = $region32
          $region31: #{listen_rnn_forward.6} parent=27 // pred_region
            // Predicated region
            $region33: #{listen_rnn_forward.6} parent=31 // pred_check
              _
            $region34: #{listen_rnn_forward.6} parent=31 // pred_check_branch
              %169 = sbr.rel (0) target = $region36
            $region35: #{listen_rnn_forward.6} parent=31 // pred_region
              loop: start=0, step=1, limit=1
              $region37: #{listen_rnn_forward.6} parent=35 // loop_pre_header
                _
              $region38: #{listen_rnn_forward.6} parent=35 // loop_header
                %s171 = sphi 0, %s175
                %p172 = scmp.ge.s32.totalorder %s171, 1
                %s176 = sphi %s165, %s165
                %s177 = sphi %s162, %s162
              $region39: #{listen_rnn_forward.6} parent=35 // loop_header_branch
                %174 = sbr.rel (%p172) target = $region43
              $region40: #{listen_rnn_forward.6} parent=35 // loop_body
                %v178 = vld [vmem:[%s176] sm:$0xff]
                %179 = vst [vmem:[%s177] sm:$0xff] %v178
                %v180 = vld [vmem:[%s176 + $0x8] sm:$0xff]
                %181 = vst [vmem:[%s177 + $0x8] sm:$0xff] %v180
                %v182 = vld [vmem:[%s176 + $0xf0] sm:$0xff]
                %183 = vst [vmem:[%s177 + $0x10] sm:$0xff] %v182
                %v184 = vld [vmem:[%s176 + $0xf8] sm:$0xff]
                %185 = vst [vmem:[%s177 + $0x18] sm:$0xff] %v184
                %v186 = vld [vmem:[%s176 + $0x1e0] sm:$0xff]
                %187 = vst [vmem:[%s177 + $0x20] sm:$0xff] %v186
                %v188 = vld [vmem:[%s176 + $0x1e8] sm:$0xff]
                %189 = vst [vmem:[%s177 + $0x28] sm:$0xff] %v188
                %v190 = vld [vmem:[%s176 + $0x2d0] sm:$0xff]
                %191 = vst [vmem:[%s177 + $0x30] sm:$0xff] %v190
                %v192 = vld [vmem:[%s176 + $0x2d8] sm:$0xff]
                %193 = vst [vmem:[%s177 + $0x38] sm:$0xff] %v192
              $region41: #{listen_rnn_forward.6} parent=35 // loop_footer
                %s175 = sadd.s32 1, %s171
              $region42: #{listen_rnn_forward.6} parent=35 // loop_footer_branch
                %170 = sbr.rel target = $region38
              $region43: #{listen_rnn_forward.6} parent=35 // loop_exit
                _
            $region36: #{listen_rnn_forward.6} parent=31 // pred_fallthru
              _
            // Predicated region
            $region44: #{listen_rnn_forward.6} parent=31 // pred_check
              _
            $region45: #{listen_rnn_forward.6} parent=31 // pred_check_branch
              %195 = sbr.rel target = $region47
            $region46: #{listen_rnn_forward.6} parent=31 // pred_region
              _
            $region47: #{listen_rnn_forward.6} parent=31 // pred_fallthru
              _
          $region32: #{listen_rnn_forward.6} parent=27 // pred_fallthru
            _
          %196 = vnop
        $region28: #{listen_rnn_forward.6} parent=19 // pred_fallthru
          _
      $region20: #{listen_rnn_forward.6} parent=5 // pred_fallthru
        _
      %p197 = scmp.le.s32.totalorder 1, %s9
      %p198 = scmp.lt.s32.totalorder %s9, 16
      %p199 = pnand %p197, %p198
      %p200 = pneg %p199
      // Predicated region
      $region48: #{listen_rnn_forward.6} parent=5 // pred_check
        _
      $region49: #{listen_rnn_forward.6} parent=5 // pred_check_branch
        %202 = sbr.rel (%p199) target = $region51
      $region50: #{listen_rnn_forward.6} parent=5 // pred_region
        %s203 = ssub.s32 %s9, 1
        %s204 = sand.u32 %s62, 1
        %s205 = sand.u32 %s62, 1
        %s206 = smul.addr %s205, 64
        %s207 = scalar_lea.vmem [#allocation3], %s206
        // Predicated region
        $region52: #{listen_rnn_forward.6} parent=50 // pred_check
          %p208 = pneg %p75
        $region53: #{listen_rnn_forward.6} parent=50 // pred_check_branch
          %210 = sbr.rel (%p208) target = $region55
        $region54: #{listen_rnn_forward.6} parent=50 // pred_region
          _
        $region55: #{listen_rnn_forward.6} parent=50 // pred_fallthru
          _
        %s211 = smul.u32 64, %s19
        %p212 = scmp.lt.s32.totalorder %s211, 959
        %s213 = scalar_select %p212, %s211, 959
        %p214 = scmp.lt.s32.totalorder %s18, 0
        %s215 = scalar_select %p214, %s18, 0
        %s216 = sadd.s32 %s215, %s213
        %s217 = smul.addr %s216, 4
        %s218 = scalar_lea.vmem %s0, %s217
        %p219 = pneg %p49
        %p220 = pneg %p46
        %s221 = sand.u32 %s62, 1
        %s222 = sand.u32 %s62, 1
        %s223 = smul.addr %s222, 64
        %s224 = scalar_lea.vmem [#allocation3], %s223
        %p225 = pneg %p75
        %p226 = pneg %p72
        %p227 = pneg %p96
        %p228 = pneg %p93
        %p229 = pneg %p122
        %p230 = pneg %p119
        %p231 = scmp.lt.s32.totalorder %s18, 0
        %s232 = scalar_select %p231, %s18, 0
        %s233 = smul.addr %s232, 8
        %s234 = scalar_lea.vmem %s3, %s233
        %s235 = smul.u32 64, %s19
        %p236 = scmp.lt.s32.totalorder %s235, 959
        %s237 = scalar_select %p236, %s235, 959
        %p238 = scmp.lt.s32.totalorder %s18, 0
        %s239 = scalar_select %p238, %s18, 0
        %s240 = sadd.s32 %s239, %s237
        %s241 = smul.addr %s240, 4
        %s242 = scalar_lea.vmem %s0, %s241
        %s243 = smul.u32 64, %s19
        %s244 = smul.u32 4, %s19
        %p245 = scmp.lt.s32.totalorder %s18, 0
        %s246 = scalar_select %p245, %s18, 0
        %s247 = smul.addr %s246, 8
        %s248 = scalar_lea.vmem %s3, %s247
        %p250 = scmp.eq.s32.totalorder %s19, 0
        // Predicated region
        $region56: #{listen_rnn_forward.6} parent=50 // pred_check
          %p251 = pneg %p250
        $region57: #{listen_rnn_forward.6} parent=50 // pred_check_branch
          %253 = sbr.rel (%p251) target = $region59
        $region58: #{listen_rnn_forward.6} parent=50 // pred_region
          %254 = vst [vmem:[#allocation2] sm:$0xff] 0.0
          %255 = vst [vmem:[#allocation2 + $0x8] sm:$0xff] 0.0
          %256 = vst [vmem:[#allocation2 + $0x10] sm:$0xff] 0.0
          %257 = vst [vmem:[#allocation2 + $0x18] sm:$0xff] 0.0
        $region59: #{listen_rnn_forward.6} parent=50 // pred_fallthru
          _
        %v258 = vld [vmem:[#allocation2] sm:$0xff]
        %v259 = vld [vmem:[#allocation2 + $0x8] sm:$0xff]
        %v260 = vld [vmem:[#allocation2 + $0x10] sm:$0xff]
        %v261 = vld [vmem:[#allocation2 + $0x18] sm:$0xff]
        %v262 = vld [vmem:[%s207] sm:$0xff]
        %v263 = vld [vmem:[%s207 + $0x8] sm:$0xff]
        %v264 = vld [vmem:[%s207 + $0x10] sm:$0xff]
        %v265 = vld [vmem:[%s207 + $0x18] sm:$0xff]
        %v266 = vld [vmem:[%s207 + $0x20] sm:$0xff]
        %v267 = vld [vmem:[%s207 + $0x28] sm:$0xff]
        %v268 = vld [vmem:[%s207 + $0x30] sm:$0xff]
        %v269 = vld [vmem:[%s207 + $0x38] sm:$0xff]
        %v270 = vld [vmem:[%s242] sm:$0xf]
        %v271 = vld [vmem:[%s242 + $0x4] sm:$0xf]
        %v272 = vld [vmem:[%s242 + $0x8] sm:$0xf]
        %v273 = vld [vmem:[%s242 + $0xc] sm:$0xf]
        %v274 = vld [vmem:[%s242 + $0x10] sm:$0xf]
        %v275 = vld [vmem:[%s242 + $0x14] sm:$0xf]
        %v276 = vld [vmem:[%s242 + $0x18] sm:$0xf]
        %v277 = vld [vmem:[%s242 + $0x1c] sm:$0xf]
        %v278 = vld [vmem:[%s242 + $0x20] sm:$0xf]
        %v279 = vld [vmem:[%s242 + $0x24] sm:$0xf]
        %v280 = vld [vmem:[%s242 + $0x28] sm:$0xf]
        %v281 = vld [vmem:[%s242 + $0x2c] sm:$0xf]
        %v282 = vld [vmem:[%s242 + $0x30] sm:$0xf]
        %v283 = vld [vmem:[%s242 + $0x34] sm:$0xf]
        %v284 = vld [vmem:[%s242 + $0x38] sm:$0xf]
        %v285 = vld [vmem:[%s242 + $0x3c] sm:$0xf]
        %v286 = vld [vmem:[%s242 + $0x40] sm:$0xf]
        %v287 = vld [vmem:[%s242 + $0x44] sm:$0xf]
        %v288 = vld [vmem:[%s242 + $0x48] sm:$0xf]
        %v289 = vld [vmem:[%s242 + $0x4c] sm:$0xf]
        %v290 = vld [vmem:[%s242 + $0x50] sm:$0xf]
        %v291 = vld [vmem:[%s242 + $0x54] sm:$0xf]
        %v292 = vld [vmem:[%s242 + $0x58] sm:$0xf]
        %v293 = vld [vmem:[%s242 + $0x5c] sm:$0xf]
        %v294 = vld [vmem:[%s242 + $0x60] sm:$0xf]
        %v295 = vld [vmem:[%s242 + $0x64] sm:$0xf]
        %v296 = vld [vmem:[%s242 + $0x68] sm:$0xf]
        %v297 = vld [vmem:[%s242 + $0x6c] sm:$0xf]
        %v298 = vld [vmem:[%s242 + $0x70] sm:$0xf]
        %v299 = vld [vmem:[%s242 + $0x74] sm:$0xf]
        %v300 = vld [vmem:[%s242 + $0x78] sm:$0xf]
        %v301 = vld [vmem:[%s242 + $0x7c] sm:$0xf]
        %v302 = vld [vmem:[%s242 + $0x80] sm:$0xf]
        %v303 = vld [vmem:[%s242 + $0x84] sm:$0xf]
        %v304 = vld [vmem:[%s242 + $0x88] sm:$0xf]
        %v305 = vld [vmem:[%s242 + $0x8c] sm:$0xf]
        %v306 = vld [vmem:[%s242 + $0x90] sm:$0xf]
        %v307 = vld [vmem:[%s242 + $0x94] sm:$0xf]
        %v308 = vld [vmem:[%s242 + $0x98] sm:$0xf]
        %v309 = vld [vmem:[%s242 + $0x9c] sm:$0xf]
        %v310 = vld [vmem:[%s242 + $0xa0] sm:$0xf]
        %v311 = vld [vmem:[%s242 + $0xa4] sm:$0xf]
        %v312 = vld [vmem:[%s242 + $0xa8] sm:$0xf]
        %v313 = vld [vmem:[%s242 + $0xac] sm:$0xf]
        %v314 = vld [vmem:[%s242 + $0xb0] sm:$0xf]
        %v315 = vld [vmem:[%s242 + $0xb4] sm:$0xf]
        %v316 = vld [vmem:[%s242 + $0xb8] sm:$0xf]
        %v317 = vld [vmem:[%s242 + $0xbc] sm:$0xf]
        %v318 = vld [vmem:[%s242 + $0xc0] sm:$0xf]
        %v319 = vld [vmem:[%s242 + $0xc4] sm:$0xf]
        %v320 = vld [vmem:[%s242 + $0xc8] sm:$0xf]
        %v321 = vld [vmem:[%s242 + $0xcc] sm:$0xf]
        %v322 = vld [vmem:[%s242 + $0xd0] sm:$0xf]
        %v323 = vld [vmem:[%s242 + $0xd4] sm:$0xf]
        %v324 = vld [vmem:[%s242 + $0xd8] sm:$0xf]
        %v325 = vld [vmem:[%s242 + $0xdc] sm:$0xf]
        %v326 = vld [vmem:[%s242 + $0xe0] sm:$0xf]
        %v327 = vld [vmem:[%s242 + $0xe4] sm:$0xf]
        %v328 = vld [vmem:[%s242 + $0xe8] sm:$0xf]
        %v329 = vld [vmem:[%s242 + $0xec] sm:$0xf]
        %v330 = vld [vmem:[%s242 + $0xf0] sm:$0xf]
        %v331 = vld [vmem:[%s242 + $0xf4] sm:$0xf]
        %v332 = vld [vmem:[%s242 + $0xf8] sm:$0xf]
        %v333 = vld [vmem:[%s242 + $0xfc] sm:$0xf]
        %v342 = vunpack.c.l.b16 %v262
        %v343 = vunpack.c.h.b16 %v262
        %v344 = vunpack.c.l.b16 %v263
        %v345 = vunpack.c.h.b16 %v263
        %v346 = vunpack.c.l.b16 %v264
        %v347 = vunpack.c.h.b16 %v264
        %v348 = vunpack.c.l.b16 %v265
        %v349 = vunpack.c.h.b16 %v265
        %v350 = vunpack.c.l.b16 %v266
        %v351 = vunpack.c.h.b16 %v266
        %v352 = vunpack.c.l.b16 %v267
        %v353 = vunpack.c.h.b16 %v267
        %v354 = vunpack.c.l.b16 %v268
        %v355 = vunpack.c.h.b16 %v268
        %v356 = vunpack.c.l.b16 %v269
        %v357 = vunpack.c.h.b16 %v269
        %v358 = vpack.c.b16 %v346, %v342
        %v359 = vpack.c.b16 %v347, %v343
        %v360 = vpack.c.b16 %v348, %v344
        %v361 = vpack.c.b16 %v349, %v345
        %v362 = vpack.c.b16 %v354, %v350
        %v363 = vpack.c.b16 %v355, %v351
        %v364 = vpack.c.b16 %v356, %v352
        %v365 = vpack.c.b16 %v357, %v353
        %v438 = vunpack.c.l.b16 %v270
        %v439 = vunpack.c.l.b16 %v271
        %v440 = vunpack.c.l.b16 %v272
        %v441 = vunpack.c.l.b16 %v273
        %v442 = vunpack.c.l.b16 %v274
        %v443 = vunpack.c.l.b16 %v275
        %v444 = vunpack.c.l.b16 %v276
        %v445 = vunpack.c.l.b16 %v277
        %v446 = vunpack.c.l.b16 %v278
        %v447 = vunpack.c.l.b16 %v279
        %v448 = vunpack.c.l.b16 %v280
        %v449 = vunpack.c.l.b16 %v281
        %v450 = vunpack.c.l.b16 %v282
        %v451 = vunpack.c.l.b16 %v283
        %v452 = vunpack.c.l.b16 %v284
        %v453 = vunpack.c.l.b16 %v285
        %v454 = vunpack.c.l.b16 %v286
        %v455 = vunpack.c.l.b16 %v287
        %v456 = vunpack.c.l.b16 %v288
        %v457 = vunpack.c.l.b16 %v289
        %v458 = vunpack.c.l.b16 %v290
        %v459 = vunpack.c.l.b16 %v291
        %v460 = vunpack.c.l.b16 %v292
        %v461 = vunpack.c.l.b16 %v293
        %v462 = vunpack.c.l.b16 %v294
        %v463 = vunpack.c.l.b16 %v295
        %v464 = vunpack.c.l.b16 %v296
        %v465 = vunpack.c.l.b16 %v297
        %v466 = vunpack.c.l.b16 %v298
        %v467 = vunpack.c.l.b16 %v299
        %v468 = vunpack.c.l.b16 %v300
        %v469 = vunpack.c.l.b16 %v301
        %v470 = vunpack.c.l.b16 %v302
        %v471 = vunpack.c.l.b16 %v303
        %v472 = vunpack.c.l.b16 %v304
        %v473 = vunpack.c.l.b16 %v305
        %v474 = vunpack.c.l.b16 %v306
        %v475 = vunpack.c.l.b16 %v307
        %v476 = vunpack.c.l.b16 %v308
        %v477 = vunpack.c.l.b16 %v309
        %v478 = vunpack.c.l.b16 %v310
        %v479 = vunpack.c.l.b16 %v311
        %v480 = vunpack.c.l.b16 %v312
        %v481 = vunpack.c.l.b16 %v313
        %v482 = vunpack.c.l.b16 %v314
        %v483 = vunpack.c.l.b16 %v315
        %v484 = vunpack.c.l.b16 %v316
        %v485 = vunpack.c.l.b16 %v317
        %v486 = vunpack.c.l.b16 %v318
        %v487 = vunpack.c.l.b16 %v319
        %v488 = vunpack.c.l.b16 %v320
        %v489 = vunpack.c.l.b16 %v321
        %v490 = vunpack.c.l.b16 %v322
        %v491 = vunpack.c.l.b16 %v323
        %v492 = vunpack.c.l.b16 %v324
        %v493 = vunpack.c.l.b16 %v325
        %v494 = vunpack.c.l.b16 %v326
        %v495 = vunpack.c.l.b16 %v327
        %v496 = vunpack.c.l.b16 %v328
        %v497 = vunpack.c.l.b16 %v329
        %v498 = vunpack.c.l.b16 %v330
        %v499 = vunpack.c.l.b16 %v331
        %v500 = vunpack.c.l.b16 %v332
        %v501 = vunpack.c.l.b16 %v333
        %v502 = vpack.c.b16 %v439, %v438
        %v503 = vpack.c.b16 %v441, %v440
        %v504 = vpack.c.b16 %v443, %v442
        %v505 = vpack.c.b16 %v445, %v444
        %v506 = vpack.c.b16 %v447, %v446
        %v507 = vpack.c.b16 %v449, %v448
        %v508 = vpack.c.b16 %v451, %v450
        %v509 = vpack.c.b16 %v453, %v452
        %v510 = vpack.c.b16 %v455, %v454
        %v511 = vpack.c.b16 %v457, %v456
        %v512 = vpack.c.b16 %v459, %v458
        %v513 = vpack.c.b16 %v461, %v460
        %v514 = vpack.c.b16 %v463, %v462
        %v515 = vpack.c.b16 %v465, %v464
        %v516 = vpack.c.b16 %v467, %v466
        %v517 = vpack.c.b16 %v469, %v468
        %v518 = vpack.c.b16 %v471, %v470
        %v519 = vpack.c.b16 %v473, %v472
        %v520 = vpack.c.b16 %v475, %v474
        %v521 = vpack.c.b16 %v477, %v476
        %v522 = vpack.c.b16 %v479, %v478
        %v523 = vpack.c.b16 %v481, %v480
        %v524 = vpack.c.b16 %v483, %v482
        %v525 = vpack.c.b16 %v485, %v484
        %v526 = vpack.c.b16 %v487, %v486
        %v527 = vpack.c.b16 %v489, %v488
        %v528 = vpack.c.b16 %v491, %v490
        %v529 = vpack.c.b16 %v493, %v492
        %v530 = vpack.c.b16 %v495, %v494
        %v531 = vpack.c.b16 %v497, %v496
        %v532 = vpack.c.b16 %v499, %v498
        %v533 = vpack.c.b16 %v501, %v500
        %566 = vmatprep.subr.bf16.mxu0 0
        %567 = vmatpush1.bf16.msra.mxu0 %v502
        %568 = vmatprep.subr.bf16.mxu0 0
        %569 = vmatpush1.bf16.msra.mxu0 %v503
        %570 = vmatprep.subr.bf16.mxu0 0
        %571 = vmatpush1.bf16.msra.mxu0 %v504
        %572 = vmatprep.subr.bf16.mxu0 0
        %573 = vmatpush1.bf16.msra.mxu0 %v505
        %574 = vmatprep.subr.bf16.mxu0 0
        %575 = vmatpush1.bf16.msra.mxu0 %v506
        %576 = vmatprep.subr.bf16.mxu0 0
        %577 = vmatpush1.bf16.msra.mxu0 %v507
        %578 = vmatprep.subr.bf16.mxu0 0
        %579 = vmatpush1.bf16.msra.mxu0 %v508
        %580 = vmatprep.subr.bf16.mxu0 0
        %581 = vmatpush1.bf16.msra.mxu0 %v509
        %582 = vmatprep.subr.bf16.mxu0 0
        %583 = vmatpush1.bf16.msra.mxu0 %v510
        %584 = vmatprep.subr.bf16.mxu0 0
        %585 = vmatpush1.bf16.msra.mxu0 %v511
        %586 = vmatprep.subr.bf16.mxu0 0
        %587 = vmatpush1.bf16.msra.mxu0 %v512
        %588 = vmatprep.subr.bf16.mxu0 0
        %589 = vmatpush1.bf16.msra.mxu0 %v513
        %590 = vmatprep.subr.bf16.mxu0 0
        %591 = vmatpush1.bf16.msra.mxu0 %v514
        %592 = vmatprep.subr.bf16.mxu0 0
        %593 = vmatpush1.bf16.msra.mxu0 %v515
        %594 = vmatprep.subr.bf16.mxu0 0
        %595 = vmatpush1.bf16.msra.mxu0 %v516
        %596 = vmatprep.subr.bf16.mxu0 0
        %597 = vmatpush1.bf16.msra.mxu0 %v517
        %598 = vmatprep.mubr.bf16.mxu0 %v359
        %599 = vmatmul.mubr.bf16.gmra.mrb[0].mxu0 %v358
        %v600 = vpop.f32.mrb[0].mxu0
        %v601 = vadd.f32 0.0, %v600
        %v602 = vpop.f32.mrb[0].mxu0
        %v603 = vpop.f32.mrb[0].mxu0
        %v604 = vadd.f32 0.0, %v603
        %v605 = vpop.f32.mrb[0].mxu0
        %606 = vmatprep.mubr.bf16.mxu0 %v363
        %607 = vmatmul.mubr.bf16.gmra.mrb[0].mxu0 %v362
        %v608 = vpop.f32.mrb[0].mxu0
        %v609 = vadd.f32 0.0, %v608
        %v610 = vpop.f32.mrb[0].mxu0
        %v611 = vpop.f32.mrb[0].mxu0
        %v612 = vadd.f32 0.0, %v611
        %v613 = vpop.f32.mrb[0].mxu0
        %614 = vdwg.mxu0
        %615 = vmatprep.subr.bf16.mxu0 0
        %616 = vmatpush1.bf16.msra.mxu0 %v518
        %617 = vmatprep.subr.bf16.mxu0 0
        %618 = vmatpush1.bf16.msra.mxu0 %v519
        %619 = vmatprep.subr.bf16.mxu0 0
        %620 = vmatpush1.bf16.msra.mxu0 %v520
        %621 = vmatprep.subr.bf16.mxu0 0
        %622 = vmatpush1.bf16.msra.mxu0 %v521
        %623 = vmatprep.subr.bf16.mxu0 0
        %624 = vmatpush1.bf16.msra.mxu0 %v522
        %625 = vmatprep.subr.bf16.mxu0 0
        %626 = vmatpush1.bf16.msra.mxu0 %v523
        %627 = vmatprep.subr.bf16.mxu0 0
        %628 = vmatpush1.bf16.msra.mxu0 %v524
        %629 = vmatprep.subr.bf16.mxu0 0
        %630 = vmatpush1.bf16.msra.mxu0 %v525
        %631 = vmatprep.subr.bf16.mxu0 0
        %632 = vmatpush1.bf16.msra.mxu0 %v526
        %633 = vmatprep.subr.bf16.mxu0 0
        %634 = vmatpush1.bf16.msra.mxu0 %v527
        %635 = vmatprep.subr.bf16.mxu0 0
        %636 = vmatpush1.bf16.msra.mxu0 %v528
        %637 = vmatprep.subr.bf16.mxu0 0
        %638 = vmatpush1.bf16.msra.mxu0 %v529
        %639 = vmatprep.subr.bf16.mxu0 0
        %640 = vmatpush1.bf16.msra.mxu0 %v530
        %641 = vmatprep.subr.bf16.mxu0 0
        %642 = vmatpush1.bf16.msra.mxu0 %v531
        %643 = vmatprep.subr.bf16.mxu0 0
        %644 = vmatpush1.bf16.msra.mxu0 %v532
        %645 = vmatprep.subr.bf16.mxu0 0
        %646 = vmatpush1.bf16.msra.mxu0 %v533
        %647 = vmatprep.mubr.bf16.mxu0 %v361
        %648 = vmatmul.mubr.bf16.gmra.mrb[0].mxu0 %v360
        %v649 = vpop.f32.mrb[0].mxu0
        %v650 = vadd.f32 %v601, %v649
        %v651 = vpop.f32.mrb[0].mxu0
        %v652 = vpop.f32.mrb[0].mxu0
        %v653 = vadd.f32 %v604, %v652
        %v654 = vpop.f32.mrb[0].mxu0
        %655 = vmatprep.mubr.bf16.mxu0 %v365
        %656 = vmatmul.mubr.bf16.gmra.mrb[0].mxu0 %v364
        %v657 = vpop.f32.mrb[0].mxu0
        %v658 = vadd.f32 %v609, %v657
        %v659 = vpop.f32.mrb[0].mxu0
        %v660 = vpop.f32.mrb[0].mxu0
        %v661 = vadd.f32 %v612, %v660
        %v662 = vpop.f32.mrb[0].mxu0
        %663 = vdwg.mxu0
        %v664 = vadd.f32 %v258, %v650
        %v665 = vadd.f32 %v259, %v653
        %v666 = vadd.f32 %v260, %v658
        %v667 = vadd.f32 %v261, %v661
        %668 = vst [vmem:[#allocation2] sm:$0xff] %v664
        %669 = vst [vmem:[#allocation2 + $0x8] sm:$0xff] %v665
        %670 = vst [vmem:[#allocation2 + $0x10] sm:$0xff] %v666
        %671 = vst [vmem:[#allocation2 + $0x18] sm:$0xff] %v667
        %p672 = scmp.eq.s32.totalorder %s19, 14
        // Predicated region
        $region60: #{listen_rnn_forward.6} parent=50 // pred_check
          %p673 = pneg %p672
        $region61: #{listen_rnn_forward.6} parent=50 // pred_check_branch
          %675 = sbr.rel (%p673) target = $region63
        $region62: #{listen_rnn_forward.6} parent=50 // pred_region
          %v676 = vld [vmem:[#allocation2] sm:$0xff]
          %v677 = vld [vmem:[#allocation2 + $0x8] sm:$0xff]
          %v678 = vld [vmem:[#allocation2 + $0x10] sm:$0xff]
          %v679 = vld [vmem:[#allocation2 + $0x18] sm:$0xff]
          %v680 = vld [vmem:[%s2] sm:$0xff]
          %v681 = vld [vmem:[%s2 + $0x8] sm:$0xff]
          %v682 = vld [vmem:[%s2 + $0x10] sm:$0xff]
          %v683 = vld [vmem:[%s2 + $0x18] sm:$0xff]
          %685 = vset.pattern.permute.xlu0 0
          %686 = vperm.xlu0 %685, %v680
          %v687 = vpop.permute.xlu0 %686
          %690 = vset.pattern.permute.xlu0 0
          %691 = vperm.xlu0 %690, %v681
          %v692 = vpop.permute.xlu0 %691
          %695 = vset.pattern.permute.xlu0 0
          %696 = vperm.xlu0 %695, %v682
          %v697 = vpop.permute.xlu0 %696
          %700 = vset.pattern.permute.xlu0 0
          %701 = vperm.xlu0 %700, %v683
          %v702 = vpop.permute.xlu0 %701
          %v704 = vadd.f32 %v676, %v687
          %v705 = vadd.f32 %v677, %v692
          %v706 = vadd.f32 %v678, %v697
          %v707 = vadd.f32 %v679, %v702
          %v708 = vmax.f32 %v704, 0.0
          %v709 = vmax.f32 %v705, 0.0
          %v710 = vmax.f32 %v706, 0.0
          %v711 = vmax.f32 %v707, 0.0
          %v712 = vmin.f32 %v708, 20.0
          %v713 = vmin.f32 %v709, 20.0
          %v714 = vmin.f32 %v710, 20.0
          %v715 = vmin.f32 %v711, 20.0
          %716 = vst [vmem:[%s248] sm:$0xff] %v712
          %717 = vst [vmem:[%s248 + $0x8] sm:$0xff] %v713
          %718 = vst [vmem:[%s248 + $0x10] sm:$0xff] %v714
          %719 = vst [vmem:[%s248 + $0x18] sm:$0xff] %v715
        $region63: #{listen_rnn_forward.6} parent=50 // pred_fallthru
          _
        %p720 = scmp.lt.s32.totalorder %s18, 0
        %s721 = scalar_select %p720, %s18, 0
        %s722 = smul.addr %s721, 8
        %s723 = scalar_lea.vmem %s3, %s722
        // Predicated region
        $region64: #{listen_rnn_forward.6} parent=50 // pred_check
          %p724 = pneg %p119
        $region65: #{listen_rnn_forward.6} parent=50 // pred_check_branch
          %726 = sbr.rel (%p724) target = $region67
        $region66: #{listen_rnn_forward.6} parent=50 // pred_region
          _
        $region67: #{listen_rnn_forward.6} parent=50 // pred_fallthru
          _
        // Predicated region
        $region68: #{listen_rnn_forward.6} parent=50 // pred_check
          %p727 = pneg %p119
        $region69: #{listen_rnn_forward.6} parent=50 // pred_check_branch
          %729 = sbr.rel (%p727) target = $region71
        $region70: #{listen_rnn_forward.6} parent=50 // pred_region
          %p730 = scmp.lt.s32.totalorder %s18, 0
          %s731 = scalar_select %p730, %s18, 0
          %s732 = smul.addr %s731, 8
          %s733 = scalar_lea.vmem %s3, %s732
        $region71: #{listen_rnn_forward.6} parent=50 // pred_fallthru
          _
      $region51: #{listen_rnn_forward.6} parent=5 // pred_fallthru
        _
      %p734 = scmp.le.s32.totalorder 2, %s9
      // Predicated region
      $region72: #{listen_rnn_forward.6} parent=5 // pred_check
        %p735 = pneg %p734
      $region73: #{listen_rnn_forward.6} parent=5 // pred_check_branch
        %737 = sbr.rel (%p735) target = $region75
      $region74: #{listen_rnn_forward.6} parent=5 // pred_region
        %s738 = ssub.s32 %s9, 2
      $region75: #{listen_rnn_forward.6} parent=5 // pred_fallthru
        _
    $region6: #{listen_rnn_forward.6} parent=1 // loop_footer
      %s13 = sadd.s32 1, %s9
    $region7: #{listen_rnn_forward.6} parent=1 // loop_footer_branch
      %8 = sbr.rel target = $region3
    $region8: #{listen_rnn_forward.6} parent=1 // loop_exit
      _

// kernel: mul.41
$region0: #{mul.41}
  #allocation0 [shape = 's32[1]{0}', space=sflag, size = 0x4, scoped, tag = 'scoped memory for mul.41']
  %s0 = inlined_call_operand.vmem [shape: f32[4], index: 0, kind: input, shape index: {}]
  %s1 = inlined_call_operand.vmem [shape: f32[4,1,32], index: 1, kind: output, shape index: {}]
  // Predicated region
  $region2: #{mul.41} parent=0 // pred_check
    _
  $region3: #{mul.41} parent=0 // pred_check_branch
    %3 = sbr.rel (0) target = $region5
  $region4: #{mul.41} parent=0 // pred_region
    _
  $region5: #{mul.41} parent=0 // pred_fallthru
    _
  %v4 = vld [vmem:[%s0] ss:$0 sm:$0xff]
  %5 = vbcast.lane.b32.xlu0 %v4, 0
  %v6 = vpop.permute.xlu0 %5
  %7 = vst [vmem:[%s1] sm:$0x1] %v6
  %v8 = vld [vmem:[%s0] ss:$0 sm:$0xff]
  %9 = vbcast.lane.b32.xlu0 %v8, 1
  %v10 = vpop.permute.xlu0 %9
  %s11 = scalar_lea.vmem %s1, 1
  %12 = vst [vmem:[%s11] sm:$0x1] %v10
  %v13 = vld [vmem:[%s0] ss:$0 sm:$0xff]
  %14 = vbcast.lane.b32.xlu0 %v13, 2
  %v15 = vpop.permute.xlu0 %14
  %s16 = scalar_lea.vmem %s1, 2
  %17 = vst [vmem:[%s16] sm:$0x1] %v15
  %v18 = vld [vmem:[%s0] ss:$0 sm:$0xff]
  %19 = vbcast.lane.b32.xlu0 %v18, 3
  %v20 = vpop.permute.xlu0 %19
  %s21 = scalar_lea.vmem %s1, 3
  %22 = vst [vmem:[%s21] sm:$0x1] %v20

// kernel: listen_rnn_forward.8
$region0: #{listen_rnn_forward.8}
  #allocation0 [shape = 'u32[]', space=smem, size = 0x4, offset = 0x4, fixed_abs, tag = 'smem constant byte address 0x4 - core index']
  #allocation1 [shape = 'u32[144,128]{1,0:T(1,128)}', space=vmem, size = 0x12000, scoped, tag = 'internal scratch']
  #allocation2 [shape = 'f32[2,64]{1,0:T(2,128)}', space=vmem, size = 0x400, scoped, tag = 'scratch operand']
  #allocation3 [shape = 'f32[4,2,96]{2,1,0:T(2,128)}', space=vmem, size = 0x1000, scoped, tag = 'scratch operand']
  #allocation4 [shape = 'f32[4,2,96]{2,1,0:T(2,128)}', space=vmem, size = 0x1000, scoped, tag = 'scratch operand']
  %s0 = inlined_call_operand.vmem [shape: f32[4,2,64], index: 0, kind: input, shape index: {}, may-alias: {0,1}]
  %s1 = inlined_call_operand.vmem [shape: f32[4,2,64], index: 1, kind: input, shape index: {}, may-alias: {0,1}]
  %s2 = inlined_call_operand.vmem [shape: f32[4,1,32], index: 2, kind: input, shape index: {}, may-alias: {2,3}]
  %s3 = inlined_call_operand.vmem [shape: f32[4,1,32], index: 3, kind: input, shape index: {}, may-alias: {2,3}]
  %s4 = inlined_call_operand.vmem [shape: bf16[64,96], index: 4, kind: input, shape index: {}]
  %s5 = inlined_call_operand.vmem [shape: bf16[64,96], index: 5, kind: input, shape index: {}]
  %s6 = inlined_call_operand.vmem [shape: bf16[64,192], index: 6, kind: input, shape index: {}]
  %s7 = inlined_call_operand.vmem [shape: f32[1,96], index: 7, kind: input, shape index: {}]
  %s8 = inlined_call_operand.vmem [shape: f32[1,96], index: 8, kind: input, shape index: {}]
  %s9 = inlined_call_operand.vmem [shape: f32[1,192], index: 9, kind: input, shape index: {}]
  %s10 = inlined_call_operand.vmem [shape: f32[4,2,32], index: 10, kind: output, shape index: {0}]
  %s11 = inlined_call_operand.vmem [shape: f32[4,2,32], index: 11, kind: output, shape index: {1}]
  %s12 = inlined_call_operand.vmem [shape: f32[2,2,32], index: 12, kind: output, shape index: {2}]
  %13 = xla_tuple %s10, %s11, %s12
  %s14 = sld [smem:[#allocation0]]
  $region70: #{listen_rnn_forward.8} parent=0
    _
  %s16 = ssub.s32 1, %s14
  %s17 = scalar_select 0, %s16, %s14
  // Predicated region
  $region2: #{listen_rnn_forward.8} parent=0 // pred_check
    _
  $region3: #{listen_rnn_forward.8} parent=0 // pred_check_branch
    %19 = sbr.rel (0) target = $region5
  $region4: #{listen_rnn_forward.8} parent=0 // pred_region
    _
  $region5: #{listen_rnn_forward.8} parent=0 // pred_fallthru
    _
  // Predicated region
  $region6: #{listen_rnn_forward.8} parent=0 // pred_check
    _
  $region7: #{listen_rnn_forward.8} parent=0 // pred_check_branch
    %21 = sbr.rel (0) target = $region9
  $region8: #{listen_rnn_forward.8} parent=0 // pred_region
    %s22 = ssub.s32 0, 0
    %s23 = smul.u32 4, %s22
    %p24 = scmp.lt.s32.totalorder %s23, 3
    %s25 = scalar_select %p24, %s23, 3
    %s26 = smul.addr %s25, 2
    %s27 = scalar_lea.vmem %s1, %s26
    %s28 = ssub.s32 0, 0
    %s29 = smul.u32 4, %s28
  $region9: #{listen_rnn_forward.8} parent=0 // pred_fallthru
    _
  // Predicated region
  $region10: #{listen_rnn_forward.8} parent=0 // pred_check
    _
  $region11: #{listen_rnn_forward.8} parent=0 // pred_check_branch
    %31 = sbr.rel (0) target = $region13
  $region12: #{listen_rnn_forward.8} parent=0 // pred_region
    _
  $region13: #{listen_rnn_forward.8} parent=0 // pred_fallthru
    _
  // Predicated region
  $region14: #{listen_rnn_forward.8} parent=0 // pred_check
    _
  $region15: #{listen_rnn_forward.8} parent=0 // pred_check_branch
    %33 = sbr.rel (0) target = $region17
  $region16: #{listen_rnn_forward.8} parent=0 // pred_region
    %s34 = ssub.s32 0, 0
    %s35 = smul.u32 4, %s34
    %p36 = scmp.lt.s32.totalorder %s35, 3
    %s37 = scalar_select %p36, %s35, 3
    %s38 = scalar_lea.vmem %s3, %s37
    %s39 = ssub.s32 0, 0
    %s40 = smul.u32 4, %s39
  $region17: #{listen_rnn_forward.8} parent=0 // pred_fallthru
    _
  // Predicated region
  $region18: #{listen_rnn_forward.8} parent=0 // pred_check
    _
  $region19: #{listen_rnn_forward.8} parent=0 // pred_check_branch
    %42 = sbr.rel (0) target = $region21
  $region20: #{listen_rnn_forward.8} parent=0 // pred_region
    _
  $region21: #{listen_rnn_forward.8} parent=0 // pred_fallthru
    _
  // Predicated region
  $region22: #{listen_rnn_forward.8} parent=0 // pred_check
    _
  $region23: #{listen_rnn_forward.8} parent=0 // pred_check_branch
    %44 = sbr.rel (0) target = $region25
  $region24: #{listen_rnn_forward.8} parent=0 // pred_region
    _
  $region25: #{listen_rnn_forward.8} parent=0 // pred_fallthru
    _
  // Predicated region
  $region26: #{listen_rnn_forward.8} parent=0 // pred_check
    _
  $region27: #{listen_rnn_forward.8} parent=0 // pred_check_branch
    %46 = sbr.rel (0) target = $region29
  $region28: #{listen_rnn_forward.8} parent=0 // pred_region
    _
  $region29: #{listen_rnn_forward.8} parent=0 // pred_fallthru
    _
  // Predicated region
  $region30: #{listen_rnn_forward.8} parent=0 // pred_check
    _
  $region31: #{listen_rnn_forward.8} parent=0 // pred_check_branch
    %48 = sbr.rel (0) target = $region33
  $region32: #{listen_rnn_forward.8} parent=0 // pred_region
    _
  $region33: #{listen_rnn_forward.8} parent=0 // pred_fallthru
    _
  // Predicated region
  $region34: #{listen_rnn_forward.8} parent=0 // pred_check
    _
  $region35: #{listen_rnn_forward.8} parent=0 // pred_check_branch
    %50 = sbr.rel (0) target = $region37
  $region36: #{listen_rnn_forward.8} parent=0 // pred_region
    _
  $region37: #{listen_rnn_forward.8} parent=0 // pred_fallthru
    _
  // Predicated region
  $region38: #{listen_rnn_forward.8} parent=0 // pred_check
    _
  $region39: #{listen_rnn_forward.8} parent=0 // pred_check_branch
    %52 = sbr.rel (0) target = $region41
  $region40: #{listen_rnn_forward.8} parent=0 // pred_region
    _
  $region41: #{listen_rnn_forward.8} parent=0 // pred_fallthru
    _
  %s53 = ssub.s32 0, 0
  %s54 = smul.u32 4, %s53
  %p55 = scmp.lt.s32.totalorder %s54, 3
  %s56 = scalar_select %p55, %s54, 3
  %s57 = smul.addr %s56, 2
  %s58 = scalar_lea.vmem %s1, %s57
  %s59 = ssub.s32 0, 0
  %s60 = smul.u32 4, %s59
  %p61 = scmp.lt.s32.totalorder %s60, 3
  %s62 = scalar_select %p61, %s60, 3
  %s63 = scalar_lea.vmem %s3, %s62
  %s64 = ssub.s32 0, 0
  %s65 = smul.u32 4, %s64
  %p66 = scmp.lt.s32.totalorder %s65, 3
  %s67 = scalar_select %p66, %s65, 3
  %s68 = smul.addr %s67, 2
  %s69 = scalar_lea.vmem %s11, %s68
  %s70 = ssub.s32 0, 0
  %s71 = smul.u32 4, %s70
  %p72 = scmp.lt.s32.totalorder %s71, 3
  %s73 = scalar_select %p72, %s71, 3
  %s74 = smul.addr %s73, 2
  %s75 = scalar_lea.vmem %s1, %s74
  %s76 = ssub.s32 0, 0
  %s77 = smul.u32 4, %s76
  %s78 = ssub.s32 0, 0
  %s79 = smul.u32 4, %s78
  %p80 = scmp.lt.s32.totalorder %s79, 3
  %s81 = scalar_select %p80, %s79, 3
  %s82 = scalar_lea.vmem %s3, %s81
  %s83 = ssub.s32 0, 0
  %s84 = smul.u32 4, %s83
  %s85 = ssub.s32 0, 0
  %s86 = smul.u32 4, %s85
  %p87 = scmp.lt.s32.totalorder %s86, 3
  %s88 = scalar_select %p87, %s86, 3
  %s89 = smul.addr %s88, 2
  %s90 = scalar_lea.vmem %s11, %s89
  %s91 = ssub.s32 0, 0
  %s92 = smul.u32 4, %s91
  %p94 = scmp.eq.s32.totalorder 0, 0
  // Predicated region
  $region42: #{listen_rnn_forward.8} parent=0 // pred_check
    %p95 = pneg %p94
  $region43: #{listen_rnn_forward.8} parent=0 // pred_check_branch
    %97 = sbr.rel (%p95) target = $region45
  $region44: #{listen_rnn_forward.8} parent=0 // pred_region
    %vm98 = vcmask 517120
    %99 = vst.msk [vmem:[#allocation2] sm:$0x3] %vm98, 0.0
  $region45: #{listen_rnn_forward.8} parent=0 // pred_fallthru
    _
  %v100 = vld [vmem:[%s0] sm:$0x3]
  %v101 = vld [vmem:[%s0 + $0x2] sm:$0x3]
  %v102 = vld [vmem:[%s0 + $0x4] sm:$0x3]
  %v103 = vld [vmem:[%s0 + $0x6] sm:$0x3]
  %v108 = vcombine.low %v100, %v101
  %v109 = vcombine.low %v102, %v103
  %v111 = vunpack.c.l.s4 1983009808
  %v112 = vunpack.c.0.s8 %v111
  %v113 = vlaneseq
  %v114 = vshrl.u32 %v113, 7
  %v115 = vsub.s32 %v112, %v114
  %v116 = vrot.slane %v108, %v115
  %v118 = vunpack.c.l.s4 1983009808
  %v119 = vunpack.c.0.s8 %v118
  %v120 = vlaneseq
  %v121 = vshrl.u32 %v120, 7
  %v122 = vsub.s32 %v119, %v121
  %v123 = vrot.slane %v109, %v122
  %v124 = vcombine.low %v116, %v123
  %v126 = vpack.c.bf16 %v124, %v124
  %v127 = vld [vmem:[%s75] sm:$0x3]
  %v128 = vld [vmem:[%s75 + $0x2] sm:$0x3]
  %v129 = vld [vmem:[%s75 + $0x4] sm:$0x3]
  %v130 = vld [vmem:[%s75 + $0x6] sm:$0x3]
  %v135 = vcombine.low %v127, %v128
  %v136 = vcombine.low %v129, %v130
  %v138 = vunpack.c.l.s4 1983009808
  %v139 = vunpack.c.0.s8 %v138
  %v140 = vlaneseq
  %v141 = vshrl.u32 %v140, 7
  %v142 = vsub.s32 %v139, %v141
  %v143 = vrot.slane %v135, %v142
  %v145 = vunpack.c.l.s4 1983009808
  %v146 = vunpack.c.0.s8 %v145
  %v147 = vlaneseq
  %v148 = vshrl.u32 %v147, 7
  %v149 = vsub.s32 %v146, %v148
  %v150 = vrot.slane %v136, %v149
  %v151 = vcombine.low %v143, %v150
  %v153 = vpack.c.bf16 %v151, %v151
  %v154 = vld [vmem:[%s4] sm:$0xf]
  %v155 = vld [vmem:[%s4 + $0x4] sm:$0xf]
  %v156 = vld [vmem:[%s4 + $0x8] sm:$0xf]
  %v157 = vld [vmem:[%s4 + $0xc] sm:$0xf]
  %v158 = vld [vmem:[%s4 + $0x10] sm:$0xf]
  %v159 = vld [vmem:[%s4 + $0x14] sm:$0xf]
  %v160 = vld [vmem:[%s4 + $0x18] sm:$0xf]
  %v161 = vld [vmem:[%s4 + $0x1c] sm:$0xf]
  %v162 = vld [vmem:[%s7] sm:$0x1]
  %v164 = vlaneseq
  %v165 = vshrl.u32 %v164, 7
  %v166 = vsub.s32 0, %v165
  %v167 = vrot.slane %v162, %v166
  %v177 = vunpack.c.l.b16 %v154
  %v178 = vunpack.c.l.b16 %v155
  %v179 = vunpack.c.l.b16 %v156
  %v180 = vunpack.c.l.b16 %v157
  %v181 = vunpack.c.l.b16 %v158
  %v182 = vunpack.c.l.b16 %v159
  %v183 = vunpack.c.l.b16 %v160
  %v184 = vunpack.c.l.b16 %v161
  %v185 = vpack.c.b16 %v178, %v177
  %v186 = vpack.c.b16 %v180, %v179
  %v187 = vpack.c.b16 %v182, %v181
  %v188 = vpack.c.b16 %v184, %v183
  %vm193 = vcmask 523264
  %v195 = vsel %vm193, %v126, 0
  %197 = vmatprep.subr.bf16.mxu0 0
  %198 = vmatpush1.bf16.msra.mxu0 %v185
  %199 = vmatprep.subr.bf16.mxu0 0
  %200 = vmatpush1.bf16.msra.mxu0 %v186
  %201 = vmatprep.subr.bf16.mxu0 0
  %202 = vmatpush1.bf16.msra.mxu0 %v187
  %203 = vmatprep.subr.bf16.mxu0 0
  %204 = vmatpush1.bf16.msra.mxu0 %v188
  %205 = vmatprep.subr.bf16.mxu0 0
  %206 = vmatpush1.bf16.msra.mxu0 0
  %207 = vmatprep.subr.bf16.mxu0 0
  %208 = vmatpush1.bf16.msra.mxu0 0
  %209 = vmatprep.subr.bf16.mxu0 0
  %210 = vmatpush1.bf16.msra.mxu0 0
  %211 = vmatprep.subr.bf16.mxu0 0
  %212 = vmatpush1.bf16.msra.mxu0 0
  %213 = vmatprep.subr.bf16.mxu0 0
  %214 = vmatpush1.bf16.msra.mxu0 0
  %215 = vmatprep.subr.bf16.mxu0 0
  %216 = vmatpush1.bf16.msra.mxu0 0
  %217 = vmatprep.subr.bf16.mxu0 0
  %218 = vmatpush1.bf16.msra.mxu0 0
  %219 = vmatprep.subr.bf16.mxu0 0
  %220 = vmatpush1.bf16.msra.mxu0 0
  %221 = vmatprep.subr.bf16.mxu0 0
  %222 = vmatpush1.bf16.msra.mxu0 0
  %223 = vmatprep.subr.bf16.mxu0 0
  %224 = vmatpush1.bf16.msra.mxu0 0
  %225 = vmatprep.subr.bf16.mxu0 0
  %226 = vmatpush1.bf16.msra.mxu0 0
  %227 = vmatprep.subr.bf16.mxu0 0
  %228 = vmatpush1.bf16.msra.mxu0 0
  %229 = vmatprep.mubr.bf16.mxu0 0
  %230 = vmatmul.mubr.bf16.gmra.mrb[0].mxu0 %v195
  %v231 = vpop.f32.mrb[0].mxu0
  %v232 = vadd.f32 %v167, %v231
  %v233 = vpop.f32.mrb[0].mxu0
  %v234 = vpop.f32.mrb[0].mxu0
  %v235 = vpop.f32.mrb[0].mxu0
  %236 = vdwg.mxu0
  %v238 = vcombine.high %v232, %v232
  %v240 = vunpack.c.l.s4 1983009808
  %v241 = vunpack.c.0.s8 %v240
  %v242 = vlaneseq
  %v243 = vshrl.u32 %v242, 7
  %v244 = vsub.s32 %v241, %v243
  %v245 = vrot.slane %v232, %v244
  %v247 = vunpack.c.l.s4 1983009808
  %v248 = vunpack.c.0.s8 %v247
  %v249 = vlaneseq
  %v250 = vshrl.u32 %v249, 7
  %v251 = vsub.s32 %v248, %v250
  %v252 = vrot.slane %v238, %v251
  %v253 = vcombine.high %v245, %v245
  %v254 = vcombine.high %v252, %v252
  %v259 = vld [vmem:[%s5] sm:$0xf]
  %v260 = vld [vmem:[%s5 + $0x4] sm:$0xf]
  %v261 = vld [vmem:[%s5 + $0x8] sm:$0xf]
  %v262 = vld [vmem:[%s5 + $0xc] sm:$0xf]
  %v263 = vld [vmem:[%s5 + $0x10] sm:$0xf]
  %v264 = vld [vmem:[%s5 + $0x14] sm:$0xf]
  %v265 = vld [vmem:[%s5 + $0x18] sm:$0xf]
  %v266 = vld [vmem:[%s5 + $0x1c] sm:$0xf]
  %v267 = vld [vmem:[%s8] sm:$0x1]
  %v269 = vlaneseq
  %v270 = vshrl.u32 %v269, 7
  %v271 = vsub.s32 0, %v270
  %v272 = vrot.slane %v267, %v271
  %v282 = vunpack.c.l.b16 %v259
  %v283 = vunpack.c.l.b16 %v260
  %v284 = vunpack.c.l.b16 %v261
  %v285 = vunpack.c.l.b16 %v262
  %v286 = vunpack.c.l.b16 %v263
  %v287 = vunpack.c.l.b16 %v264
  %v288 = vunpack.c.l.b16 %v265
  %v289 = vunpack.c.l.b16 %v266
  %v290 = vpack.c.b16 %v283, %v282
  %v291 = vpack.c.b16 %v285, %v284
  %v292 = vpack.c.b16 %v287, %v286
  %v293 = vpack.c.b16 %v289, %v288
  %v299 = vsel %vm193, %v153, 0
  %301 = vmatprep.subr.bf16.mxu0 0
  %302 = vmatpush1.bf16.msra.mxu0 %v290
  %303 = vmatprep.subr.bf16.mxu0 0
  %304 = vmatpush1.bf16.msra.mxu0 %v291
  %305 = vmatprep.subr.bf16.mxu0 0
  %306 = vmatpush1.bf16.msra.mxu0 %v292
  %307 = vmatprep.subr.bf16.mxu0 0
  %308 = vmatpush1.bf16.msra.mxu0 %v293
  %309 = vmatprep.subr.bf16.mxu0 0
  %310 = vmatpush1.bf16.msra.mxu0 0
  %311 = vmatprep.subr.bf16.mxu0 0
  %312 = vmatpush1.bf16.msra.mxu0 0
  %313 = vmatprep.subr.bf16.mxu0 0
  %314 = vmatpush1.bf16.msra.mxu0 0
  %315 = vmatprep.subr.bf16.mxu0 0
  %316 = vmatpush1.bf16.msra.mxu0 0
  %317 = vmatprep.subr.bf16.mxu0 0
  %318 = vmatpush1.bf16.msra.mxu0 0
  %319 = vmatprep.subr.bf16.mxu0 0
  %320 = vmatpush1.bf16.msra.mxu0 0
  %321 = vmatprep.subr.bf16.mxu0 0
  %322 = vmatpush1.bf16.msra.mxu0 0
  %323 = vmatprep.subr.bf16.mxu0 0
  %324 = vmatpush1.bf16.msra.mxu0 0
  %325 = vmatprep.subr.bf16.mxu0 0
  %326 = vmatpush1.bf16.msra.mxu0 0
  %327 = vmatprep.subr.bf16.mxu0 0
  %328 = vmatpush1.bf16.msra.mxu0 0
  %329 = vmatprep.subr.bf16.mxu0 0
  %330 = vmatpush1.bf16.msra.mxu0 0
  %331 = vmatprep.subr.bf16.mxu0 0
  %332 = vmatpush1.bf16.msra.mxu0 0
  %333 = vmatprep.mubr.bf16.mxu0 0
  %334 = vmatmul.mubr.bf16.gmra.mrb[0].mxu0 %v299
  %v335 = vpop.f32.mrb[0].mxu0
  %v336 = vadd.f32 %v272, %v335
  %v337 = vpop.f32.mrb[0].mxu0
  %v338 = vpop.f32.mrb[0].mxu0
  %v339 = vpop.f32.mrb[0].mxu0
  %340 = vdwg.mxu0
  %v342 = vcombine.high %v336, %v336
  %v344 = vunpack.c.l.s4 1983009808
  %v345 = vunpack.c.0.s8 %v344
  %v346 = vlaneseq
  %v347 = vshrl.u32 %v346, 7
  %v348 = vsub.s32 %v345, %v347
  %v349 = vrot.slane %v336, %v348
  %v351 = vunpack.c.l.s4 1983009808
  %v352 = vunpack.c.0.s8 %v351
  %v353 = vlaneseq
  %v354 = vshrl.u32 %v353, 7
  %v355 = vsub.s32 %v352, %v354
  %v356 = vrot.slane %v342, %v355
  %v357 = vcombine.high %v349, %v349
  %v358 = vcombine.high %v356, %v356
  %v363 = vld [vmem:[%s2] sm:$0x1]
  %v364 = vld [vmem:[%s2 + $0x1] sm:$0x1]
  %v365 = vld [vmem:[%s2 + $0x2] sm:$0x1]
  %v366 = vld [vmem:[%s2 + $0x3] sm:$0x1]
  %v371 = vlaneseq
  %v372 = vshrl.u32 %v371, 7
  %v373 = vsub.s32 0, %v372
  %v374 = vrot.slane %v363, %v373
  %v375 = vlaneseq
  %v376 = vshrl.u32 %v375, 7
  %v377 = vsub.s32 0, %v376
  %v378 = vrot.slane %v364, %v377
  %v379 = vlaneseq
  %v380 = vshrl.u32 %v379, 7
  %v381 = vsub.s32 0, %v380
  %v382 = vrot.slane %v365, %v381
  %v383 = vlaneseq
  %v384 = vshrl.u32 %v383, 7
  %v385 = vsub.s32 0, %v384
  %v386 = vrot.slane %v366, %v385
  %v388 = vunpack.c.l.s4 1983009808
  %v389 = vunpack.c.0.s8 %v388
  %v390 = vlaneseq
  %v391 = vshrl.u32 %v390, 7
  %v392 = vsub.s32 %v389, %v391
  %v393 = vrot.slane %v374, %v392
  %v395 = vunpack.c.l.s4 1983009808
  %v396 = vunpack.c.0.s8 %v395
  %v397 = vlaneseq
  %v398 = vshrl.u32 %v397, 7
  %v399 = vsub.s32 %v396, %v398
  %v400 = vrot.slane %v378, %v399
  %v402 = vunpack.c.l.s4 1983009808
  %v403 = vunpack.c.0.s8 %v402
  %v404 = vlaneseq
  %v405 = vshrl.u32 %v404, 7
  %v406 = vsub.s32 %v403, %v405
  %v407 = vrot.slane %v382, %v406
  %v409 = vunpack.c.l.s4 1983009808
  %v410 = vunpack.c.0.s8 %v409
  %v411 = vlaneseq
  %v412 = vshrl.u32 %v411, 7
  %v413 = vsub.s32 %v410, %v412
  %v414 = vrot.slane %v386, %v413
  %415 = vrot.lane.b32.xlu0 %v393, 32
  %v416 = vpop.permute.xlu0 %415
  %417 = vrot.lane.b32.xlu0 %v400, 32
  %v418 = vpop.permute.xlu0 %417
  %419 = vrot.lane.b32.xlu0 %v407, 32
  %v420 = vpop.permute.xlu0 %419
  %421 = vrot.lane.b32.xlu0 %v414, 32
  %v422 = vpop.permute.xlu0 %421
  %v427 = vadd.f32 %v245, %v416
  %v428 = vadd.f32 %v253, %v418
  %v429 = vadd.f32 %v252, %v420
  %v430 = vadd.f32 %v254, %v422
  %vm431 = vcmask 261120
  %v432 = vsel %vm431, %v245, %v427
  %v433 = vsel %vm431, %v253, %v428
  %v434 = vsel %vm431, %v252, %v429
  %v435 = vsel %vm431, %v254, %v430
  %v436 = vsel %vm193, %v432, %v245
  %v437 = vsel %vm193, %v433, %v253
  %v438 = vsel %vm193, %v434, %v252
  %v439 = vsel %vm193, %v435, %v254
  %vm440 = vcmask 779264
  %441 = vst.msk [vmem:[#allocation3] sm:$0x3] %vm440, %v436
  %442 = vst.msk [vmem:[#allocation3 + $0x2] sm:$0x3] %vm440, %v437
  %443 = vst.msk [vmem:[#allocation3 + $0x4] sm:$0x3] %vm440, %v438
  %444 = vst.msk [vmem:[#allocation3 + $0x6] sm:$0x3] %vm440, %v439
  %v445 = vld [vmem:[%s82] sm:$0x1]
  %v446 = vld [vmem:[%s82 + $0x1] sm:$0x1]
  %v447 = vld [vmem:[%s82 + $0x2] sm:$0x1]
  %v448 = vld [vmem:[%s82 + $0x3] sm:$0x1]
  %v453 = vlaneseq
  %v454 = vshrl.u32 %v453, 7
  %v455 = vsub.s32 0, %v454
  %v456 = vrot.slane %v445, %v455
  %v457 = vlaneseq
  %v458 = vshrl.u32 %v457, 7
  %v459 = vsub.s32 0, %v458
  %v460 = vrot.slane %v446, %v459
  %v461 = vlaneseq
  %v462 = vshrl.u32 %v461, 7
  %v463 = vsub.s32 0, %v462
  %v464 = vrot.slane %v447, %v463
  %v465 = vlaneseq
  %v466 = vshrl.u32 %v465, 7
  %v467 = vsub.s32 0, %v466
  %v468 = vrot.slane %v448, %v467
  %v470 = vunpack.c.l.s4 1983009808
  %v471 = vunpack.c.0.s8 %v470
  %v472 = vlaneseq
  %v473 = vshrl.u32 %v472, 7
  %v474 = vsub.s32 %v471, %v473
  %v475 = vrot.slane %v456, %v474
  %v477 = vunpack.c.l.s4 1983009808
  %v478 = vunpack.c.0.s8 %v477
  %v479 = vlaneseq
  %v480 = vshrl.u32 %v479, 7
  %v481 = vsub.s32 %v478, %v480
  %v482 = vrot.slane %v460, %v481
  %v484 = vunpack.c.l.s4 1983009808
  %v485 = vunpack.c.0.s8 %v484
  %v486 = vlaneseq
  %v487 = vshrl.u32 %v486, 7
  %v488 = vsub.s32 %v485, %v487
  %v489 = vrot.slane %v464, %v488
  %v491 = vunpack.c.l.s4 1983009808
  %v492 = vunpack.c.0.s8 %v491
  %v493 = vlaneseq
  %v494 = vshrl.u32 %v493, 7
  %v495 = vsub.s32 %v492, %v494
  %v496 = vrot.slane %v468, %v495
  %497 = vrot.lane.b32.xlu0 %v475, 32
  %v498 = vpop.permute.xlu0 %497
  %499 = vrot.lane.b32.xlu0 %v482, 32
  %v500 = vpop.permute.xlu0 %499
  %501 = vrot.lane.b32.xlu0 %v489, 32
  %v502 = vpop.permute.xlu0 %501
  %503 = vrot.lane.b32.xlu0 %v496, 32
  %v504 = vpop.permute.xlu0 %503
  %v509 = vadd.f32 %v349, %v498
  %v510 = vadd.f32 %v357, %v500
  %v511 = vadd.f32 %v356, %v502
  %v512 = vadd.f32 %v358, %v504
  %v513 = vsel %vm431, %v349, %v509
  %v514 = vsel %vm431, %v357, %v510
  %v515 = vsel %vm431, %v356, %v511
  %v516 = vsel %vm431, %v358, %v512
  %v517 = vsel %vm193, %v513, %v349
  %v518 = vsel %vm193, %v514, %v357
  %v519 = vsel %vm193, %v515, %v356
  %v520 = vsel %vm193, %v516, %v358
  %521 = vst.msk [vmem:[#allocation4] sm:$0x3] %vm440, %v517
  %522 = vst.msk [vmem:[#allocation4 + $0x2] sm:$0x3] %vm440, %v518
  %523 = vst.msk [vmem:[#allocation4 + $0x4] sm:$0x3] %vm440, %v519
  %524 = vst.msk [vmem:[#allocation4 + $0x6] sm:$0x3] %vm440, %v520
  %v525 = vld [vmem:[#allocation2] sm:$0x3]
  %v526 = vpack.c.bf16 %v525, %v525
  %v527 = vld [vmem:[%s6] sm:$0xff]
  %v528 = vld [vmem:[%s6 + $0x8] sm:$0xff]
  %v529 = vld [vmem:[%s6 + $0x10] sm:$0xff]
  %v530 = vld [vmem:[%s6 + $0x18] sm:$0xff]
  %v531 = vld [vmem:[%s6 + $0x20] sm:$0xff]
  %v532 = vld [vmem:[%s6 + $0x28] sm:$0xff]
  %v533 = vld [vmem:[%s6 + $0x30] sm:$0xff]
  %v534 = vld [vmem:[%s6 + $0x38] sm:$0xff]
  %v535 = vld [vmem:[%s9] sm:$0x3]
  %v537 = vlaneseq
  %v538 = vshrl.u32 %v537, 7
  %v539 = vsub.s32 0, %v538
  %v540 = vrot.slane %v535, %v539
  %v541 = vlaneseq
  %v542 = vshrl.u32 %v541, 7
  %v543 = vsub.s32 1, %v542
  %v544 = vrot.slane %v535, %v543
  %v555 = vunpack.c.l.b16 %v527
  %v556 = vunpack.c.h.b16 %v527
  %v557 = vunpack.c.l.b16 %v528
  %v558 = vunpack.c.h.b16 %v528
  %v559 = vunpack.c.l.b16 %v529
  %v560 = vunpack.c.h.b16 %v529
  %v561 = vunpack.c.l.b16 %v530
  %v562 = vunpack.c.h.b16 %v530
  %v563 = vunpack.c.l.b16 %v531
  %v564 = vunpack.c.h.b16 %v531
  %v565 = vunpack.c.l.b16 %v532
  %v566 = vunpack.c.h.b16 %v532
  %v567 = vunpack.c.l.b16 %v533
  %v568 = vunpack.c.h.b16 %v533
  %v569 = vunpack.c.l.b16 %v534
  %v570 = vunpack.c.h.b16 %v534
  %v571 = vpack.c.b16 %v557, %v555
  %v572 = vpack.c.b16 %v558, %v556
  %v573 = vpack.c.b16 %v561, %v559
  %v574 = vpack.c.b16 %v562, %v560
  %v575 = vpack.c.b16 %v565, %v563
  %v576 = vpack.c.b16 %v566, %v564
  %v577 = vpack.c.b16 %v569, %v567
  %v578 = vpack.c.b16 %v570, %v568
  %v588 = vsel %vm193, %v526, 0
  %590 = vmatprep.subr.bf16.mxu0 %v572
  %591 = vmatpush1.bf16.msra.mxu0 %v571
  %592 = vmatprep.subr.bf16.mxu0 %v574
  %593 = vmatpush1.bf16.msra.mxu0 %v573
  %594 = vmatprep.subr.bf16.mxu0 %v576
  %595 = vmatpush1.bf16.msra.mxu0 %v575
  %596 = vmatprep.subr.bf16.mxu0 %v578
  %597 = vmatpush1.bf16.msra.mxu0 %v577
  %598 = vmatprep.subr.bf16.mxu0 0
  %599 = vmatpush1.bf16.msra.mxu0 0
  %600 = vmatprep.subr.bf16.mxu0 0
  %601 = vmatpush1.bf16.msra.mxu0 0
  %602 = vmatprep.subr.bf16.mxu0 0
  %603 = vmatpush1.bf16.msra.mxu0 0
  %604 = vmatprep.subr.bf16.mxu0 0
  %605 = vmatpush1.bf16.msra.mxu0 0
  %606 = vmatprep.subr.bf16.mxu0 0
  %607 = vmatpush1.bf16.msra.mxu0 0
  %608 = vmatprep.subr.bf16.mxu0 0
  %609 = vmatpush1.bf16.msra.mxu0 0
  %610 = vmatprep.subr.bf16.mxu0 0
  %611 = vmatpush1.bf16.msra.mxu0 0
  %612 = vmatprep.subr.bf16.mxu0 0
  %613 = vmatpush1.bf16.msra.mxu0 0
  %614 = vmatprep.subr.bf16.mxu0 0
  %615 = vmatpush1.bf16.msra.mxu0 0
  %616 = vmatprep.subr.bf16.mxu0 0
  %617 = vmatpush1.bf16.msra.mxu0 0
  %618 = vmatprep.subr.bf16.mxu0 0
  %619 = vmatpush1.bf16.msra.mxu0 0
  %620 = vmatprep.subr.bf16.mxu0 0
  %621 = vmatpush1.bf16.msra.mxu0 0
  %622 = vmatprep.mubr.bf16.mxu0 0
  %623 = vmatmul.mubr.bf16.gmra.mrb[0].mxu0 %v588
  %v624 = vpop.f32.mrb[0].mxu0
  %v625 = vadd.f32 %v540, %v624
  %v626 = vpop.f32.mrb[0].mxu0
  %v627 = vadd.f32 %v544, %v626
  %v628 = vpop.f32.mrb[0].mxu0
  %v629 = vpop.f32.mrb[0].mxu0
  %630 = vdwg.mxu0
  %v631 = vld [vmem:[#allocation3] sm:$0x3]
  %s632 = scalar_lea.vmem [#allocation4], 6
  %v633 = vld [vmem:[%s632] sm:$0x3]
  %v634 = vadd.f32 %v631, %v625
  %v635 = vxor.u32 %v634, 2147483648
  %v636 = vmul.f32 %v635, 1.442695
  %v637 = vpow.pop %v636
  %v638 = vadd.f32 %v637, 1.0
  %v639 = vrcp.pop %v638
  %v640 = vmul.f32 1.0, %v639
  %643 = vrot.lane.b32.xlu0 %v625, 32
  %v644 = vpop.permute.xlu0 %643
  %645 = vrot.lane.b32.xlu0 %v627, 32
  %v646 = vpop.permute.xlu0 %645
  %v647 = vsel %vm431, %v644, %v646
  %v649 = vadd.f32 %v633, %v647
  %v650 = vxor.u32 %v649, 2147483648
  %v651 = vmul.f32 %v650, 1.442695
  %v652 = vpow.pop %v651
  %v653 = vadd.f32 %v652, 1.0
  %v654 = vrcp.pop %v653
  %v655 = vmul.f32 1.0, %v654
  %656 = vrot.lane.b32.xlu0 %v625, 64
  %v657 = vpop.permute.xlu0 %656
  %v659 = vmul.f32 %v640, %v657
  %661 = vrot.lane.b32.xlu0 %v659, 64
  %v662 = vpop.permute.xlu0 %661
  %v664 = vadd.f32 %v631, %v662
  %v665 = vtanh.pop %v664
  %666 = vrot.lane.b32.xlu0 %v627, 96
  %v667 = vpop.permute.xlu0 %666
  %v669 = vmul.f32 %v655, %v667
  %671 = vrot.lane.b32.xlu0 %v669, 64
  %v672 = vpop.permute.xlu0 %671
  %v674 = vadd.f32 %v633, %v672
  %v675 = vtanh.pop %v674
  %v676 = vsub.f32 1.0, %v640
  %678 = vrot.lane.b32.xlu0 %v665, 96
  %v679 = vpop.permute.xlu0 %678
  %v681 = vmul.f32 %v676, %v679
  %683 = vrot.lane.b32.xlu0 %v525, 32
  %v684 = vpop.permute.xlu0 %683
  %v686 = vmul.f32 %v640, %v684
  %v687 = vadd.f32 %v681, %v686
  %v688 = vsub.f32 1.0, %v655
  %690 = vrot.lane.b32.xlu0 %v675, 96
  %v691 = vpop.permute.xlu0 %690
  %v693 = vmul.f32 %v688, %v691
  %v694 = vmul.f32 %v655, %v525
  %v695 = vadd.f32 %v693, %v694
  %697 = vrot.lane.b32.xlu0 %v687, 96
  %v698 = vpop.permute.xlu0 %697
  %v700 = vsel %vm431, %v698, %v695
  %vm701 = vcmask 517120
  %702 = vst.msk [vmem:[#allocation2] sm:$0x3] %vm701, %v700
  %vm703 = vcmask 254976
  %704 = vst.msk [vmem:[%s10] sm:$0x3] %vm703, %v698
  %706 = vrot.lane.b32.xlu0 %v695, 96
  %v707 = vpop.permute.xlu0 %706
  %s709 = scalar_lea.vmem %s90, 6
  %710 = vst.msk [vmem:[%s709] sm:$0x3] %vm703, %v707
  %v711 = vld [vmem:[#allocation2] sm:$0x3]
  %v712 = vpack.c.bf16 %v711, %v711
  %v713 = vld [vmem:[%s6] sm:$0xff]
  %v714 = vld [vmem:[%s6 + $0x8] sm:$0xff]
  %v715 = vld [vmem:[%s6 + $0x10] sm:$0xff]
  %v716 = vld [vmem:[%s6 + $0x18] sm:$0xff]
  %v717 = vld [vmem:[%s6 + $0x20] sm:$0xff]
  %v718 = vld [vmem:[%s6 + $0x28] sm:$0xff]
  %v719 = vld [vmem:[%s6 + $0x30] sm:$0xff]
  %v720 = vld [vmem:[%s6 + $0x38] sm:$0xff]
  %v721 = vld [vmem:[%s9] sm:$0x3]
  %v723 = vlaneseq
  %v724 = vshrl.u32 %v723, 7
  %v725 = vsub.s32 0, %v724
  %v726 = vrot.slane %v721, %v725
  %v727 = vlaneseq
  %v728 = vshrl.u32 %v727, 7
  %v729 = vsub.s32 1, %v728
  %v730 = vrot.slane %v721, %v729
  %v741 = vunpack.c.l.b16 %v713
  %v742 = vunpack.c.h.b16 %v713
  %v743 = vunpack.c.l.b16 %v714
  %v744 = vunpack.c.h.b16 %v714
  %v745 = vunpack.c.l.b16 %v715
  %v746 = vunpack.c.h.b16 %v715
  %v747 = vunpack.c.l.b16 %v716
  %v748 = vunpack.c.h.b16 %v716
  %v749 = vunpack.c.l.b16 %v717
  %v750 = vunpack.c.h.b16 %v717
  %v751 = vunpack.c.l.b16 %v718
  %v752 = vunpack.c.h.b16 %v718
  %v753 = vunpack.c.l.b16 %v719
  %v754 = vunpack.c.h.b16 %v719
  %v755 = vunpack.c.l.b16 %v720
  %v756 = vunpack.c.h.b16 %v720
  %v757 = vpack.c.b16 %v743, %v741
  %v758 = vpack.c.b16 %v744, %v742
  %v759 = vpack.c.b16 %v747, %v745
  %v760 = vpack.c.b16 %v748, %v746
  %v761 = vpack.c.b16 %v751, %v749
  %v762 = vpack.c.b16 %v752, %v750
  %v763 = vpack.c.b16 %v755, %v753
  %v764 = vpack.c.b16 %v756, %v754
  %v774 = vsel %vm193, %v712, 0
  %776 = vmatprep.subr.bf16.mxu0 %v758
  %777 = vmatpush1.bf16.msra.mxu0 %v757
  %778 = vmatprep.subr.bf16.mxu0 %v760
  %779 = vmatpush1.bf16.msra.mxu0 %v759
  %780 = vmatprep.subr.bf16.mxu0 %v762
  %781 = vmatpush1.bf16.msra.mxu0 %v761
  %782 = vmatprep.subr.bf16.mxu0 %v764
  %783 = vmatpush1.bf16.msra.mxu0 %v763
  %784 = vmatprep.subr.bf16.mxu0 0
  %785 = vmatpush1.bf16.msra.mxu0 0
  %786 = vmatprep.subr.bf16.mxu0 0
  %787 = vmatpush1.bf16.msra.mxu0 0
  %788 = vmatprep.subr.bf16.mxu0 0
  %789 = vmatpush1.bf16.msra.mxu0 0
  %790 = vmatprep.subr.bf16.mxu0 0
  %791 = vmatpush1.bf16.msra.mxu0 0
  %792 = vmatprep.subr.bf16.mxu0 0
  %793 = vmatpush1.bf16.msra.mxu0 0
  %794 = vmatprep.subr.bf16.mxu0 0
  %795 = vmatpush1.bf16.msra.mxu0 0
  %796 = vmatprep.subr.bf16.mxu0 0
  %797 = vmatpush1.bf16.msra.mxu0 0
  %798 = vmatprep.subr.bf16.mxu0 0
  %799 = vmatpush1.bf16.msra.mxu0 0
  %800 = vmatprep.subr.bf16.mxu0 0
  %801 = vmatpush1.bf16.msra.mxu0 0
  %802 = vmatprep.subr.bf16.mxu0 0
  %803 = vmatpush1.bf16.msra.mxu0 0
  %804 = vmatprep.subr.bf16.mxu0 0
  %805 = vmatpush1.bf16.msra.mxu0 0
  %806 = vmatprep.subr.bf16.mxu0 0
  %807 = vmatpush1.bf16.msra.mxu0 0
  %808 = vmatprep.mubr.bf16.mxu0 0
  %809 = vmatmul.mubr.bf16.gmra.mrb[0].mxu0 %v774
  %v810 = vpop.f32.mrb[0].mxu0
  %v811 = vadd.f32 %v726, %v810
  %v812 = vpop.f32.mrb[0].mxu0
  %v813 = vadd.f32 %v730, %v812
  %v814 = vpop.f32.mrb[0].mxu0
  %v815 = vpop.f32.mrb[0].mxu0
  %816 = vdwg.mxu0
  %s817 = scalar_lea.vmem [#allocation3], 2
  %v818 = vld [vmem:[%s817] sm:$0x3]
  %s819 = scalar_lea.vmem [#allocation4], 4
  %v820 = vld [vmem:[%s819] sm:$0x3]
  %v821 = vadd.f32 %v818, %v811
  %v822 = vxor.u32 %v821, 2147483648
  %v823 = vmul.f32 %v822, 1.442695
  %v824 = vpow.pop %v823
  %v825 = vadd.f32 %v824, 1.0
  %v826 = vrcp.pop %v825
  %v827 = vmul.f32 1.0, %v826
  %830 = vrot.lane.b32.xlu0 %v811, 32
  %v831 = vpop.permute.xlu0 %830
  %832 = vrot.lane.b32.xlu0 %v813, 32
  %v833 = vpop.permute.xlu0 %832
  %v834 = vsel %vm431, %v831, %v833
  %v836 = vadd.f32 %v820, %v834
  %v837 = vxor.u32 %v836, 2147483648
  %v838 = vmul.f32 %v837, 1.442695
  %v839 = vpow.pop %v838
  %v840 = vadd.f32 %v839, 1.0
  %v841 = vrcp.pop %v840
  %v842 = vmul.f32 1.0, %v841
  %843 = vrot.lane.b32.xlu0 %v811, 64
  %v844 = vpop.permute.xlu0 %843
  %v846 = vmul.f32 %v827, %v844
  %848 = vrot.lane.b32.xlu0 %v846, 64
  %v849 = vpop.permute.xlu0 %848
  %v851 = vadd.f32 %v818, %v849
  %v852 = vtanh.pop %v851
  %853 = vrot.lane.b32.xlu0 %v813, 96
  %v854 = vpop.permute.xlu0 %853
  %v856 = vmul.f32 %v842, %v854
  %858 = vrot.lane.b32.xlu0 %v856, 64
  %v859 = vpop.permute.xlu0 %858
  %v861 = vadd.f32 %v820, %v859
  %v862 = vtanh.pop %v861
  %v863 = vsub.f32 1.0, %v827
  %865 = vrot.lane.b32.xlu0 %v852, 96
  %v866 = vpop.permute.xlu0 %865
  %v868 = vmul.f32 %v863, %v866
  %870 = vrot.lane.b32.xlu0 %v711, 32
  %v871 = vpop.permute.xlu0 %870
  %v873 = vmul.f32 %v827, %v871
  %v874 = vadd.f32 %v868, %v873
  %v875 = vsub.f32 1.0, %v842
  %877 = vrot.lane.b32.xlu0 %v862, 96
  %v878 = vpop.permute.xlu0 %877
  %v880 = vmul.f32 %v875, %v878
  %v881 = vmul.f32 %v842, %v711
  %v882 = vadd.f32 %v880, %v881
  %884 = vrot.lane.b32.xlu0 %v874, 96
  %v885 = vpop.permute.xlu0 %884
  %v887 = vsel %vm431, %v885, %v882
  %888 = vst.msk [vmem:[#allocation2] sm:$0x3] %vm701, %v887
  %s889 = scalar_lea.vmem %s10, 2
  %890 = vst.msk [vmem:[%s889] sm:$0x3] %vm703, %v885
  %892 = vrot.lane.b32.xlu0 %v882, 96
  %v893 = vpop.permute.xlu0 %892
  %s895 = scalar_lea.vmem %s90, 4
  %896 = vst.msk [vmem:[%s895] sm:$0x3] %vm703, %v893
  %v897 = vld [vmem:[#allocation2] sm:$0x3]
  %v898 = vpack.c.bf16 %v897, %v897
  %v899 = vld [vmem:[%s6] sm:$0xff]
  %v900 = vld [vmem:[%s6 + $0x8] sm:$0xff]
  %v901 = vld [vmem:[%s6 + $0x10] sm:$0xff]
  %v902 = vld [vmem:[%s6 + $0x18] sm:$0xff]
  %v903 = vld [vmem:[%s6 + $0x20] sm:$0xff]
  %v904 = vld [vmem:[%s6 + $0x28] sm:$0xff]
  %v905 = vld [vmem:[%s6 + $0x30] sm:$0xff]
  %v906 = vld [vmem:[%s6 + $0x38] sm:$0xff]
  %v907 = vld [vmem:[%s9] sm:$0x3]
  %v909 = vlaneseq
  %v910 = vshrl.u32 %v909, 7
  %v911 = vsub.s32 0, %v910
  %v912 = vrot.slane %v907, %v911
  %v913 = vlaneseq
  %v914 = vshrl.u32 %v913, 7
  %v915 = vsub.s32 1, %v914
  %v916 = vrot.slane %v907, %v915
  %v927 = vunpack.c.l.b16 %v899
  %v928 = vunpack.c.h.b16 %v899
  %v929 = vunpack.c.l.b16 %v900
  %v930 = vunpack.c.h.b16 %v900
  %v931 = vunpack.c.l.b16 %v901
  %v932 = vunpack.c.h.b16 %v901
  %v933 = vunpack.c.l.b16 %v902
  %v934 = vunpack.c.h.b16 %v902
  %v935 = vunpack.c.l.b16 %v903
  %v936 = vunpack.c.h.b16 %v903
  %v937 = vunpack.c.l.b16 %v904
  %v938 = vunpack.c.h.b16 %v904
  %v939 = vunpack.c.l.b16 %v905
  %v940 = vunpack.c.h.b16 %v905
  %v941 = vunpack.c.l.b16 %v906
  %v942 = vunpack.c.h.b16 %v906
  %v943 = vpack.c.b16 %v929, %v927
  %v944 = vpack.c.b16 %v930, %v928
  %v945 = vpack.c.b16 %v933, %v931
  %v946 = vpack.c.b16 %v934, %v932
  %v947 = vpack.c.b16 %v937, %v935
  %v948 = vpack.c.b16 %v938, %v936
  %v949 = vpack.c.b16 %v941, %v939
  %v950 = vpack.c.b16 %v942, %v940
  %v960 = vsel %vm193, %v898, 0
  %962 = vmatprep.subr.bf16.mxu0 %v944
  %963 = vmatpush1.bf16.msra.mxu0 %v943
  %964 = vmatprep.subr.bf16.mxu0 %v946
  %965 = vmatpush1.bf16.msra.mxu0 %v945
  %966 = vmatprep.subr.bf16.mxu0 %v948
  %967 = vmatpush1.bf16.msra.mxu0 %v947
  %968 = vmatprep.subr.bf16.mxu0 %v950
  %969 = vmatpush1.bf16.msra.mxu0 %v949
  %970 = vmatprep.subr.bf16.mxu0 0
  %971 = vmatpush1.bf16.msra.mxu0 0
  %972 = vmatprep.subr.bf16.mxu0 0
  %973 = vmatpush1.bf16.msra.mxu0 0
  %974 = vmatprep.subr.bf16.mxu0 0
  %975 = vmatpush1.bf16.msra.mxu0 0
  %976 = vmatprep.subr.bf16.mxu0 0
  %977 = vmatpush1.bf16.msra.mxu0 0
  %978 = vmatprep.subr.bf16.mxu0 0
  %979 = vmatpush1.bf16.msra.mxu0 0
  %980 = vmatprep.subr.bf16.mxu0 0
  %981 = vmatpush1.bf16.msra.mxu0 0
  %982 = vmatprep.subr.bf16.mxu0 0
  %983 = vmatpush1.bf16.msra.mxu0 0
  %984 = vmatprep.subr.bf16.mxu0 0
  %985 = vmatpush1.bf16.msra.mxu0 0
  %986 = vmatprep.subr.bf16.mxu0 0
  %987 = vmatpush1.bf16.msra.mxu0 0
  %988 = vmatprep.subr.bf16.mxu0 0
  %989 = vmatpush1.bf16.msra.mxu0 0
  %990 = vmatprep.subr.bf16.mxu0 0
  %991 = vmatpush1.bf16.msra.mxu0 0
  %992 = vmatprep.subr.bf16.mxu0 0
  %993 = vmatpush1.bf16.msra.mxu0 0
  %994 = vmatprep.mubr.bf16.mxu0 0
  %995 = vmatmul.mubr.bf16.gmra.mrb[0].mxu0 %v960
  %v996 = vpop.f32.mrb[0].mxu0
  %v997 = vadd.f32 %v912, %v996
  %v998 = vpop.f32.mrb[0].mxu0
  %v999 = vadd.f32 %v916, %v998
  %v1000 = vpop.f32.mrb[0].mxu0
  %v1001 = vpop.f32.mrb[0].mxu0
  %1002 = vdwg.mxu0
  %s1003 = scalar_lea.vmem [#allocation3], 4
  %v1004 = vld [vmem:[%s1003] sm:$0x3]
  %s1005 = scalar_lea.vmem [#allocation4], 2
  %v1006 = vld [vmem:[%s1005] sm:$0x3]
  %v1007 = vadd.f32 %v1004, %v997
  %v1008 = vxor.u32 %v1007, 2147483648
  %v1009 = vmul.f32 %v1008, 1.442695
  %v1010 = vpow.pop %v1009
  %v1011 = vadd.f32 %v1010, 1.0
  %v1012 = vrcp.pop %v1011
  %v1013 = vmul.f32 1.0, %v1012
  %1016 = vrot.lane.b32.xlu0 %v997, 32
  %v1017 = vpop.permute.xlu0 %1016
  %1018 = vrot.lane.b32.xlu0 %v999, 32
  %v1019 = vpop.permute.xlu0 %1018
  %v1020 = vsel %vm431, %v1017, %v1019
  %v1022 = vadd.f32 %v1006, %v1020
  %v1023 = vxor.u32 %v1022, 2147483648
  %v1024 = vmul.f32 %v1023, 1.442695
  %v1025 = vpow.pop %v1024
  %v1026 = vadd.f32 %v1025, 1.0
  %v1027 = vrcp.pop %v1026
  %v1028 = vmul.f32 1.0, %v1027
  %1029 = vrot.lane.b32.xlu0 %v997, 64
  %v1030 = vpop.permute.xlu0 %1029
  %v1032 = vmul.f32 %v1013, %v1030
  %1034 = vrot.lane.b32.xlu0 %v1032, 64
  %v1035 = vpop.permute.xlu0 %1034
  %v1037 = vadd.f32 %v1004, %v1035
  %v1038 = vtanh.pop %v1037
  %1039 = vrot.lane.b32.xlu0 %v999, 96
  %v1040 = vpop.permute.xlu0 %1039
  %v1042 = vmul.f32 %v1028, %v1040
  %1044 = vrot.lane.b32.xlu0 %v1042, 64
  %v1045 = vpop.permute.xlu0 %1044
  %v1047 = vadd.f32 %v1006, %v1045
  %v1048 = vtanh.pop %v1047
  %v1049 = vsub.f32 1.0, %v1013
  %1051 = vrot.lane.b32.xlu0 %v1038, 96
  %v1052 = vpop.permute.xlu0 %1051
  %v1054 = vmul.f32 %v1049, %v1052
  %1056 = vrot.lane.b32.xlu0 %v897, 32
  %v1057 = vpop.permute.xlu0 %1056
  %v1059 = vmul.f32 %v1013, %v1057
  %v1060 = vadd.f32 %v1054, %v1059
  %v1061 = vsub.f32 1.0, %v1028
  %1063 = vrot.lane.b32.xlu0 %v1048, 96
  %v1064 = vpop.permute.xlu0 %1063
  %v1066 = vmul.f32 %v1061, %v1064
  %v1067 = vmul.f32 %v1028, %v897
  %v1068 = vadd.f32 %v1066, %v1067
  %1070 = vrot.lane.b32.xlu0 %v1060, 96
  %v1071 = vpop.permute.xlu0 %1070
  %v1073 = vsel %vm431, %v1071, %v1068
  %1074 = vst.msk [vmem:[#allocation2] sm:$0x3] %vm701, %v1073
  %s1075 = scalar_lea.vmem %s10, 4
  %1076 = vst.msk [vmem:[%s1075] sm:$0x3] %vm703, %v1071
  %1078 = vrot.lane.b32.xlu0 %v1068, 96
  %v1079 = vpop.permute.xlu0 %1078
  %s1081 = scalar_lea.vmem %s90, 2
  %1082 = vst.msk [vmem:[%s1081] sm:$0x3] %vm703, %v1079
  %v1083 = vld [vmem:[#allocation2] sm:$0x3]
  %v1084 = vpack.c.bf16 %v1083, %v1083
  %v1085 = vld [vmem:[%s6] sm:$0xff]
  %v1086 = vld [vmem:[%s6 + $0x8] sm:$0xff]
  %v1087 = vld [vmem:[%s6 + $0x10] sm:$0xff]
  %v1088 = vld [vmem:[%s6 + $0x18] sm:$0xff]
  %v1089 = vld [vmem:[%s6 + $0x20] sm:$0xff]
  %v1090 = vld [vmem:[%s6 + $0x28] sm:$0xff]
  %v1091 = vld [vmem:[%s6 + $0x30] sm:$0xff]
  %v1092 = vld [vmem:[%s6 + $0x38] sm:$0xff]
  %v1093 = vld [vmem:[%s9] sm:$0x3]
  %v1095 = vlaneseq
  %v1096 = vshrl.u32 %v1095, 7
  %v1097 = vsub.s32 0, %v1096
  %v1098 = vrot.slane %v1093, %v1097
  %v1099 = vlaneseq
  %v1100 = vshrl.u32 %v1099, 7
  %v1101 = vsub.s32 1, %v1100
  %v1102 = vrot.slane %v1093, %v1101
  %v1113 = vunpack.c.l.b16 %v1085
  %v1114 = vunpack.c.h.b16 %v1085
  %v1115 = vunpack.c.l.b16 %v1086
  %v1116 = vunpack.c.h.b16 %v1086
  %v1117 = vunpack.c.l.b16 %v1087
  %v1118 = vunpack.c.h.b16 %v1087
  %v1119 = vunpack.c.l.b16 %v1088
  %v1120 = vunpack.c.h.b16 %v1088
  %v1121 = vunpack.c.l.b16 %v1089
  %v1122 = vunpack.c.h.b16 %v1089
  %v1123 = vunpack.c.l.b16 %v1090
  %v1124 = vunpack.c.h.b16 %v1090
  %v1125 = vunpack.c.l.b16 %v1091
  %v1126 = vunpack.c.h.b16 %v1091
  %v1127 = vunpack.c.l.b16 %v1092
  %v1128 = vunpack.c.h.b16 %v1092
  %v1129 = vpack.c.b16 %v1115, %v1113
  %v1130 = vpack.c.b16 %v1116, %v1114
  %v1131 = vpack.c.b16 %v1119, %v1117
  %v1132 = vpack.c.b16 %v1120, %v1118
  %v1133 = vpack.c.b16 %v1123, %v1121
  %v1134 = vpack.c.b16 %v1124, %v1122
  %v1135 = vpack.c.b16 %v1127, %v1125
  %v1136 = vpack.c.b16 %v1128, %v1126
  %v1146 = vsel %vm193, %v1084, 0
  %1148 = vmatprep.subr.bf16.mxu0 %v1130
  %1149 = vmatpush1.bf16.msra.mxu0 %v1129
  %1150 = vmatprep.subr.bf16.mxu0 %v1132
  %1151 = vmatpush1.bf16.msra.mxu0 %v1131
  %1152 = vmatprep.subr.bf16.mxu0 %v1134
  %1153 = vmatpush1.bf16.msra.mxu0 %v1133
  %1154 = vmatprep.subr.bf16.mxu0 %v1136
  %1155 = vmatpush1.bf16.msra.mxu0 %v1135
  %1156 = vmatprep.subr.bf16.mxu0 0
  %1157 = vmatpush1.bf16.msra.mxu0 0
  %1158 = vmatprep.subr.bf16.mxu0 0
  %1159 = vmatpush1.bf16.msra.mxu0 0
  %1160 = vmatprep.subr.bf16.mxu0 0
  %1161 = vmatpush1.bf16.msra.mxu0 0
  %1162 = vmatprep.subr.bf16.mxu0 0
  %1163 = vmatpush1.bf16.msra.mxu0 0
  %1164 = vmatprep.subr.bf16.mxu0 0
  %1165 = vmatpush1.bf16.msra.mxu0 0
  %1166 = vmatprep.subr.bf16.mxu0 0
  %1167 = vmatpush1.bf16.msra.mxu0 0
  %1168 = vmatprep.subr.bf16.mxu0 0
  %1169 = vmatpush1.bf16.msra.mxu0 0
  %1170 = vmatprep.subr.bf16.mxu0 0
  %1171 = vmatpush1.bf16.msra.mxu0 0
  %1172 = vmatprep.subr.bf16.mxu0 0
  %1173 = vmatpush1.bf16.msra.mxu0 0
  %1174 = vmatprep.subr.bf16.mxu0 0
  %1175 = vmatpush1.bf16.msra.mxu0 0
  %1176 = vmatprep.subr.bf16.mxu0 0
  %1177 = vmatpush1.bf16.msra.mxu0 0
  %1178 = vmatprep.subr.bf16.mxu0 0
  %1179 = vmatpush1.bf16.msra.mxu0 0
  %1180 = vmatprep.mubr.bf16.mxu0 0
  %1181 = vmatmul.mubr.bf16.gmra.mrb[0].mxu0 %v1146
  %v1182 = vpop.f32.mrb[0].mxu0
  %v1183 = vadd.f32 %v1098, %v1182
  %v1184 = vpop.f32.mrb[0].mxu0
  %v1185 = vadd.f32 %v1102, %v1184
  %v1186 = vpop.f32.mrb[0].mxu0
  %v1187 = vpop.f32.mrb[0].mxu0
  %1188 = vdwg.mxu0
  %s1189 = scalar_lea.vmem [#allocation3], 6
  %v1190 = vld [vmem:[%s1189] sm:$0x3]
  %v1191 = vld [vmem:[#allocation4] sm:$0x3]
  %v1192 = vadd.f32 %v1190, %v1183
  %v1193 = vxor.u32 %v1192, 2147483648
  %v1194 = vmul.f32 %v1193, 1.442695
  %v1195 = vpow.pop %v1194
  %v1196 = vadd.f32 %v1195, 1.0
  %v1197 = vrcp.pop %v1196
  %v1198 = vmul.f32 1.0, %v1197
  %1201 = vrot.lane.b32.xlu0 %v1183, 32
  %v1202 = vpop.permute.xlu0 %1201
  %1203 = vrot.lane.b32.xlu0 %v1185, 32
  %v1204 = vpop.permute.xlu0 %1203
  %v1205 = vsel %vm431, %v1202, %v1204
  %v1207 = vadd.f32 %v1191, %v1205
  %v1208 = vxor.u32 %v1207, 2147483648
  %v1209 = vmul.f32 %v1208, 1.442695
  %v1210 = vpow.pop %v1209
  %v1211 = vadd.f32 %v1210, 1.0
  %v1212 = vrcp.pop %v1211
  %v1213 = vmul.f32 1.0, %v1212
  %1214 = vrot.lane.b32.xlu0 %v1183, 64
  %v1215 = vpop.permute.xlu0 %1214
  %v1217 = vmul.f32 %v1198, %v1215
  %1219 = vrot.lane.b32.xlu0 %v1217, 64
  %v1220 = vpop.permute.xlu0 %1219
  %v1222 = vadd.f32 %v1190, %v1220
  %v1223 = vtanh.pop %v1222
  %1224 = vrot.lane.b32.xlu0 %v1185, 96
  %v1225 = vpop.permute.xlu0 %1224
  %v1227 = vmul.f32 %v1213, %v1225
  %1229 = vrot.lane.b32.xlu0 %v1227, 64
  %v1230 = vpop.permute.xlu0 %1229
  %v1232 = vadd.f32 %v1191, %v1230
  %v1233 = vtanh.pop %v1232
  %v1234 = vsub.f32 1.0, %v1198
  %1236 = vrot.lane.b32.xlu0 %v1223, 96
  %v1237 = vpop.permute.xlu0 %1236
  %v1239 = vmul.f32 %v1234, %v1237
  %1241 = vrot.lane.b32.xlu0 %v1083, 32
  %v1242 = vpop.permute.xlu0 %1241
  %v1244 = vmul.f32 %v1198, %v1242
  %v1245 = vadd.f32 %v1239, %v1244
  %v1246 = vsub.f32 1.0, %v1213
  %1248 = vrot.lane.b32.xlu0 %v1233, 96
  %v1249 = vpop.permute.xlu0 %1248
  %v1251 = vmul.f32 %v1246, %v1249
  %v1252 = vmul.f32 %v1213, %v1083
  %v1253 = vadd.f32 %v1251, %v1252
  %1255 = vrot.lane.b32.xlu0 %v1245, 96
  %v1256 = vpop.permute.xlu0 %1255
  %v1258 = vsel %vm431, %v1256, %v1253
  %1259 = vst.msk [vmem:[#allocation2] sm:$0x3] %vm701, %v1258
  %s1260 = scalar_lea.vmem %s10, 6
  %1261 = vst.msk [vmem:[%s1260] sm:$0x3] %vm703, %v1256
  %1263 = vrot.lane.b32.xlu0 %v1253, 96
  %v1264 = vpop.permute.xlu0 %1263
  %1266 = vst.msk [vmem:[%s90] sm:$0x3] %vm703, %v1264
  %v1267 = vld [vmem:[#allocation2] sm:$0x3]
  %1268 = vst.msk [vmem:[%s12] sm:$0x3] %vm703, %v1267
  %v1269 = vld [vmem:[#allocation2] sm:$0x3]
  %1271 = vrot.lane.b32.xlu0 %v1269, 96
  %v1272 = vpop.permute.xlu0 %1271
  %s1274 = scalar_lea.vmem %s12, 2
  %1275 = vst.msk [vmem:[%s1274] sm:$0x3] %vm703, %v1272
  %s1276 = ssub.s32 0, 0
  %s1277 = smul.u32 4, %s1276
  %p1278 = scmp.lt.s32.totalorder %s1277, 3
  %s1279 = scalar_select %p1278, %s1277, 3
  %s1280 = smul.addr %s1279, 2
  %s1281 = scalar_lea.vmem %s11, %s1280
  // Predicated region
  $region46: #{listen_rnn_forward.8} parent=0 // pred_check
    _
  $region47: #{listen_rnn_forward.8} parent=0 // pred_check_branch
    %1283 = sbr.rel (0) target = $region49
  $region48: #{listen_rnn_forward.8} parent=0 // pred_region
    _
  $region49: #{listen_rnn_forward.8} parent=0 // pred_fallthru
    _
  // Predicated region
  $region50: #{listen_rnn_forward.8} parent=0 // pred_check
    _
  $region51: #{listen_rnn_forward.8} parent=0 // pred_check_branch
    %1285 = sbr.rel (0) target = $region53
  $region52: #{listen_rnn_forward.8} parent=0 // pred_region
    %s1286 = ssub.s32 0, 0
    %s1287 = smul.u32 4, %s1286
  $region53: #{listen_rnn_forward.8} parent=0 // pred_fallthru
    _
  // Predicated region
  $region54: #{listen_rnn_forward.8} parent=0 // pred_check
    _
  $region55: #{listen_rnn_forward.8} parent=0 // pred_check_branch
    %1289 = sbr.rel (0) target = $region57
  $region56: #{listen_rnn_forward.8} parent=0 // pred_region
    _
  $region57: #{listen_rnn_forward.8} parent=0 // pred_fallthru
    _
  // Predicated region
  $region58: #{listen_rnn_forward.8} parent=0 // pred_check
    _
  $region59: #{listen_rnn_forward.8} parent=0 // pred_check_branch
    %1291 = sbr.rel (0) target = $region61
  $region60: #{listen_rnn_forward.8} parent=0 // pred_region
    _
  $region61: #{listen_rnn_forward.8} parent=0 // pred_fallthru
    _
  // Predicated region
  $region62: #{listen_rnn_forward.8} parent=0 // pred_check
    _
  $region63: #{listen_rnn_forward.8} parent=0 // pred_check_branch
    %1293 = sbr.rel (0) target = $region65
  $region64: #{listen_rnn_forward.8} parent=0 // pred_region
    %s1294 = ssub.s32 0, 0
    %s1295 = smul.u32 4, %s1294
    %p1296 = scmp.lt.s32.totalorder %s1295, 3
    %s1297 = scalar_select %p1296, %s1295, 3
    %s1298 = smul.addr %s1297, 2
    %s1299 = scalar_lea.vmem %s11, %s1298
  $region65: #{listen_rnn_forward.8} parent=0 // pred_fallthru
    _
  // Predicated region
  $region66: #{listen_rnn_forward.8} parent=0 // pred_check
    _
  $region67: #{listen_rnn_forward.8} parent=0 // pred_check_branch
    %1301 = sbr.rel (0) target = $region69
  $region68: #{listen_rnn_forward.8} parent=0 // pred_region
    _
  $region69: #{listen_rnn_forward.8} parent=0 // pred_fallthru
    _

// kernel: listen_rnn_forward.7
$region0: #{listen_rnn_forward.7}
  #allocation0 [shape = 'u32[]', space=smem, size = 0x4, offset = 0x4, fixed_abs, tag = 'smem constant byte address 0x4 - core index']
  #allocation1 [shape = 'u32[144,128]{1,0:T(1,128)}', space=vmem, size = 0x12000, scoped, tag = 'internal scratch']
  #allocation2 [shape = 'f32[2,64]{1,0:T(2,128)}', space=vmem, size = 0x400, scoped, tag = 'scratch operand']
  #allocation3 [shape = 'f32[4,2,96]{2,1,0:T(2,128)}', space=vmem, size = 0x1000, scoped, tag = 'scratch operand']
  #allocation4 [shape = 'f32[4,2,96]{2,1,0:T(2,128)}', space=vmem, size = 0x1000, scoped, tag = 'scratch operand']
  %s0 = inlined_call_operand.vmem [shape: f32[4,2,256], index: 0, kind: input, shape index: {}, may-alias: {0,1}]
  %s1 = inlined_call_operand.vmem [shape: f32[4,2,256], index: 1, kind: input, shape index: {}, may-alias: {0,1}]
  %s2 = inlined_call_operand.vmem [shape: f32[4,1,32], index: 2, kind: input, shape index: {}, may-alias: {2,3}]
  %s3 = inlined_call_operand.vmem [shape: f32[4,1,32], index: 3, kind: input, shape index: {}, may-alias: {2,3}]
  %s4 = inlined_call_operand.vmem [shape: bf16[256,96], index: 4, kind: input, shape index: {}]
  %s5 = inlined_call_operand.vmem [shape: bf16[256,96], index: 5, kind: input, shape index: {}]
  %s6 = inlined_call_operand.vmem [shape: bf16[64,192], index: 6, kind: input, shape index: {}]
  %s7 = inlined_call_operand.vmem [shape: f32[1,96], index: 7, kind: input, shape index: {}]
  %s8 = inlined_call_operand.vmem [shape: f32[1,96], index: 8, kind: input, shape index: {}]
  %s9 = inlined_call_operand.vmem [shape: f32[1,192], index: 9, kind: input, shape index: {}]
  %s10 = inlined_call_operand.vmem [shape: f32[4,2,32], index: 10, kind: output, shape index: {0}]
  %s11 = inlined_call_operand.vmem [shape: f32[4,2,32], index: 11, kind: output, shape index: {1}]
  %s12 = inlined_call_operand.vmem [shape: f32[2,2,32], index: 12, kind: output, shape index: {2}]
  %13 = xla_tuple %s10, %s11, %s12
  %s14 = sld [smem:[#allocation0]]
  $region70: #{listen_rnn_forward.7} parent=0
    _
  %s16 = ssub.s32 1, %s14
  %s17 = scalar_select 0, %s16, %s14
  // Predicated region
  $region2: #{listen_rnn_forward.7} parent=0 // pred_check
    _
  $region3: #{listen_rnn_forward.7} parent=0 // pred_check_branch
    %19 = sbr.rel (0) target = $region5
  $region4: #{listen_rnn_forward.7} parent=0 // pred_region
    _
  $region5: #{listen_rnn_forward.7} parent=0 // pred_fallthru
    _
  // Predicated region
  $region6: #{listen_rnn_forward.7} parent=0 // pred_check
    _
  $region7: #{listen_rnn_forward.7} parent=0 // pred_check_branch
    %21 = sbr.rel (0) target = $region9
  $region8: #{listen_rnn_forward.7} parent=0 // pred_region
    %s22 = ssub.s32 0, 0
    %s23 = smul.u32 4, %s22
    %p24 = scmp.lt.s32.totalorder %s23, 3
    %s25 = scalar_select %p24, %s23, 3
    %s26 = smul.addr %s25, 2
    %s27 = smul.addr %s26, 2
    %s28 = scalar_lea.vmem %s1, %s27
    %s29 = ssub.s32 0, 0
    %s30 = smul.u32 4, %s29
  $region9: #{listen_rnn_forward.7} parent=0 // pred_fallthru
    _
  // Predicated region
  $region10: #{listen_rnn_forward.7} parent=0 // pred_check
    _
  $region11: #{listen_rnn_forward.7} parent=0 // pred_check_branch
    %32 = sbr.rel (0) target = $region13
  $region12: #{listen_rnn_forward.7} parent=0 // pred_region
    _
  $region13: #{listen_rnn_forward.7} parent=0 // pred_fallthru
    _
  // Predicated region
  $region14: #{listen_rnn_forward.7} parent=0 // pred_check
    _
  $region15: #{listen_rnn_forward.7} parent=0 // pred_check_branch
    %34 = sbr.rel (0) target = $region17
  $region16: #{listen_rnn_forward.7} parent=0 // pred_region
    %s35 = ssub.s32 0, 0
    %s36 = smul.u32 4, %s35
    %p37 = scmp.lt.s32.totalorder %s36, 3
    %s38 = scalar_select %p37, %s36, 3
    %s39 = scalar_lea.vmem %s3, %s38
    %s40 = ssub.s32 0, 0
    %s41 = smul.u32 4, %s40
  $region17: #{listen_rnn_forward.7} parent=0 // pred_fallthru
    _
  // Predicated region
  $region18: #{listen_rnn_forward.7} parent=0 // pred_check
    _
  $region19: #{listen_rnn_forward.7} parent=0 // pred_check_branch
    %43 = sbr.rel (0) target = $region21
  $region20: #{listen_rnn_forward.7} parent=0 // pred_region
    _
  $region21: #{listen_rnn_forward.7} parent=0 // pred_fallthru
    _
  // Predicated region
  $region22: #{listen_rnn_forward.7} parent=0 // pred_check
    _
  $region23: #{listen_rnn_forward.7} parent=0 // pred_check_branch
    %45 = sbr.rel (0) target = $region25
  $region24: #{listen_rnn_forward.7} parent=0 // pred_region
    _
  $region25: #{listen_rnn_forward.7} parent=0 // pred_fallthru
    _
  // Predicated region
  $region26: #{listen_rnn_forward.7} parent=0 // pred_check
    _
  $region27: #{listen_rnn_forward.7} parent=0 // pred_check_branch
    %47 = sbr.rel (0) target = $region29
  $region28: #{listen_rnn_forward.7} parent=0 // pred_region
    _
  $region29: #{listen_rnn_forward.7} parent=0 // pred_fallthru
    _
  // Predicated region
  $region30: #{listen_rnn_forward.7} parent=0 // pred_check
    _
  $region31: #{listen_rnn_forward.7} parent=0 // pred_check_branch
    %49 = sbr.rel (0) target = $region33
  $region32: #{listen_rnn_forward.7} parent=0 // pred_region
    _
  $region33: #{listen_rnn_forward.7} parent=0 // pred_fallthru
    _
  // Predicated region
  $region34: #{listen_rnn_forward.7} parent=0 // pred_check
    _
  $region35: #{listen_rnn_forward.7} parent=0 // pred_check_branch
    %51 = sbr.rel (0) target = $region37
  $region36: #{listen_rnn_forward.7} parent=0 // pred_region
    _
  $region37: #{listen_rnn_forward.7} parent=0 // pred_fallthru
    _
  // Predicated region
  $region38: #{listen_rnn_forward.7} parent=0 // pred_check
    _
  $region39: #{listen_rnn_forward.7} parent=0 // pred_check_branch
    %53 = sbr.rel (0) target = $region41
  $region40: #{listen_rnn_forward.7} parent=0 // pred_region
    _
  $region41: #{listen_rnn_forward.7} parent=0 // pred_fallthru
    _
  %s54 = ssub.s32 0, 0
  %s55 = smul.u32 4, %s54
  %p56 = scmp.lt.s32.totalorder %s55, 3
  %s57 = scalar_select %p56, %s55, 3
  %s58 = smul.addr %s57, 2
  %s59 = smul.addr %s58, 2
  %s60 = scalar_lea.vmem %s1, %s59
  %s61 = ssub.s32 0, 0
  %s62 = smul.u32 4, %s61
  %p63 = scmp.lt.s32.totalorder %s62, 3
  %s64 = scalar_select %p63, %s62, 3
  %s65 = scalar_lea.vmem %s3, %s64
  %s66 = ssub.s32 0, 0
  %s67 = smul.u32 4, %s66
  %p68 = scmp.lt.s32.totalorder %s67, 3
  %s69 = scalar_select %p68, %s67, 3
  %s70 = smul.addr %s69, 2
  %s71 = scalar_lea.vmem %s11, %s70
  %s72 = ssub.s32 0, 0
  %s73 = smul.u32 4, %s72
  %p74 = scmp.lt.s32.totalorder %s73, 3
  %s75 = scalar_select %p74, %s73, 3
  %s76 = smul.addr %s75, 2
  %s77 = smul.addr %s76, 2
  %s78 = scalar_lea.vmem %s1, %s77
  %s79 = ssub.s32 0, 0
  %s80 = smul.u32 4, %s79
  %s81 = ssub.s32 0, 0
  %s82 = smul.u32 4, %s81
  %p83 = scmp.lt.s32.totalorder %s82, 3
  %s84 = scalar_select %p83, %s82, 3
  %s85 = scalar_lea.vmem %s3, %s84
  %s86 = ssub.s32 0, 0
  %s87 = smul.u32 4, %s86
  %s88 = ssub.s32 0, 0
  %s89 = smul.u32 4, %s88
  %p90 = scmp.lt.s32.totalorder %s89, 3
  %s91 = scalar_select %p90, %s89, 3
  %s92 = smul.addr %s91, 2
  %s93 = scalar_lea.vmem %s11, %s92
  %s94 = ssub.s32 0, 0
  %s95 = smul.u32 4, %s94
  %p97 = scmp.eq.s32.totalorder 0, 0
  // Predicated region
  $region42: #{listen_rnn_forward.7} parent=0 // pred_check
    %p98 = pneg %p97
  $region43: #{listen_rnn_forward.7} parent=0 // pred_check_branch
    %100 = sbr.rel (%p98) target = $region45
  $region44: #{listen_rnn_forward.7} parent=0 // pred_region
    %vm101 = vcmask 517120
    %102 = vst.msk [vmem:[#allocation2] sm:$0x3] %vm101, 0.0
  $region45: #{listen_rnn_forward.7} parent=0 // pred_fallthru
    _
  %v103 = vld [vmem:[%s0] sm:$0xf]
  %v104 = vld [vmem:[%s0 + $0x4] sm:$0xf]
  %v105 = vld [vmem:[%s0 + $0x8] sm:$0xf]
  %v106 = vld [vmem:[%s0 + $0xc] sm:$0xf]
  %v111 = vcombine.low %v103, %v104
  %v112 = vcombine.low %v105, %v106
  %v114 = vunpack.c.l.s4 1983009808
  %v115 = vunpack.c.0.s8 %v114
  %v116 = vlaneseq
  %v117 = vshrl.u32 %v116, 7
  %v118 = vsub.s32 %v115, %v117
  %v119 = vrot.slane %v111, %v118
  %v121 = vunpack.c.l.s4 1983009808
  %v122 = vunpack.c.0.s8 %v121
  %v123 = vlaneseq
  %v124 = vshrl.u32 %v123, 7
  %v125 = vsub.s32 %v122, %v124
  %v126 = vrot.slane %v112, %v125
  %v127 = vcombine.low %v119, %v126
  %v128 = vcombine.high %v119, %v126
  %v131 = vpack.c.bf16 %v127, %v127
  %v132 = vpack.c.bf16 %v128, %v128
  %v133 = vld [vmem:[%s78] sm:$0xf]
  %v134 = vld [vmem:[%s78 + $0x4] sm:$0xf]
  %v135 = vld [vmem:[%s78 + $0x8] sm:$0xf]
  %v136 = vld [vmem:[%s78 + $0xc] sm:$0xf]
  %v141 = vcombine.low %v133, %v134
  %v142 = vcombine.low %v135, %v136
  %v144 = vunpack.c.l.s4 1983009808
  %v145 = vunpack.c.0.s8 %v144
  %v146 = vlaneseq
  %v147 = vshrl.u32 %v146, 7
  %v148 = vsub.s32 %v145, %v147
  %v149 = vrot.slane %v141, %v148
  %v151 = vunpack.c.l.s4 1983009808
  %v152 = vunpack.c.0.s8 %v151
  %v153 = vlaneseq
  %v154 = vshrl.u32 %v153, 7
  %v155 = vsub.s32 %v152, %v154
  %v156 = vrot.slane %v142, %v155
  %v157 = vcombine.low %v149, %v156
  %v158 = vcombine.high %v149, %v156
  %v161 = vpack.c.bf16 %v157, %v157
  %v162 = vpack.c.bf16 %v158, %v158
  %v163 = vld [vmem:[%s4] sm:$0xf]
  %v164 = vld [vmem:[%s4 + $0x4] sm:$0xf]
  %v165 = vld [vmem:[%s4 + $0x8] sm:$0xf]
  %v166 = vld [vmem:[%s4 + $0xc] sm:$0xf]
  %v167 = vld [vmem:[%s4 + $0x10] sm:$0xf]
  %v168 = vld [vmem:[%s4 + $0x14] sm:$0xf]
  %v169 = vld [vmem:[%s4 + $0x18] sm:$0xf]
  %v170 = vld [vmem:[%s4 + $0x1c] sm:$0xf]
  %v171 = vld [vmem:[%s4 + $0x20] sm:$0xf]
  %v172 = vld [vmem:[%s4 + $0x24] sm:$0xf]
  %v173 = vld [vmem:[%s4 + $0x28] sm:$0xf]
  %v174 = vld [vmem:[%s4 + $0x2c] sm:$0xf]
  %v175 = vld [vmem:[%s4 + $0x30] sm:$0xf]
  %v176 = vld [vmem:[%s4 + $0x34] sm:$0xf]
  %v177 = vld [vmem:[%s4 + $0x38] sm:$0xf]
  %v178 = vld [vmem:[%s4 + $0x3c] sm:$0xf]
  %v179 = vld [vmem:[%s4 + $0x40] sm:$0xf]
  %v180 = vld [vmem:[%s4 + $0x44] sm:$0xf]
  %v181 = vld [vmem:[%s4 + $0x48] sm:$0xf]
  %v182 = vld [vmem:[%s4 + $0x4c] sm:$0xf]
  %v183 = vld [vmem:[%s4 + $0x50] sm:$0xf]
  %v184 = vld [vmem:[%s4 + $0x54] sm:$0xf]
  %v185 = vld [vmem:[%s4 + $0x58] sm:$0xf]
  %v186 = vld [vmem:[%s4 + $0x5c] sm:$0xf]
  %v187 = vld [vmem:[%s4 + $0x60] sm:$0xf]
  %v188 = vld [vmem:[%s4 + $0x64] sm:$0xf]
  %v189 = vld [vmem:[%s4 + $0x68] sm:$0xf]
  %v190 = vld [vmem:[%s4 + $0x6c] sm:$0xf]
  %v191 = vld [vmem:[%s4 + $0x70] sm:$0xf]
  %v192 = vld [vmem:[%s4 + $0x74] sm:$0xf]
  %v193 = vld [vmem:[%s4 + $0x78] sm:$0xf]
  %v194 = vld [vmem:[%s4 + $0x7c] sm:$0xf]
  %v195 = vld [vmem:[%s7] sm:$0x1]
  %v197 = vlaneseq
  %v198 = vshrl.u32 %v197, 7
  %v199 = vsub.s32 0, %v198
  %v200 = vrot.slane %v195, %v199
  %v234 = vunpack.c.l.b16 %v163
  %v235 = vunpack.c.l.b16 %v164
  %v236 = vunpack.c.l.b16 %v165
  %v237 = vunpack.c.l.b16 %v166
  %v238 = vunpack.c.l.b16 %v167
  %v239 = vunpack.c.l.b16 %v168
  %v240 = vunpack.c.l.b16 %v169
  %v241 = vunpack.c.l.b16 %v170
  %v242 = vunpack.c.l.b16 %v171
  %v243 = vunpack.c.l.b16 %v172
  %v244 = vunpack.c.l.b16 %v173
  %v245 = vunpack.c.l.b16 %v174
  %v246 = vunpack.c.l.b16 %v175
  %v247 = vunpack.c.l.b16 %v176
  %v248 = vunpack.c.l.b16 %v177
  %v249 = vunpack.c.l.b16 %v178
  %v250 = vunpack.c.l.b16 %v179
  %v251 = vunpack.c.l.b16 %v180
  %v252 = vunpack.c.l.b16 %v181
  %v253 = vunpack.c.l.b16 %v182
  %v254 = vunpack.c.l.b16 %v183
  %v255 = vunpack.c.l.b16 %v184
  %v256 = vunpack.c.l.b16 %v185
  %v257 = vunpack.c.l.b16 %v186
  %v258 = vunpack.c.l.b16 %v187
  %v259 = vunpack.c.l.b16 %v188
  %v260 = vunpack.c.l.b16 %v189
  %v261 = vunpack.c.l.b16 %v190
  %v262 = vunpack.c.l.b16 %v191
  %v263 = vunpack.c.l.b16 %v192
  %v264 = vunpack.c.l.b16 %v193
  %v265 = vunpack.c.l.b16 %v194
  %v266 = vpack.c.b16 %v235, %v234
  %v267 = vpack.c.b16 %v237, %v236
  %v268 = vpack.c.b16 %v239, %v238
  %v269 = vpack.c.b16 %v241, %v240
  %v270 = vpack.c.b16 %v243, %v242
  %v271 = vpack.c.b16 %v245, %v244
  %v272 = vpack.c.b16 %v247, %v246
  %v273 = vpack.c.b16 %v249, %v248
  %v274 = vpack.c.b16 %v251, %v250
  %v275 = vpack.c.b16 %v253, %v252
  %v276 = vpack.c.b16 %v255, %v254
  %v277 = vpack.c.b16 %v257, %v256
  %v278 = vpack.c.b16 %v259, %v258
  %v279 = vpack.c.b16 %v261, %v260
  %v280 = vpack.c.b16 %v263, %v262
  %v281 = vpack.c.b16 %v265, %v264
  %298 = vmatprep.subr.bf16.mxu0 0
  %299 = vmatpush1.bf16.msra.mxu0 %v266
  %300 = vmatprep.subr.bf16.mxu0 0
  %301 = vmatpush1.bf16.msra.mxu0 %v267
  %302 = vmatprep.subr.bf16.mxu0 0
  %303 = vmatpush1.bf16.msra.mxu0 %v268
  %304 = vmatprep.subr.bf16.mxu0 0
  %305 = vmatpush1.bf16.msra.mxu0 %v269
  %306 = vmatprep.subr.bf16.mxu0 0
  %307 = vmatpush1.bf16.msra.mxu0 %v270
  %308 = vmatprep.subr.bf16.mxu0 0
  %309 = vmatpush1.bf16.msra.mxu0 %v271
  %310 = vmatprep.subr.bf16.mxu0 0
  %311 = vmatpush1.bf16.msra.mxu0 %v272
  %312 = vmatprep.subr.bf16.mxu0 0
  %313 = vmatpush1.bf16.msra.mxu0 %v273
  %314 = vmatprep.subr.bf16.mxu0 0
  %315 = vmatpush1.bf16.msra.mxu0 %v274
  %316 = vmatprep.subr.bf16.mxu0 0
  %317 = vmatpush1.bf16.msra.mxu0 %v275
  %318 = vmatprep.subr.bf16.mxu0 0
  %319 = vmatpush1.bf16.msra.mxu0 %v276
  %320 = vmatprep.subr.bf16.mxu0 0
  %321 = vmatpush1.bf16.msra.mxu0 %v277
  %322 = vmatprep.subr.bf16.mxu0 0
  %323 = vmatpush1.bf16.msra.mxu0 %v278
  %324 = vmatprep.subr.bf16.mxu0 0
  %325 = vmatpush1.bf16.msra.mxu0 %v279
  %326 = vmatprep.subr.bf16.mxu0 0
  %327 = vmatpush1.bf16.msra.mxu0 %v280
  %328 = vmatprep.subr.bf16.mxu0 0
  %329 = vmatpush1.bf16.msra.mxu0 %v281
  %330 = vmatprep.mubr.bf16.mxu0 %v132
  %331 = vmatmul.mubr.bf16.gmra.mrb[0].mxu0 %v131
  %v332 = vpop.f32.mrb[0].mxu0
  %v333 = vadd.f32 %v200, %v332
  %v334 = vpop.f32.mrb[0].mxu0
  %v335 = vpop.f32.mrb[0].mxu0
  %v336 = vpop.f32.mrb[0].mxu0
  %337 = vdwg.mxu0
  %v339 = vcombine.high %v333, %v333
  %v341 = vunpack.c.l.s4 1983009808
  %v342 = vunpack.c.0.s8 %v341
  %v343 = vlaneseq
  %v344 = vshrl.u32 %v343, 7
  %v345 = vsub.s32 %v342, %v344
  %v346 = vrot.slane %v333, %v345
  %v348 = vunpack.c.l.s4 1983009808
  %v349 = vunpack.c.0.s8 %v348
  %v350 = vlaneseq
  %v351 = vshrl.u32 %v350, 7
  %v352 = vsub.s32 %v349, %v351
  %v353 = vrot.slane %v339, %v352
  %v354 = vcombine.high %v346, %v346
  %v355 = vcombine.high %v353, %v353
  %v360 = vld [vmem:[%s5] sm:$0xf]
  %v361 = vld [vmem:[%s5 + $0x4] sm:$0xf]
  %v362 = vld [vmem:[%s5 + $0x8] sm:$0xf]
  %v363 = vld [vmem:[%s5 + $0xc] sm:$0xf]
  %v364 = vld [vmem:[%s5 + $0x10] sm:$0xf]
  %v365 = vld [vmem:[%s5 + $0x14] sm:$0xf]
  %v366 = vld [vmem:[%s5 + $0x18] sm:$0xf]
  %v367 = vld [vmem:[%s5 + $0x1c] sm:$0xf]
  %v368 = vld [vmem:[%s5 + $0x20] sm:$0xf]
  %v369 = vld [vmem:[%s5 + $0x24] sm:$0xf]
  %v370 = vld [vmem:[%s5 + $0x28] sm:$0xf]
  %v371 = vld [vmem:[%s5 + $0x2c] sm:$0xf]
  %v372 = vld [vmem:[%s5 + $0x30] sm:$0xf]
  %v373 = vld [vmem:[%s5 + $0x34] sm:$0xf]
  %v374 = vld [vmem:[%s5 + $0x38] sm:$0xf]
  %v375 = vld [vmem:[%s5 + $0x3c] sm:$0xf]
  %v376 = vld [vmem:[%s5 + $0x40] sm:$0xf]
  %v377 = vld [vmem:[%s5 + $0x44] sm:$0xf]
  %v378 = vld [vmem:[%s5 + $0x48] sm:$0xf]
  %v379 = vld [vmem:[%s5 + $0x4c] sm:$0xf]
  %v380 = vld [vmem:[%s5 + $0x50] sm:$0xf]
  %v381 = vld [vmem:[%s5 + $0x54] sm:$0xf]
  %v382 = vld [vmem:[%s5 + $0x58] sm:$0xf]
  %v383 = vld [vmem:[%s5 + $0x5c] sm:$0xf]
  %v384 = vld [vmem:[%s5 + $0x60] sm:$0xf]
  %v385 = vld [vmem:[%s5 + $0x64] sm:$0xf]
  %v386 = vld [vmem:[%s5 + $0x68] sm:$0xf]
  %v387 = vld [vmem:[%s5 + $0x6c] sm:$0xf]
  %v388 = vld [vmem:[%s5 + $0x70] sm:$0xf]
  %v389 = vld [vmem:[%s5 + $0x74] sm:$0xf]
  %v390 = vld [vmem:[%s5 + $0x78] sm:$0xf]
  %v391 = vld [vmem:[%s5 + $0x7c] sm:$0xf]
  %v392 = vld [vmem:[%s8] sm:$0x1]
  %v394 = vlaneseq
  %v395 = vshrl.u32 %v394, 7
  %v396 = vsub.s32 0, %v395
  %v397 = vrot.slane %v392, %v396
  %v431 = vunpack.c.l.b16 %v360
  %v432 = vunpack.c.l.b16 %v361
  %v433 = vunpack.c.l.b16 %v362
  %v434 = vunpack.c.l.b16 %v363
  %v435 = vunpack.c.l.b16 %v364
  %v436 = vunpack.c.l.b16 %v365
  %v437 = vunpack.c.l.b16 %v366
  %v438 = vunpack.c.l.b16 %v367
  %v439 = vunpack.c.l.b16 %v368
  %v440 = vunpack.c.l.b16 %v369
  %v441 = vunpack.c.l.b16 %v370
  %v442 = vunpack.c.l.b16 %v371
  %v443 = vunpack.c.l.b16 %v372
  %v444 = vunpack.c.l.b16 %v373
  %v445 = vunpack.c.l.b16 %v374
  %v446 = vunpack.c.l.b16 %v375
  %v447 = vunpack.c.l.b16 %v376
  %v448 = vunpack.c.l.b16 %v377
  %v449 = vunpack.c.l.b16 %v378
  %v450 = vunpack.c.l.b16 %v379
  %v451 = vunpack.c.l.b16 %v380
  %v452 = vunpack.c.l.b16 %v381
  %v453 = vunpack.c.l.b16 %v382
  %v454 = vunpack.c.l.b16 %v383
  %v455 = vunpack.c.l.b16 %v384
  %v456 = vunpack.c.l.b16 %v385
  %v457 = vunpack.c.l.b16 %v386
  %v458 = vunpack.c.l.b16 %v387
  %v459 = vunpack.c.l.b16 %v388
  %v460 = vunpack.c.l.b16 %v389
  %v461 = vunpack.c.l.b16 %v390
  %v462 = vunpack.c.l.b16 %v391
  %v463 = vpack.c.b16 %v432, %v431
  %v464 = vpack.c.b16 %v434, %v433
  %v465 = vpack.c.b16 %v436, %v435
  %v466 = vpack.c.b16 %v438, %v437
  %v467 = vpack.c.b16 %v440, %v439
  %v468 = vpack.c.b16 %v442, %v441
  %v469 = vpack.c.b16 %v444, %v443
  %v470 = vpack.c.b16 %v446, %v445
  %v471 = vpack.c.b16 %v448, %v447
  %v472 = vpack.c.b16 %v450, %v449
  %v473 = vpack.c.b16 %v452, %v451
  %v474 = vpack.c.b16 %v454, %v453
  %v475 = vpack.c.b16 %v456, %v455
  %v476 = vpack.c.b16 %v458, %v457
  %v477 = vpack.c.b16 %v460, %v459
  %v478 = vpack.c.b16 %v462, %v461
  %495 = vmatprep.subr.bf16.mxu0 0
  %496 = vmatpush1.bf16.msra.mxu0 %v463
  %497 = vmatprep.subr.bf16.mxu0 0
  %498 = vmatpush1.bf16.msra.mxu0 %v464
  %499 = vmatprep.subr.bf16.mxu0 0
  %500 = vmatpush1.bf16.msra.mxu0 %v465
  %501 = vmatprep.subr.bf16.mxu0 0
  %502 = vmatpush1.bf16.msra.mxu0 %v466
  %503 = vmatprep.subr.bf16.mxu0 0
  %504 = vmatpush1.bf16.msra.mxu0 %v467
  %505 = vmatprep.subr.bf16.mxu0 0
  %506 = vmatpush1.bf16.msra.mxu0 %v468
  %507 = vmatprep.subr.bf16.mxu0 0
  %508 = vmatpush1.bf16.msra.mxu0 %v469
  %509 = vmatprep.subr.bf16.mxu0 0
  %510 = vmatpush1.bf16.msra.mxu0 %v470
  %511 = vmatprep.subr.bf16.mxu0 0
  %512 = vmatpush1.bf16.msra.mxu0 %v471
  %513 = vmatprep.subr.bf16.mxu0 0
  %514 = vmatpush1.bf16.msra.mxu0 %v472
  %515 = vmatprep.subr.bf16.mxu0 0
  %516 = vmatpush1.bf16.msra.mxu0 %v473
  %517 = vmatprep.subr.bf16.mxu0 0
  %518 = vmatpush1.bf16.msra.mxu0 %v474
  %519 = vmatprep.subr.bf16.mxu0 0
  %520 = vmatpush1.bf16.msra.mxu0 %v475
  %521 = vmatprep.subr.bf16.mxu0 0
  %522 = vmatpush1.bf16.msra.mxu0 %v476
  %523 = vmatprep.subr.bf16.mxu0 0
  %524 = vmatpush1.bf16.msra.mxu0 %v477
  %525 = vmatprep.subr.bf16.mxu0 0
  %526 = vmatpush1.bf16.msra.mxu0 %v478
  %527 = vmatprep.mubr.bf16.mxu0 %v162
  %528 = vmatmul.mubr.bf16.gmra.mrb[0].mxu0 %v161
  %v529 = vpop.f32.mrb[0].mxu0
  %v530 = vadd.f32 %v397, %v529
  %v531 = vpop.f32.mrb[0].mxu0
  %v532 = vpop.f32.mrb[0].mxu0
  %v533 = vpop.f32.mrb[0].mxu0
  %534 = vdwg.mxu0
  %v536 = vcombine.high %v530, %v530
  %v538 = vunpack.c.l.s4 1983009808
  %v539 = vunpack.c.0.s8 %v538
  %v540 = vlaneseq
  %v541 = vshrl.u32 %v540, 7
  %v542 = vsub.s32 %v539, %v541
  %v543 = vrot.slane %v530, %v542
  %v545 = vunpack.c.l.s4 1983009808
  %v546 = vunpack.c.0.s8 %v545
  %v547 = vlaneseq
  %v548 = vshrl.u32 %v547, 7
  %v549 = vsub.s32 %v546, %v548
  %v550 = vrot.slane %v536, %v549
  %v551 = vcombine.high %v543, %v543
  %v552 = vcombine.high %v550, %v550
  %v557 = vld [vmem:[%s2] sm:$0x1]
  %v558 = vld [vmem:[%s2 + $0x1] sm:$0x1]
  %v559 = vld [vmem:[%s2 + $0x2] sm:$0x1]
  %v560 = vld [vmem:[%s2 + $0x3] sm:$0x1]
  %v565 = vlaneseq
  %v566 = vshrl.u32 %v565, 7
  %v567 = vsub.s32 0, %v566
  %v568 = vrot.slane %v557, %v567
  %v569 = vlaneseq
  %v570 = vshrl.u32 %v569, 7
  %v571 = vsub.s32 0, %v570
  %v572 = vrot.slane %v558, %v571
  %v573 = vlaneseq
  %v574 = vshrl.u32 %v573, 7
  %v575 = vsub.s32 0, %v574
  %v576 = vrot.slane %v559, %v575
  %v577 = vlaneseq
  %v578 = vshrl.u32 %v577, 7
  %v579 = vsub.s32 0, %v578
  %v580 = vrot.slane %v560, %v579
  %v582 = vunpack.c.l.s4 1983009808
  %v583 = vunpack.c.0.s8 %v582
  %v584 = vlaneseq
  %v585 = vshrl.u32 %v584, 7
  %v586 = vsub.s32 %v583, %v585
  %v587 = vrot.slane %v568, %v586
  %v589 = vunpack.c.l.s4 1983009808
  %v590 = vunpack.c.0.s8 %v589
  %v591 = vlaneseq
  %v592 = vshrl.u32 %v591, 7
  %v593 = vsub.s32 %v590, %v592
  %v594 = vrot.slane %v572, %v593
  %v596 = vunpack.c.l.s4 1983009808
  %v597 = vunpack.c.0.s8 %v596
  %v598 = vlaneseq
  %v599 = vshrl.u32 %v598, 7
  %v600 = vsub.s32 %v597, %v599
  %v601 = vrot.slane %v576, %v600
  %v603 = vunpack.c.l.s4 1983009808
  %v604 = vunpack.c.0.s8 %v603
  %v605 = vlaneseq
  %v606 = vshrl.u32 %v605, 7
  %v607 = vsub.s32 %v604, %v606
  %v608 = vrot.slane %v580, %v607
  %609 = vrot.lane.b32.xlu0 %v587, 32
  %v610 = vpop.permute.xlu0 %609
  %611 = vrot.lane.b32.xlu0 %v594, 32
  %v612 = vpop.permute.xlu0 %611
  %613 = vrot.lane.b32.xlu0 %v601, 32
  %v614 = vpop.permute.xlu0 %613
  %615 = vrot.lane.b32.xlu0 %v608, 32
  %v616 = vpop.permute.xlu0 %615
  %v621 = vadd.f32 %v346, %v610
  %v622 = vadd.f32 %v354, %v612
  %v623 = vadd.f32 %v353, %v614
  %v624 = vadd.f32 %v355, %v616
  %vm625 = vcmask 261120
  %v626 = vsel %vm625, %v346, %v621
  %v627 = vsel %vm625, %v354, %v622
  %v628 = vsel %vm625, %v353, %v623
  %v629 = vsel %vm625, %v355, %v624
  %vm630 = vcmask 523264
  %v631 = vsel %vm630, %v626, %v346
  %v632 = vsel %vm630, %v627, %v354
  %v633 = vsel %vm630, %v628, %v353
  %v634 = vsel %vm630, %v629, %v355
  %vm635 = vcmask 779264
  %636 = vst.msk [vmem:[#allocation3] sm:$0x3] %vm635, %v631
  %637 = vst.msk [vmem:[#allocation3 + $0x2] sm:$0x3] %vm635, %v632
  %638 = vst.msk [vmem:[#allocation3 + $0x4] sm:$0x3] %vm635, %v633
  %639 = vst.msk [vmem:[#allocation3 + $0x6] sm:$0x3] %vm635, %v634
  %v640 = vld [vmem:[%s85] sm:$0x1]
  %v641 = vld [vmem:[%s85 + $0x1] sm:$0x1]
  %v642 = vld [vmem:[%s85 + $0x2] sm:$0x1]
  %v643 = vld [vmem:[%s85 + $0x3] sm:$0x1]
  %v648 = vlaneseq
  %v649 = vshrl.u32 %v648, 7
  %v650 = vsub.s32 0, %v649
  %v651 = vrot.slane %v640, %v650
  %v652 = vlaneseq
  %v653 = vshrl.u32 %v652, 7
  %v654 = vsub.s32 0, %v653
  %v655 = vrot.slane %v641, %v654
  %v656 = vlaneseq
  %v657 = vshrl.u32 %v656, 7
  %v658 = vsub.s32 0, %v657
  %v659 = vrot.slane %v642, %v658
  %v660 = vlaneseq
  %v661 = vshrl.u32 %v660, 7
  %v662 = vsub.s32 0, %v661
  %v663 = vrot.slane %v643, %v662
  %v665 = vunpack.c.l.s4 1983009808
  %v666 = vunpack.c.0.s8 %v665
  %v667 = vlaneseq
  %v668 = vshrl.u32 %v667, 7
  %v669 = vsub.s32 %v666, %v668
  %v670 = vrot.slane %v651, %v669
  %v672 = vunpack.c.l.s4 1983009808
  %v673 = vunpack.c.0.s8 %v672
  %v674 = vlaneseq
  %v675 = vshrl.u32 %v674, 7
  %v676 = vsub.s32 %v673, %v675
  %v677 = vrot.slane %v655, %v676
  %v679 = vunpack.c.l.s4 1983009808
  %v680 = vunpack.c.0.s8 %v679
  %v681 = vlaneseq
  %v682 = vshrl.u32 %v681, 7
  %v683 = vsub.s32 %v680, %v682
  %v684 = vrot.slane %v659, %v683
  %v686 = vunpack.c.l.s4 1983009808
  %v687 = vunpack.c.0.s8 %v686
  %v688 = vlaneseq
  %v689 = vshrl.u32 %v688, 7
  %v690 = vsub.s32 %v687, %v689
  %v691 = vrot.slane %v663, %v690
  %692 = vrot.lane.b32.xlu0 %v670, 32
  %v693 = vpop.permute.xlu0 %692
  %694 = vrot.lane.b32.xlu0 %v677, 32
  %v695 = vpop.permute.xlu0 %694
  %696 = vrot.lane.b32.xlu0 %v684, 32
  %v697 = vpop.permute.xlu0 %696
  %698 = vrot.lane.b32.xlu0 %v691, 32
  %v699 = vpop.permute.xlu0 %698
  %v704 = vadd.f32 %v543, %v693
  %v705 = vadd.f32 %v551, %v695
  %v706 = vadd.f32 %v550, %v697
  %v707 = vadd.f32 %v552, %v699
  %v708 = vsel %vm625, %v543, %v704
  %v709 = vsel %vm625, %v551, %v705
  %v710 = vsel %vm625, %v550, %v706
  %v711 = vsel %vm625, %v552, %v707
  %v712 = vsel %vm630, %v708, %v543
  %v713 = vsel %vm630, %v709, %v551
  %v714 = vsel %vm630, %v710, %v550
  %v715 = vsel %vm630, %v711, %v552
  %716 = vst.msk [vmem:[#allocation4] sm:$0x3] %vm635, %v712
  %717 = vst.msk [vmem:[#allocation4 + $0x2] sm:$0x3] %vm635, %v713
  %718 = vst.msk [vmem:[#allocation4 + $0x4] sm:$0x3] %vm635, %v714
  %719 = vst.msk [vmem:[#allocation4 + $0x6] sm:$0x3] %vm635, %v715
  %v720 = vld [vmem:[#allocation2] sm:$0x3]
  %v721 = vpack.c.bf16 %v720, %v720
  %v722 = vld [vmem:[%s6] sm:$0xff]
  %v723 = vld [vmem:[%s6 + $0x8] sm:$0xff]
  %v724 = vld [vmem:[%s6 + $0x10] sm:$0xff]
  %v725 = vld [vmem:[%s6 + $0x18] sm:$0xff]
  %v726 = vld [vmem:[%s6 + $0x20] sm:$0xff]
  %v727 = vld [vmem:[%s6 + $0x28] sm:$0xff]
  %v728 = vld [vmem:[%s6 + $0x30] sm:$0xff]
  %v729 = vld [vmem:[%s6 + $0x38] sm:$0xff]
  %v730 = vld [vmem:[%s9] sm:$0x3]
  %v732 = vlaneseq
  %v733 = vshrl.u32 %v732, 7
  %v734 = vsub.s32 0, %v733
  %v735 = vrot.slane %v730, %v734
  %v736 = vlaneseq
  %v737 = vshrl.u32 %v736, 7
  %v738 = vsub.s32 1, %v737
  %v739 = vrot.slane %v730, %v738
  %v750 = vunpack.c.l.b16 %v722
  %v751 = vunpack.c.h.b16 %v722
  %v752 = vunpack.c.l.b16 %v723
  %v753 = vunpack.c.h.b16 %v723
  %v754 = vunpack.c.l.b16 %v724
  %v755 = vunpack.c.h.b16 %v724
  %v756 = vunpack.c.l.b16 %v725
  %v757 = vunpack.c.h.b16 %v725
  %v758 = vunpack.c.l.b16 %v726
  %v759 = vunpack.c.h.b16 %v726
  %v760 = vunpack.c.l.b16 %v727
  %v761 = vunpack.c.h.b16 %v727
  %v762 = vunpack.c.l.b16 %v728
  %v763 = vunpack.c.h.b16 %v728
  %v764 = vunpack.c.l.b16 %v729
  %v765 = vunpack.c.h.b16 %v729
  %v766 = vpack.c.b16 %v752, %v750
  %v767 = vpack.c.b16 %v753, %v751
  %v768 = vpack.c.b16 %v756, %v754
  %v769 = vpack.c.b16 %v757, %v755
  %v770 = vpack.c.b16 %v760, %v758
  %v771 = vpack.c.b16 %v761, %v759
  %v772 = vpack.c.b16 %v764, %v762
  %v773 = vpack.c.b16 %v765, %v763
  %v783 = vsel %vm630, %v721, 0
  %785 = vmatprep.subr.bf16.mxu0 %v767
  %786 = vmatpush1.bf16.msra.mxu0 %v766
  %787 = vmatprep.subr.bf16.mxu0 %v769
  %788 = vmatpush1.bf16.msra.mxu0 %v768
  %789 = vmatprep.subr.bf16.mxu0 %v771
  %790 = vmatpush1.bf16.msra.mxu0 %v770
  %791 = vmatprep.subr.bf16.mxu0 %v773
  %792 = vmatpush1.bf16.msra.mxu0 %v772
  %793 = vmatprep.subr.bf16.mxu0 0
  %794 = vmatpush1.bf16.msra.mxu0 0
  %795 = vmatprep.subr.bf16.mxu0 0
  %796 = vmatpush1.bf16.msra.mxu0 0
  %797 = vmatprep.subr.bf16.mxu0 0
  %798 = vmatpush1.bf16.msra.mxu0 0
  %799 = vmatprep.subr.bf16.mxu0 0
  %800 = vmatpush1.bf16.msra.mxu0 0
  %801 = vmatprep.subr.bf16.mxu0 0
  %802 = vmatpush1.bf16.msra.mxu0 0
  %803 = vmatprep.subr.bf16.mxu0 0
  %804 = vmatpush1.bf16.msra.mxu0 0
  %805 = vmatprep.subr.bf16.mxu0 0
  %806 = vmatpush1.bf16.msra.mxu0 0
  %807 = vmatprep.subr.bf16.mxu0 0
  %808 = vmatpush1.bf16.msra.mxu0 0
  %809 = vmatprep.subr.bf16.mxu0 0
  %810 = vmatpush1.bf16.msra.mxu0 0
  %811 = vmatprep.subr.bf16.mxu0 0
  %812 = vmatpush1.bf16.msra.mxu0 0
  %813 = vmatprep.subr.bf16.mxu0 0
  %814 = vmatpush1.bf16.msra.mxu0 0
  %815 = vmatprep.subr.bf16.mxu0 0
  %816 = vmatpush1.bf16.msra.mxu0 0
  %817 = vmatprep.mubr.bf16.mxu0 0
  %818 = vmatmul.mubr.bf16.gmra.mrb[0].mxu0 %v783
  %v819 = vpop.f32.mrb[0].mxu0
  %v820 = vadd.f32 %v735, %v819
  %v821 = vpop.f32.mrb[0].mxu0
  %v822 = vadd.f32 %v739, %v821
  %v823 = vpop.f32.mrb[0].mxu0
  %v824 = vpop.f32.mrb[0].mxu0
  %825 = vdwg.mxu0
  %v826 = vld [vmem:[#allocation3] sm:$0x3]
  %s827 = scalar_lea.vmem [#allocation4], 6
  %v828 = vld [vmem:[%s827] sm:$0x3]
  %v829 = vadd.f32 %v826, %v820
  %v830 = vxor.u32 %v829, 2147483648
  %v831 = vmul.f32 %v830, 1.442695
  %v832 = vpow.pop %v831
  %v833 = vadd.f32 %v832, 1.0
  %v834 = vrcp.pop %v833
  %v835 = vmul.f32 1.0, %v834
  %838 = vrot.lane.b32.xlu0 %v820, 32
  %v839 = vpop.permute.xlu0 %838
  %840 = vrot.lane.b32.xlu0 %v822, 32
  %v841 = vpop.permute.xlu0 %840
  %v842 = vsel %vm625, %v839, %v841
  %v844 = vadd.f32 %v828, %v842
  %v845 = vxor.u32 %v844, 2147483648
  %v846 = vmul.f32 %v845, 1.442695
  %v847 = vpow.pop %v846
  %v848 = vadd.f32 %v847, 1.0
  %v849 = vrcp.pop %v848
  %v850 = vmul.f32 1.0, %v849
  %851 = vrot.lane.b32.xlu0 %v820, 64
  %v852 = vpop.permute.xlu0 %851
  %v854 = vmul.f32 %v835, %v852
  %856 = vrot.lane.b32.xlu0 %v854, 64
  %v857 = vpop.permute.xlu0 %856
  %v859 = vadd.f32 %v826, %v857
  %v860 = vtanh.pop %v859
  %861 = vrot.lane.b32.xlu0 %v822, 96
  %v862 = vpop.permute.xlu0 %861
  %v864 = vmul.f32 %v850, %v862
  %866 = vrot.lane.b32.xlu0 %v864, 64
  %v867 = vpop.permute.xlu0 %866
  %v869 = vadd.f32 %v828, %v867
  %v870 = vtanh.pop %v869
  %v871 = vsub.f32 1.0, %v835
  %873 = vrot.lane.b32.xlu0 %v860, 96
  %v874 = vpop.permute.xlu0 %873
  %v876 = vmul.f32 %v871, %v874
  %878 = vrot.lane.b32.xlu0 %v720, 32
  %v879 = vpop.permute.xlu0 %878
  %v881 = vmul.f32 %v835, %v879
  %v882 = vadd.f32 %v876, %v881
  %v883 = vsub.f32 1.0, %v850
  %885 = vrot.lane.b32.xlu0 %v870, 96
  %v886 = vpop.permute.xlu0 %885
  %v888 = vmul.f32 %v883, %v886
  %v889 = vmul.f32 %v850, %v720
  %v890 = vadd.f32 %v888, %v889
  %892 = vrot.lane.b32.xlu0 %v882, 96
  %v893 = vpop.permute.xlu0 %892
  %v895 = vsel %vm625, %v893, %v890
  %vm896 = vcmask 517120
  %897 = vst.msk [vmem:[#allocation2] sm:$0x3] %vm896, %v895
  %vm898 = vcmask 254976
  %899 = vst.msk [vmem:[%s10] sm:$0x3] %vm898, %v893
  %901 = vrot.lane.b32.xlu0 %v890, 96
  %v902 = vpop.permute.xlu0 %901
  %s904 = scalar_lea.vmem %s93, 6
  %905 = vst.msk [vmem:[%s904] sm:$0x3] %vm898, %v902
  %v906 = vld [vmem:[#allocation2] sm:$0x3]
  %v907 = vpack.c.bf16 %v906, %v906
  %v908 = vld [vmem:[%s6] sm:$0xff]
  %v909 = vld [vmem:[%s6 + $0x8] sm:$0xff]
  %v910 = vld [vmem:[%s6 + $0x10] sm:$0xff]
  %v911 = vld [vmem:[%s6 + $0x18] sm:$0xff]
  %v912 = vld [vmem:[%s6 + $0x20] sm:$0xff]
  %v913 = vld [vmem:[%s6 + $0x28] sm:$0xff]
  %v914 = vld [vmem:[%s6 + $0x30] sm:$0xff]
  %v915 = vld [vmem:[%s6 + $0x38] sm:$0xff]
  %v916 = vld [vmem:[%s9] sm:$0x3]
  %v918 = vlaneseq
  %v919 = vshrl.u32 %v918, 7
  %v920 = vsub.s32 0, %v919
  %v921 = vrot.slane %v916, %v920
  %v922 = vlaneseq
  %v923 = vshrl.u32 %v922, 7
  %v924 = vsub.s32 1, %v923
  %v925 = vrot.slane %v916, %v924
  %v936 = vunpack.c.l.b16 %v908
  %v937 = vunpack.c.h.b16 %v908
  %v938 = vunpack.c.l.b16 %v909
  %v939 = vunpack.c.h.b16 %v909
  %v940 = vunpack.c.l.b16 %v910
  %v941 = vunpack.c.h.b16 %v910
  %v942 = vunpack.c.l.b16 %v911
  %v943 = vunpack.c.h.b16 %v911
  %v944 = vunpack.c.l.b16 %v912
  %v945 = vunpack.c.h.b16 %v912
  %v946 = vunpack.c.l.b16 %v913
  %v947 = vunpack.c.h.b16 %v913
  %v948 = vunpack.c.l.b16 %v914
  %v949 = vunpack.c.h.b16 %v914
  %v950 = vunpack.c.l.b16 %v915
  %v951 = vunpack.c.h.b16 %v915
  %v952 = vpack.c.b16 %v938, %v936
  %v953 = vpack.c.b16 %v939, %v937
  %v954 = vpack.c.b16 %v942, %v940
  %v955 = vpack.c.b16 %v943, %v941
  %v956 = vpack.c.b16 %v946, %v944
  %v957 = vpack.c.b16 %v947, %v945
  %v958 = vpack.c.b16 %v950, %v948
  %v959 = vpack.c.b16 %v951, %v949
  %v969 = vsel %vm630, %v907, 0
  %971 = vmatprep.subr.bf16.mxu0 %v953
  %972 = vmatpush1.bf16.msra.mxu0 %v952
  %973 = vmatprep.subr.bf16.mxu0 %v955
  %974 = vmatpush1.bf16.msra.mxu0 %v954
  %975 = vmatprep.subr.bf16.mxu0 %v957
  %976 = vmatpush1.bf16.msra.mxu0 %v956
  %977 = vmatprep.subr.bf16.mxu0 %v959
  %978 = vmatpush1.bf16.msra.mxu0 %v958
  %979 = vmatprep.subr.bf16.mxu0 0
  %980 = vmatpush1.bf16.msra.mxu0 0
  %981 = vmatprep.subr.bf16.mxu0 0
  %982 = vmatpush1.bf16.msra.mxu0 0
  %983 = vmatprep.subr.bf16.mxu0 0
  %984 = vmatpush1.bf16.msra.mxu0 0
  %985 = vmatprep.subr.bf16.mxu0 0
  %986 = vmatpush1.bf16.msra.mxu0 0
  %987 = vmatprep.subr.bf16.mxu0 0
  %988 = vmatpush1.bf16.msra.mxu0 0
  %989 = vmatprep.subr.bf16.mxu0 0
  %990 = vmatpush1.bf16.msra.mxu0 0
  %991 = vmatprep.subr.bf16.mxu0 0
  %992 = vmatpush1.bf16.msra.mxu0 0
  %993 = vmatprep.subr.bf16.mxu0 0
  %994 = vmatpush1.bf16.msra.mxu0 0
  %995 = vmatprep.subr.bf16.mxu0 0
  %996 = vmatpush1.bf16.msra.mxu0 0
  %997 = vmatprep.subr.bf16.mxu0 0
  %998 = vmatpush1.bf16.msra.mxu0 0
  %999 = vmatprep.subr.bf16.mxu0 0
  %1000 = vmatpush1.bf16.msra.mxu0 0
  %1001 = vmatprep.subr.bf16.mxu0 0
  %1002 = vmatpush1.bf16.msra.mxu0 0
  %1003 = vmatprep.mubr.bf16.mxu0 0
  %1004 = vmatmul.mubr.bf16.gmra.mrb[0].mxu0 %v969
  %v1005 = vpop.f32.mrb[0].mxu0
  %v1006 = vadd.f32 %v921, %v1005
  %v1007 = vpop.f32.mrb[0].mxu0
  %v1008 = vadd.f32 %v925, %v1007
  %v1009 = vpop.f32.mrb[0].mxu0
  %v1010 = vpop.f32.mrb[0].mxu0
  %1011 = vdwg.mxu0
  %s1012 = scalar_lea.vmem [#allocation3], 2
  %v1013 = vld [vmem:[%s1012] sm:$0x3]
  %s1014 = scalar_lea.vmem [#allocation4], 4
  %v1015 = vld [vmem:[%s1014] sm:$0x3]
  %v1016 = vadd.f32 %v1013, %v1006
  %v1017 = vxor.u32 %v1016, 2147483648
  %v1018 = vmul.f32 %v1017, 1.442695
  %v1019 = vpow.pop %v1018
  %v1020 = vadd.f32 %v1019, 1.0
  %v1021 = vrcp.pop %v1020
  %v1022 = vmul.f32 1.0, %v1021
  %1025 = vrot.lane.b32.xlu0 %v1006, 32
  %v1026 = vpop.permute.xlu0 %1025
  %1027 = vrot.lane.b32.xlu0 %v1008, 32
  %v1028 = vpop.permute.xlu0 %1027
  %v1029 = vsel %vm625, %v1026, %v1028
  %v1031 = vadd.f32 %v1015, %v1029
  %v1032 = vxor.u32 %v1031, 2147483648
  %v1033 = vmul.f32 %v1032, 1.442695
  %v1034 = vpow.pop %v1033
  %v1035 = vadd.f32 %v1034, 1.0
  %v1036 = vrcp.pop %v1035
  %v1037 = vmul.f32 1.0, %v1036
  %1038 = vrot.lane.b32.xlu0 %v1006, 64
  %v1039 = vpop.permute.xlu0 %1038
  %v1041 = vmul.f32 %v1022, %v1039
  %1043 = vrot.lane.b32.xlu0 %v1041, 64
  %v1044 = vpop.permute.xlu0 %1043
  %v1046 = vadd.f32 %v1013, %v1044
  %v1047 = vtanh.pop %v1046
  %1048 = vrot.lane.b32.xlu0 %v1008, 96
  %v1049 = vpop.permute.xlu0 %1048
  %v1051 = vmul.f32 %v1037, %v1049
  %1053 = vrot.lane.b32.xlu0 %v1051, 64
  %v1054 = vpop.permute.xlu0 %1053
  %v1056 = vadd.f32 %v1015, %v1054
  %v1057 = vtanh.pop %v1056
  %v1058 = vsub.f32 1.0, %v1022
  %1060 = vrot.lane.b32.xlu0 %v1047, 96
  %v1061 = vpop.permute.xlu0 %1060
  %v1063 = vmul.f32 %v1058, %v1061
  %1065 = vrot.lane.b32.xlu0 %v906, 32
  %v1066 = vpop.permute.xlu0 %1065
  %v1068 = vmul.f32 %v1022, %v1066
  %v1069 = vadd.f32 %v1063, %v1068
  %v1070 = vsub.f32 1.0, %v1037
  %1072 = vrot.lane.b32.xlu0 %v1057, 96
  %v1073 = vpop.permute.xlu0 %1072
  %v1075 = vmul.f32 %v1070, %v1073
  %v1076 = vmul.f32 %v1037, %v906
  %v1077 = vadd.f32 %v1075, %v1076
  %1079 = vrot.lane.b32.xlu0 %v1069, 96
  %v1080 = vpop.permute.xlu0 %1079
  %v1082 = vsel %vm625, %v1080, %v1077
  %1083 = vst.msk [vmem:[#allocation2] sm:$0x3] %vm896, %v1082
  %s1084 = scalar_lea.vmem %s10, 2
  %1085 = vst.msk [vmem:[%s1084] sm:$0x3] %vm898, %v1080
  %1087 = vrot.lane.b32.xlu0 %v1077, 96
  %v1088 = vpop.permute.xlu0 %1087
  %s1090 = scalar_lea.vmem %s93, 4
  %1091 = vst.msk [vmem:[%s1090] sm:$0x3] %vm898, %v1088
  %v1092 = vld [vmem:[#allocation2] sm:$0x3]
  %v1093 = vpack.c.bf16 %v1092, %v1092
  %v1094 = vld [vmem:[%s6] sm:$0xff]
  %v1095 = vld [vmem:[%s6 + $0x8] sm:$0xff]
  %v1096 = vld [vmem:[%s6 + $0x10] sm:$0xff]
  %v1097 = vld [vmem:[%s6 + $0x18] sm:$0xff]
  %v1098 = vld [vmem:[%s6 + $0x20] sm:$0xff]
  %v1099 = vld [vmem:[%s6 + $0x28] sm:$0xff]
  %v1100 = vld [vmem:[%s6 + $0x30] sm:$0xff]
  %v1101 = vld [vmem:[%s6 + $0x38] sm:$0xff]
  %v1102 = vld [vmem:[%s9] sm:$0x3]
  %v1104 = vlaneseq
  %v1105 = vshrl.u32 %v1104, 7
  %v1106 = vsub.s32 0, %v1105
  %v1107 = vrot.slane %v1102, %v1106
  %v1108 = vlaneseq
  %v1109 = vshrl.u32 %v1108, 7
  %v1110 = vsub.s32 1, %v1109
  %v1111 = vrot.slane %v1102, %v1110
  %v1122 = vunpack.c.l.b16 %v1094
  %v1123 = vunpack.c.h.b16 %v1094
  %v1124 = vunpack.c.l.b16 %v1095
  %v1125 = vunpack.c.h.b16 %v1095
  %v1126 = vunpack.c.l.b16 %v1096
  %v1127 = vunpack.c.h.b16 %v1096
  %v1128 = vunpack.c.l.b16 %v1097
  %v1129 = vunpack.c.h.b16 %v1097
  %v1130 = vunpack.c.l.b16 %v1098
  %v1131 = vunpack.c.h.b16 %v1098
  %v1132 = vunpack.c.l.b16 %v1099
  %v1133 = vunpack.c.h.b16 %v1099
  %v1134 = vunpack.c.l.b16 %v1100
  %v1135 = vunpack.c.h.b16 %v1100
  %v1136 = vunpack.c.l.b16 %v1101
  %v1137 = vunpack.c.h.b16 %v1101
  %v1138 = vpack.c.b16 %v1124, %v1122
  %v1139 = vpack.c.b16 %v1125, %v1123
  %v1140 = vpack.c.b16 %v1128, %v1126
  %v1141 = vpack.c.b16 %v1129, %v1127
  %v1142 = vpack.c.b16 %v1132, %v1130
  %v1143 = vpack.c.b16 %v1133, %v1131
  %v1144 = vpack.c.b16 %v1136, %v1134
  %v1145 = vpack.c.b16 %v1137, %v1135
  %v1155 = vsel %vm630, %v1093, 0
  %1157 = vmatprep.subr.bf16.mxu0 %v1139
  %1158 = vmatpush1.bf16.msra.mxu0 %v1138
  %1159 = vmatprep.subr.bf16.mxu0 %v1141
  %1160 = vmatpush1.bf16.msra.mxu0 %v1140
  %1161 = vmatprep.subr.bf16.mxu0 %v1143
  %1162 = vmatpush1.bf16.msra.mxu0 %v1142
  %1163 = vmatprep.subr.bf16.mxu0 %v1145
  %1164 = vmatpush1.bf16.msra.mxu0 %v1144
  %1165 = vmatprep.subr.bf16.mxu0 0
  %1166 = vmatpush1.bf16.msra.mxu0 0
  %1167 = vmatprep.subr.bf16.mxu0 0
  %1168 = vmatpush1.bf16.msra.mxu0 0
  %1169 = vmatprep.subr.bf16.mxu0 0
  %1170 = vmatpush1.bf16.msra.mxu0 0
  %1171 = vmatprep.subr.bf16.mxu0 0
  %1172 = vmatpush1.bf16.msra.mxu0 0
  %1173 = vmatprep.subr.bf16.mxu0 0
  %1174 = vmatpush1.bf16.msra.mxu0 0
  %1175 = vmatprep.subr.bf16.mxu0 0
  %1176 = vmatpush1.bf16.msra.mxu0 0
  %1177 = vmatprep.subr.bf16.mxu0 0
  %1178 = vmatpush1.bf16.msra.mxu0 0
  %1179 = vmatprep.subr.bf16.mxu0 0
  %1180 = vmatpush1.bf16.msra.mxu0 0
  %1181 = vmatprep.subr.bf16.mxu0 0
  %1182 = vmatpush1.bf16.msra.mxu0 0
  %1183 = vmatprep.subr.bf16.mxu0 0
  %1184 = vmatpush1.bf16.msra.mxu0 0
  %1185 = vmatprep.subr.bf16.mxu0 0
  %1186 = vmatpush1.bf16.msra.mxu0 0
  %1187 = vmatprep.subr.bf16.mxu0 0
  %1188 = vmatpush1.bf16.msra.mxu0 0
  %1189 = vmatprep.mubr.bf16.mxu0 0
  %1190 = vmatmul.mubr.bf16.gmra.mrb[0].mxu0 %v1155
  %v1191 = vpop.f32.mrb[0].mxu0
  %v1192 = vadd.f32 %v1107, %v1191
  %v1193 = vpop.f32.mrb[0].mxu0
  %v1194 = vadd.f32 %v1111, %v1193
  %v1195 = vpop.f32.mrb[0].mxu0
  %v1196 = vpop.f32.mrb[0].mxu0
  %1197 = vdwg.mxu0
  %s1198 = scalar_lea.vmem [#allocation3], 4
  %v1199 = vld [vmem:[%s1198] sm:$0x3]
  %s1200 = scalar_lea.vmem [#allocation4], 2
  %v1201 = vld [vmem:[%s1200] sm:$0x3]
  %v1202 = vadd.f32 %v1199, %v1192
  %v1203 = vxor.u32 %v1202, 2147483648
  %v1204 = vmul.f32 %v1203, 1.442695
  %v1205 = vpow.pop %v1204
  %v1206 = vadd.f32 %v1205, 1.0
  %v1207 = vrcp.pop %v1206
  %v1208 = vmul.f32 1.0, %v1207
  %1211 = vrot.lane.b32.xlu0 %v1192, 32
  %v1212 = vpop.permute.xlu0 %1211
  %1213 = vrot.lane.b32.xlu0 %v1194, 32
  %v1214 = vpop.permute.xlu0 %1213
  %v1215 = vsel %vm625, %v1212, %v1214
  %v1217 = vadd.f32 %v1201, %v1215
  %v1218 = vxor.u32 %v1217, 2147483648
  %v1219 = vmul.f32 %v1218, 1.442695
  %v1220 = vpow.pop %v1219
  %v1221 = vadd.f32 %v1220, 1.0
  %v1222 = vrcp.pop %v1221
  %v1223 = vmul.f32 1.0, %v1222
  %1224 = vrot.lane.b32.xlu0 %v1192, 64
  %v1225 = vpop.permute.xlu0 %1224
  %v1227 = vmul.f32 %v1208, %v1225
  %1229 = vrot.lane.b32.xlu0 %v1227, 64
  %v1230 = vpop.permute.xlu0 %1229
  %v1232 = vadd.f32 %v1199, %v1230
  %v1233 = vtanh.pop %v1232
  %1234 = vrot.lane.b32.xlu0 %v1194, 96
  %v1235 = vpop.permute.xlu0 %1234
  %v1237 = vmul.f32 %v1223, %v1235
  %1239 = vrot.lane.b32.xlu0 %v1237, 64
  %v1240 = vpop.permute.xlu0 %1239
  %v1242 = vadd.f32 %v1201, %v1240
  %v1243 = vtanh.pop %v1242
  %v1244 = vsub.f32 1.0, %v1208
  %1246 = vrot.lane.b32.xlu0 %v1233, 96
  %v1247 = vpop.permute.xlu0 %1246
  %v1249 = vmul.f32 %v1244, %v1247
  %1251 = vrot.lane.b32.xlu0 %v1092, 32
  %v1252 = vpop.permute.xlu0 %1251
  %v1254 = vmul.f32 %v1208, %v1252
  %v1255 = vadd.f32 %v1249, %v1254
  %v1256 = vsub.f32 1.0, %v1223
  %1258 = vrot.lane.b32.xlu0 %v1243, 96
  %v1259 = vpop.permute.xlu0 %1258
  %v1261 = vmul.f32 %v1256, %v1259
  %v1262 = vmul.f32 %v1223, %v1092
  %v1263 = vadd.f32 %v1261, %v1262
  %1265 = vrot.lane.b32.xlu0 %v1255, 96
  %v1266 = vpop.permute.xlu0 %1265
  %v1268 = vsel %vm625, %v1266, %v1263
  %1269 = vst.msk [vmem:[#allocation2] sm:$0x3] %vm896, %v1268
  %s1270 = scalar_lea.vmem %s10, 4
  %1271 = vst.msk [vmem:[%s1270] sm:$0x3] %vm898, %v1266
  %1273 = vrot.lane.b32.xlu0 %v1263, 96
  %v1274 = vpop.permute.xlu0 %1273
  %s1276 = scalar_lea.vmem %s93, 2
  %1277 = vst.msk [vmem:[%s1276] sm:$0x3] %vm898, %v1274
  %v1278 = vld [vmem:[#allocation2] sm:$0x3]
  %v1279 = vpack.c.bf16 %v1278, %v1278
  %v1280 = vld [vmem:[%s6] sm:$0xff]
  %v1281 = vld [vmem:[%s6 + $0x8] sm:$0xff]
  %v1282 = vld [vmem:[%s6 + $0x10] sm:$0xff]
  %v1283 = vld [vmem:[%s6 + $0x18] sm:$0xff]
  %v1284 = vld [vmem:[%s6 + $0x20] sm:$0xff]
  %v1285 = vld [vmem:[%s6 + $0x28] sm:$0xff]
  %v1286 = vld [vmem:[%s6 + $0x30] sm:$0xff]
  %v1287 = vld [vmem:[%s6 + $0x38] sm:$0xff]
  %v1288 = vld [vmem:[%s9] sm:$0x3]
  %v1290 = vlaneseq
  %v1291 = vshrl.u32 %v1290, 7
  %v1292 = vsub.s32 0, %v1291
  %v1293 = vrot.slane %v1288, %v1292
  %v1294 = vlaneseq
  %v1295 = vshrl.u32 %v1294, 7
  %v1296 = vsub.s32 1, %v1295
  %v1297 = vrot.slane %v1288, %v1296
  %v1308 = vunpack.c.l.b16 %v1280
  %v1309 = vunpack.c.h.b16 %v1280
  %v1310 = vunpack.c.l.b16 %v1281
  %v1311 = vunpack.c.h.b16 %v1281
  %v1312 = vunpack.c.l.b16 %v1282
  %v1313 = vunpack.c.h.b16 %v1282
  %v1314 = vunpack.c.l.b16 %v1283
  %v1315 = vunpack.c.h.b16 %v1283
  %v1316 = vunpack.c.l.b16 %v1284
  %v1317 = vunpack.c.h.b16 %v1284
  %v1318 = vunpack.c.l.b16 %v1285
  %v1319 = vunpack.c.h.b16 %v1285
  %v1320 = vunpack.c.l.b16 %v1286
  %v1321 = vunpack.c.h.b16 %v1286
  %v1322 = vunpack.c.l.b16 %v1287
  %v1323 = vunpack.c.h.b16 %v1287
  %v1324 = vpack.c.b16 %v1310, %v1308
  %v1325 = vpack.c.b16 %v1311, %v1309
  %v1326 = vpack.c.b16 %v1314, %v1312
  %v1327 = vpack.c.b16 %v1315, %v1313
  %v1328 = vpack.c.b16 %v1318, %v1316
  %v1329 = vpack.c.b16 %v1319, %v1317
  %v1330 = vpack.c.b16 %v1322, %v1320
  %v1331 = vpack.c.b16 %v1323, %v1321
  %v1341 = vsel %vm630, %v1279, 0
  %1343 = vmatprep.subr.bf16.mxu0 %v1325
  %1344 = vmatpush1.bf16.msra.mxu0 %v1324
  %1345 = vmatprep.subr.bf16.mxu0 %v1327
  %1346 = vmatpush1.bf16.msra.mxu0 %v1326
  %1347 = vmatprep.subr.bf16.mxu0 %v1329
  %1348 = vmatpush1.bf16.msra.mxu0 %v1328
  %1349 = vmatprep.subr.bf16.mxu0 %v1331
  %1350 = vmatpush1.bf16.msra.mxu0 %v1330
  %1351 = vmatprep.subr.bf16.mxu0 0
  %1352 = vmatpush1.bf16.msra.mxu0 0
  %1353 = vmatprep.subr.bf16.mxu0 0
  %1354 = vmatpush1.bf16.msra.mxu0 0
  %1355 = vmatprep.subr.bf16.mxu0 0
  %1356 = vmatpush1.bf16.msra.mxu0 0
  %1357 = vmatprep.subr.bf16.mxu0 0
  %1358 = vmatpush1.bf16.msra.mxu0 0
  %1359 = vmatprep.subr.bf16.mxu0 0
  %1360 = vmatpush1.bf16.msra.mxu0 0
  %1361 = vmatprep.subr.bf16.mxu0 0
  %1362 = vmatpush1.bf16.msra.mxu0 0
  %1363 = vmatprep.subr.bf16.mxu0 0
  %1364 = vmatpush1.bf16.msra.mxu0 0
  %1365 = vmatprep.subr.bf16.mxu0 0
  %1366 = vmatpush1.bf16.msra.mxu0 0
  %1367 = vmatprep.subr.bf16.mxu0 0
  %1368 = vmatpush1.bf16.msra.mxu0 0
  %1369 = vmatprep.subr.bf16.mxu0 0
  %1370 = vmatpush1.bf16.msra.mxu0 0
  %1371 = vmatprep.subr.bf16.mxu0 0
  %1372 = vmatpush1.bf16.msra.mxu0 0
  %1373 = vmatprep.subr.bf16.mxu0 0
  %1374 = vmatpush1.bf16.msra.mxu0 0
  %1375 = vmatprep.mubr.bf16.mxu0 0
  %1376 = vmatmul.mubr.bf16.gmra.mrb[0].mxu0 %v1341
  %v1377 = vpop.f32.mrb[0].mxu0
  %v1378 = vadd.f32 %v1293, %v1377
  %v1379 = vpop.f32.mrb[0].mxu0
  %v1380 = vadd.f32 %v1297, %v1379
  %v1381 = vpop.f32.mrb[0].mxu0
  %v1382 = vpop.f32.mrb[0].mxu0
  %1383 = vdwg.mxu0
  %s1384 = scalar_lea.vmem [#allocation3], 6
  %v1385 = vld [vmem:[%s1384] sm:$0x3]
  %v1386 = vld [vmem:[#allocation4] sm:$0x3]
  %v1387 = vadd.f32 %v1385, %v1378
  %v1388 = vxor.u32 %v1387, 2147483648
  %v1389 = vmul.f32 %v1388, 1.442695
  %v1390 = vpow.pop %v1389
  %v1391 = vadd.f32 %v1390, 1.0
  %v1392 = vrcp.pop %v1391
  %v1393 = vmul.f32 1.0, %v1392
  %1396 = vrot.lane.b32.xlu0 %v1378, 32
  %v1397 = vpop.permute.xlu0 %1396
  %1398 = vrot.lane.b32.xlu0 %v1380, 32
  %v1399 = vpop.permute.xlu0 %1398
  %v1400 = vsel %vm625, %v1397, %v1399
  %v1402 = vadd.f32 %v1386, %v1400
  %v1403 = vxor.u32 %v1402, 2147483648
  %v1404 = vmul.f32 %v1403, 1.442695
  %v1405 = vpow.pop %v1404
  %v1406 = vadd.f32 %v1405, 1.0
  %v1407 = vrcp.pop %v1406
  %v1408 = vmul.f32 1.0, %v1407
  %1409 = vrot.lane.b32.xlu0 %v1378, 64
  %v1410 = vpop.permute.xlu0 %1409
  %v1412 = vmul.f32 %v1393, %v1410
  %1414 = vrot.lane.b32.xlu0 %v1412, 64
  %v1415 = vpop.permute.xlu0 %1414
  %v1417 = vadd.f32 %v1385, %v1415
  %v1418 = vtanh.pop %v1417
  %1419 = vrot.lane.b32.xlu0 %v1380, 96
  %v1420 = vpop.permute.xlu0 %1419
  %v1422 = vmul.f32 %v1408, %v1420
  %1424 = vrot.lane.b32.xlu0 %v1422, 64
  %v1425 = vpop.permute.xlu0 %1424
  %v1427 = vadd.f32 %v1386, %v1425
  %v1428 = vtanh.pop %v1427
  %v1429 = vsub.f32 1.0, %v1393
  %1431 = vrot.lane.b32.xlu0 %v1418, 96
  %v1432 = vpop.permute.xlu0 %1431
  %v1434 = vmul.f32 %v1429, %v1432
  %1436 = vrot.lane.b32.xlu0 %v1278, 32
  %v1437 = vpop.permute.xlu0 %1436
  %v1439 = vmul.f32 %v1393, %v1437
  %v1440 = vadd.f32 %v1434, %v1439
  %v1441 = vsub.f32 1.0, %v1408
  %1443 = vrot.lane.b32.xlu0 %v1428, 96
  %v1444 = vpop.permute.xlu0 %1443
  %v1446 = vmul.f32 %v1441, %v1444
  %v1447 = vmul.f32 %v1408, %v1278
  %v1448 = vadd.f32 %v1446, %v1447
  %1450 = vrot.lane.b32.xlu0 %v1440, 96
  %v1451 = vpop.permute.xlu0 %1450
  %v1453 = vsel %vm625, %v1451, %v1448
  %1454 = vst.msk [vmem:[#allocation2] sm:$0x3] %vm896, %v1453
  %s1455 = scalar_lea.vmem %s10, 6
  %1456 = vst.msk [vmem:[%s1455] sm:$0x3] %vm898, %v1451
  %1458 = vrot.lane.b32.xlu0 %v1448, 96
  %v1459 = vpop.permute.xlu0 %1458
  %1461 = vst.msk [vmem:[%s93] sm:$0x3] %vm898, %v1459
  %v1462 = vld [vmem:[#allocation2] sm:$0x3]
  %1463 = vst.msk [vmem:[%s12] sm:$0x3] %vm898, %v1462
  %v1464 = vld [vmem:[#allocation2] sm:$0x3]
  %1466 = vrot.lane.b32.xlu0 %v1464, 96
  %v1467 = vpop.permute.xlu0 %1466
  %s1469 = scalar_lea.vmem %s12, 2
  %1470 = vst.msk [vmem:[%s1469] sm:$0x3] %vm898, %v1467
  %s1471 = ssub.s32 0, 0
  %s1472 = smul.u32 4, %s1471
  %p1473 = scmp.lt.s32.totalorder %s1472, 3
  %s1474 = scalar_select %p1473, %s1472, 3
  %s1475 = smul.addr %s1474, 2
  %s1476 = scalar_lea.vmem %s11, %s1475
  // Predicated region
  $region46: #{listen_rnn_forward.7} parent=0 // pred_check
    _
  $region47: #{listen_rnn_forward.7} parent=0 // pred_check_branch
    %1478 = sbr.rel (0) target = $region49
  $region48: #{listen_rnn_forward.7} parent=0 // pred_region
    _
  $region49: #{listen_rnn_forward.7} parent=0 // pred_fallthru
    _
  // Predicated region
  $region50: #{listen_rnn_forward.7} parent=0 // pred_check
    _
  $region51: #{listen_rnn_forward.7} parent=0 // pred_check_branch
    %1480 = sbr.rel (0) target = $region53
  $region52: #{listen_rnn_forward.7} parent=0 // pred_region
    %s1481 = ssub.s32 0, 0
    %s1482 = smul.u32 4, %s1481
  $region53: #{listen_rnn_forward.7} parent=0 // pred_fallthru
    _
  // Predicated region
  $region54: #{listen_rnn_forward.7} parent=0 // pred_check
    _
  $region55: #{listen_rnn_forward.7} parent=0 // pred_check_branch
    %1484 = sbr.rel (0) target = $region57
  $region56: #{listen_rnn_forward.7} parent=0 // pred_region
    _
  $region57: #{listen_rnn_forward.7} parent=0 // pred_fallthru
    _
  // Predicated region
  $region58: #{listen_rnn_forward.7} parent=0 // pred_check
    _
  $region59: #{listen_rnn_forward.7} parent=0 // pred_check_branch
    %1486 = sbr.rel (0) target = $region61
  $region60: #{listen_rnn_forward.7} parent=0 // pred_region
    _
  $region61: #{listen_rnn_forward.7} parent=0 // pred_fallthru
    _
  // Predicated region
  $region62: #{listen_rnn_forward.7} parent=0 // pred_check
    _
  $region63: #{listen_rnn_forward.7} parent=0 // pred_check_branch
    %1488 = sbr.rel (0) target = $region65
  $region64: #{listen_rnn_forward.7} parent=0 // pred_region
    %s1489 = ssub.s32 0, 0
    %s1490 = smul.u32 4, %s1489
    %p1491 = scmp.lt.s32.totalorder %s1490, 3
    %s1492 = scalar_select %p1491, %s1490, 3
    %s1493 = smul.addr %s1492, 2
    %s1494 = scalar_lea.vmem %s11, %s1493
  $region65: #{listen_rnn_forward.7} parent=0 // pred_fallthru
    _
  // Predicated region
  $region66: #{listen_rnn_forward.7} parent=0 // pred_check
    _
  $region67: #{listen_rnn_forward.7} parent=0 // pred_check_branch
    %1496 = sbr.rel (0) target = $region69
  $region68: #{listen_rnn_forward.7} parent=0 // pred_region
    _
  $region69: #{listen_rnn_forward.7} parent=0 // pred_fallthru
    _

</llo_original>
